<compile_context>
chip_gen: v7x
topology: tpu7x:2x2x1
jax: 0.10.0
libtpu: 0.0.40
codegen_flags: <defaults>
</compile_context>

<pallas_src>
import functools

import jax
import jax.numpy as jnp
from jax import lax
from jax.experimental import pallas as pl
from jax.experimental.pallas import tpu as pltpu


_VMEM_SPEC = pl.BlockSpec(memory_space=pltpu.MemorySpace.VMEM)


# -----------------------------------------------------------------------------
# Fused Pallas kernel: all bidirectional LSTM layers + classifier
# -----------------------------------------------------------------------------
def _lstm_cell(z, c, H):
    """z: [B, 4H] pre-activations (PyTorch gate order i, f, g, o)."""
    # NOTE: for the real model H=768=6*128 these gate slices are lane-aligned.
    i = jax.nn.sigmoid(z[:, 0 * H:1 * H])
    f = jax.nn.sigmoid(z[:, 1 * H:2 * H])
    g = jnp.tanh(z[:, 2 * H:3 * H])
    o = jax.nn.sigmoid(z[:, 3 * H:4 * H])
    c_new = f * c + i * g
    h_new = o * jnp.tanh(c_new)
    return h_new, c_new


def _fused_kernel(*refs, num_layers, T, B, H):
    """refs = (x_ref,
               [w_ih_cat, w_hh_fwd, w_hh_bwd, b_cat] * num_layers,
               w_cls, b_cls,
               out_ref)

    x_ref     : [T*B, H]       time-major flattened BERT hidden states
    w_ih_cat  : [Din, 8H]      fwd|bwd input->gates weights, concatenated
    w_hh_fwd  : [H, 4H]        fwd recurrent weights
    w_hh_bwd  : [H, 4H]        bwd recurrent weights
    b_cat     : [1, 8H]        fwd|bwd (b_ih + b_hh), concatenated
    w_cls     : [2H, Cpad]     classifier weight (lane-padded)
    b_cls     : [1, Cpad]
    out_ref   : [T*B, Cpad]    logits (time-major, lane-padded)
    """
    x_ref = refs[0]
    layer_refs = []
    idx = 1
    for _ in range(num_layers):
        layer_refs.append(refs[idx:idx + 4])
        idx += 4
    w_cls_ref, b_cls_ref, out_ref = refs[idx], refs[idx + 1], refs[idx + 2]

    h2d = x_ref[...]                                        # [T*B, Din0]

    for (w_ih_ref, whh_f_ref, whh_b_ref, b_ref) in layer_refs:
        # --- hoisted input projection for BOTH directions: one big matmul ---
        z_in = (jnp.dot(h2d, w_ih_ref[...],
                        preferred_element_type=jnp.float32)
                + b_ref[...])                               # [T*B, 8H]
        whh_f = whh_f_ref[...]
        whh_b = whh_b_ref[...]

        h_f = jnp.zeros((B, H), jnp.float32)
        c_f = jnp.zeros((B, H), jnp.float32)
        h_b = jnp.zeros((B, H), jnp.float32)
        c_b = jnp.zeros((B, H), jnp.float32)
        outs_f = [None] * T
        outs_b = [None] * T

        # --- fully unrolled recurrence; only h @ W_hh stays on the serial path
        for t in range(T):                                  # static unroll
            tb = T - 1 - t                                  # bwd time index
            zf = z_in[t * B:(t + 1) * B, :4 * H] + jnp.dot(
                h_f, whh_f, preferred_element_type=jnp.float32)
            zb = z_in[tb * B:(tb + 1) * B, 4 * H:] + jnp.dot(
                h_b, whh_b, preferred_element_type=jnp.float32)
            h_f, c_f = _lstm_cell(zf, c_f, H)
            h_b, c_b = _lstm_cell(zb, c_b, H)
            outs_f[t] = h_f
            outs_b[tb] = h_b

        # bidirectional concat stays in VMEM/vregs (no HBM round-trip)
        h2d = jnp.concatenate(
            [jnp.concatenate([outs_f[t], outs_b[t]], axis=-1)
             for t in range(T)],
            axis=0)                                         # [T*B, 2H]

    # --- classifier, fused; single lane-dense full-block store ---
    logits = (jnp.dot(h2d, w_cls_ref[...],
                      preferred_element_type=jnp.float32)
              + b_cls_ref[...])                             # [T*B, Cpad]
    out_ref[...] = logits


# -----------------------------------------------------------------------------
# Model wrapper (mirrors TorchModel.forward inference path, use_crf=False)
# -----------------------------------------------------------------------------
def torch_model_forward(x, params):
    """x: [B, T, H] float32 (BERT last_hidden_state). Returns logits [B, T, C]."""
    B, T, H = x.shape
    num_layers = len(params["lstm"])
    C = params["classify"]["w"].shape[1]
    Cpad = ((C + 127) // 128) * 128

    # pad classifier output dim to a lane-dense multiple of 128
    w_cls = jnp.pad(params["classify"]["w"], ((0, 0), (0, Cpad - C)))
    b_cls = jnp.pad(params["classify"]["b"], ((0, 0), (0, Cpad - C)))

    # single time-major flatten; row index = t*B + b
    x_tm = jnp.transpose(x, (1, 0, 2)).reshape(T * B, H)

    flat_args = [x_tm]
    for lp in params["lstm"]:
        w_ih_cat = jnp.concatenate([lp["fwd"]["w_ih"], lp["bwd"]["w_ih"]],
                                   axis=1)                  # [Din, 8H]
        b_cat = jnp.concatenate([lp["fwd"]["b"], lp["bwd"]["b"]], axis=1)
        flat_args += [w_ih_cat, lp["fwd"]["w_hh"], lp["bwd"]["w_hh"], b_cat]
    flat_args += [w_cls, b_cls]

    kernel = functools.partial(_fused_kernel, num_layers=num_layers,
                               T=T, B=B, H=H)
    out = pl.pallas_call(
        kernel,
        out_shape=jax.ShapeDtypeStruct((T * B, Cpad), jnp.float32),
        in_specs=[_VMEM_SPEC] * len(flat_args),
        out_specs=_VMEM_SPEC,
        compiler_params=pltpu.CompilerParams(
            vmem_limit_bytes=48 * 1024 * 1024),
    )(*flat_args)

    logits = out.reshape(T, B, Cpad).transpose(1, 0, 2)[:, :, :C]
    return logits


# -----------------------------------------------------------------------------
# Deterministic parameter init (PyTorch LSTM/Linear-style uniform ±1/sqrt(H))
# -----------------------------------------------------------------------------
def init_params(key, hidden_size, class_num, num_layers):
    H = hidden_size
    bound = 1.0 / jnp.sqrt(jnp.float32(H))

    def u(key, shape):
        return jax.random.uniform(key, shape, jnp.float32, -bound, bound)

    params = {"lstm": []}
    for layer in range(num_layers):
        d_in = H if layer == 0 else 2 * H
        layer_p = {}
        for direction in ("fwd", "bwd"):
            key, k1, k2, k3, k4 = jax.random.split(key, 5)
            layer_p[direction] = {
                "w_ih": u(k1, (d_in, 4 * H)),
                "w_hh": u(k2, (H, 4 * H)),
                # b = b_ih + b_hh, kept 2D [1, 4H] for lane-friendly broadcast
                "b": u(k3, (1, 4 * H)) + u(k4, (1, 4 * H)),
            }
        params["lstm"].append(layer_p)

    key, kw, kb = jax.random.split(key, 3)
    cbound = 1.0 / jnp.sqrt(jnp.float32(2 * H))
    params["classify"] = {
        "w": jax.random.uniform(kw, (2 * H, class_num), jnp.float32,
                                -cbound, cbound),
        "b": jax.random.uniform(kb, (1, class_num), jnp.float32,
                                -cbound, cbound),
    }
    return params


# -----------------------------------------------------------------------------
# Pure-JAX reference (for correctness check)
# -----------------------------------------------------------------------------
def _ref_lstm_dir(x_tm, w_ih, w_hh, b):
    T, B, _ = x_tm.shape
    H = w_hh.shape[0]

    def step(carry, x_t):
        h, c = carry
        z = x_t @ w_ih + h @ w_hh + b
        i = jax.nn.sigmoid(z[:, 0 * H:1 * H])
        f = jax.nn.sigmoid(z[:, 1 * H:2 * H])
        g = jnp.tanh(z[:, 2 * H:3 * H])
        o = jax.nn.sigmoid(z[:, 3 * H:4 * H])
        c = f * c + i * g
        h = o * jnp.tanh(c)
        return (h, c), h

    init = (jnp.zeros((B, H)), jnp.zeros((B, H)))
    _, ys = lax.scan(step, init, x_tm)
    return ys


def ref_forward(x, params):
    h = x
    for lp in params["lstm"]:
        h_tm = jnp.transpose(h, (1, 0, 2))
        fwd = _ref_lstm_dir(h_tm, lp["fwd"]["w_ih"], lp["fwd"]["w_hh"],
                            lp["fwd"]["b"])
        bwd = _ref_lstm_dir(h_tm[::-1], lp["bwd"]["w_ih"], lp["bwd"]["w_hh"],
                            lp["bwd"]["b"])[::-1]
        h = jnp.transpose(jnp.concatenate([fwd, bwd], axis=-1), (1, 0, 2))
    B, T, D2 = h.shape
    out = h.reshape(B * T, D2) @ params["classify"]["w"] + params["classify"]["b"]
    return out.reshape(B, T, -1)


# -----------------------------------------------------------------------------
if __name__ == "__main__":
    # synthetic config (stand-in for the original config dict)
    config = dict(hidden_size=32, max_length=8, class_num=8, num_layers=2,
                  use_crf=False)
    B = 2
    T = config["max_length"]
    H = config["hidden_size"]

    key = jax.random.PRNGKey(0)
    key, kx, kp = jax.random.split(key, 3)
    # stand-in for BERT last_hidden_state
    x = jax.random.normal(kx, (B, T, H), dtype=jnp.float32)
    params = init_params(kp, H, config["class_num"], config["num_layers"])

    logits = torch_model_forward(x, params)
    logits = jax.block_until_ready(logits)

    ref = jax.block_until_ready(ref_forward(x, params))
    assert logits.shape == (B, T, config["class_num"])
    assert jnp.allclose(logits, ref, atol=1e-4, rtol=1e-4)

    print("KERNEL_OK")
</pallas_src>

<mosaic_0001>
module attributes {stable_mosaic.version = 11 : i64} {
  func.func @_fused_kernel(%arg0: memref<16x32xf32, #tpu.memory_space<vmem>>, %arg1: memref<32x256xf32, #tpu.memory_space<vmem>>, %arg2: memref<32x128xf32, #tpu.memory_space<vmem>>, %arg3: memref<32x128xf32, #tpu.memory_space<vmem>>, %arg4: memref<1x256xf32, #tpu.memory_space<vmem>>, %arg5: memref<64x256xf32, #tpu.memory_space<vmem>>, %arg6: memref<32x128xf32, #tpu.memory_space<vmem>>, %arg7: memref<32x128xf32, #tpu.memory_space<vmem>>, %arg8: memref<1x256xf32, #tpu.memory_space<vmem>>, %arg9: memref<64x128xf32, #tpu.memory_space<vmem>>, %arg10: memref<1x128xf32, #tpu.memory_space<vmem>>, %arg11: memref<16x128xf32, #tpu.memory_space<vmem>>) attributes {dimension_semantics = [], scalar_prefetch = 0 : i64, scratch_operands = 0 : i64, tpu.core_type = #tpu.core_type<tc>} {
    %c0 = arith.constant 0 : index
    %c0_0 = arith.constant 0 : index
    %0 = vector.load %arg0[%c0, %c0_0] : memref<16x32xf32, #tpu.memory_space<vmem>>, vector<16x32xf32>
    %c0_1 = arith.constant 0 : index
    %c0_2 = arith.constant 0 : index
    %1 = vector.load %arg1[%c0_1, %c0_2] : memref<32x256xf32, #tpu.memory_space<vmem>>, vector<32x256xf32>
    %cst = arith.constant dense<0.000000e+00> : vector<16x256xf32>
    %2 = tpu.matmul %0, %1, %cst {dimension_numbers = #tpu.dot_dimension_numbers<[1], [0], [0], [1], [0, 0, 1, 1], [], []>} : vector<16x32xf32>, vector<32x256xf32>, vector<16x256xf32> -> vector<16x256xf32>
    %c0_3 = arith.constant 0 : index
    %c0_4 = arith.constant 0 : index
    %3 = vector.load %arg4[%c0_3, %c0_4] : memref<1x256xf32, #tpu.memory_space<vmem>>, vector<1x256xf32>
    %4 = vector.broadcast %3 : vector<1x256xf32> to vector<16x256xf32>
    %5 = arith.addf %2, %4 : vector<16x256xf32>
    %c0_5 = arith.constant 0 : index
    %c0_6 = arith.constant 0 : index
    %6 = vector.load %arg2[%c0_5, %c0_6] : memref<32x128xf32, #tpu.memory_space<vmem>>, vector<32x128xf32>
    %c0_7 = arith.constant 0 : index
    %c0_8 = arith.constant 0 : index
    %7 = vector.load %arg3[%c0_7, %c0_8] : memref<32x128xf32, #tpu.memory_space<vmem>>, vector<32x128xf32>
    %cst_9 = arith.constant 0.000000e+00 : f32
    %8 = vector.broadcast %cst_9 : f32 to vector<2x32xf32>
    %cst_10 = arith.constant 0.000000e+00 : f32
    %9 = vector.broadcast %cst_10 : f32 to vector<2x32xf32>
    %cst_11 = arith.constant 0.000000e+00 : f32
    %10 = vector.broadcast %cst_11 : f32 to vector<2x32xf32>
    %cst_12 = arith.constant 0.000000e+00 : f32
    %11 = vector.broadcast %cst_12 : f32 to vector<2x32xf32>
    %12 = vector.extract_strided_slice %5 {offsets = [0, 0], sizes = [2, 128], strides = [1, 1]} : vector<16x256xf32> to vector<2x128xf32>
    %cst_13 = arith.constant dense<0.000000e+00> : vector<2x128xf32>
    %13 = tpu.matmul %8, %6, %cst_13 {dimension_numbers = #tpu.dot_dimension_numbers<[1], [0], [0], [1], [0, 0, 1, 1], [], []>} : vector<2x32xf32>, vector<32x128xf32>, vector<2x128xf32> -> vector<2x128xf32>
    %14 = arith.addf %12, %13 : vector<2x128xf32>
    %15 = vector.extract_strided_slice %5 {offsets = [14, 128], sizes = [2, 128], strides = [1, 1]} : vector<16x256xf32> to vector<2x128xf32>
    %cst_14 = arith.constant dense<0.000000e+00> : vector<2x128xf32>
    %16 = tpu.matmul %10, %7, %cst_14 {dimension_numbers = #tpu.dot_dimension_numbers<[1], [0], [0], [1], [0, 0, 1, 1], [], []>} : vector<2x32xf32>, vector<32x128xf32>, vector<2x128xf32> -> vector<2x128xf32>
    %17 = arith.addf %15, %16 : vector<2x128xf32>
    %18 = vector.extract_strided_slice %14 {offsets = [0, 0], sizes = [2, 32], strides = [1, 1]} : vector<2x128xf32> to vector<2x32xf32>
    %19 = arith.negf %18 : vector<2x32xf32>
    %20 = math.exp %19 : vector<2x32xf32>
    %cst_15 = arith.constant 1.000000e+00 : f32
    %21 = vector.broadcast %cst_15 : f32 to vector<2x32xf32>
    %22 = arith.addf %21, %20 : vector<2x32xf32>
    %23 = arith.divf %21, %22 : vector<2x32xf32>
    %24 = vector.extract_strided_slice %14 {offsets = [0, 32], sizes = [2, 32], strides = [1, 1]} : vector<2x128xf32> to vector<2x32xf32>
    %25 = arith.negf %24 : vector<2x32xf32>
    %26 = math.exp %25 : vector<2x32xf32>
    %cst_16 = arith.constant 1.000000e+00 : f32
    %27 = vector.broadcast %cst_16 : f32 to vector<2x32xf32>
    %28 = arith.addf %27, %26 : vector<2x32xf32>
    %29 = arith.divf %27, %28 : vector<2x32xf32>
    %30 = vector.extract_strided_slice %14 {offsets = [0, 64], sizes = [2, 32], strides = [1, 1]} : vector<2x128xf32> to vector<2x32xf32>
    %31 = math.tanh %30 : vector<2x32xf32>
    %32 = vector.extract_strided_slice %14 {offsets = [0, 96], sizes = [2, 32], strides = [1, 1]} : vector<2x128xf32> to vector<2x32xf32>
    %33 = arith.negf %32 : vector<2x32xf32>
    %34 = math.exp %33 : vector<2x32xf32>
    %cst_17 = arith.constant 1.000000e+00 : f32
    %35 = vector.broadcast %cst_17 : f32 to vector<2x32xf32>
    %36 = arith.addf %35, %34 : vector<2x32xf32>
    %37 = arith.divf %35, %36 : vector<2x32xf32>
    %38 = arith.mulf %29, %9 : vector<2x32xf32>
    %39 = arith.mulf %23, %31 : vector<2x32xf32>
    %40 = arith.addf %38, %39 : vector<2x32xf32>
    %41 = math.tanh %40 : vector<2x32xf32>
    %42 = arith.mulf %37, %41 : vector<2x32xf32>
    %43 = vector.extract_strided_slice %17 {offsets = [0, 0], sizes = [2, 32], strides = [1, 1]} : vector<2x128xf32> to vector<2x32xf32>
    %44 = arith.negf %43 : vector<2x32xf32>
    %45 = math.exp %44 : vector<2x32xf32>
    %cst_18 = arith.constant 1.000000e+00 : f32
    %46 = vector.broadcast %cst_18 : f32 to vector<2x32xf32>
    %47 = arith.addf %46, %45 : vector<2x32xf32>
    %48 = arith.divf %46, %47 : vector<2x32xf32>
    %49 = vector.extract_strided_slice %17 {offsets = [0, 32], sizes = [2, 32], strides = [1, 1]} : vector<2x128xf32> to vector<2x32xf32>
    %50 = arith.negf %49 : vector<2x32xf32>
    %51 = math.exp %50 : vector<2x32xf32>
    %cst_19 = arith.constant 1.000000e+00 : f32
    %52 = vector.broadcast %cst_19 : f32 to vector<2x32xf32>
    %53 = arith.addf %52, %51 : vector<2x32xf32>
    %54 = arith.divf %52, %53 : vector<2x32xf32>
    %55 = vector.extract_strided_slice %17 {offsets = [0, 64], sizes = [2, 32], strides = [1, 1]} : vector<2x128xf32> to vector<2x32xf32>
    %56 = math.tanh %55 : vector<2x32xf32>
    %57 = vector.extract_strided_slice %17 {offsets = [0, 96], sizes = [2, 32], strides = [1, 1]} : vector<2x128xf32> to vector<2x32xf32>
    %58 = arith.negf %57 : vector<2x32xf32>
    %59 = math.exp %58 : vector<2x32xf32>
    %cst_20 = arith.constant 1.000000e+00 : f32
    %60 = vector.broadcast %cst_20 : f32 to vector<2x32xf32>
    %61 = arith.addf %60, %59 : vector<2x32xf32>
    %62 = arith.divf %60, %61 : vector<2x32xf32>
    %63 = arith.mulf %54, %11 : vector<2x32xf32>
    %64 = arith.mulf %48, %56 : vector<2x32xf32>
    %65 = arith.addf %63, %64 : vector<2x32xf32>
    %66 = math.tanh %65 : vector<2x32xf32>
    %67 = arith.mulf %62, %66 : vector<2x32xf32>
    %68 = vector.extract_strided_slice %5 {offsets = [2, 0], sizes = [2, 128], strides = [1, 1]} : vector<16x256xf32> to vector<2x128xf32>
    %cst_21 = arith.constant dense<0.000000e+00> : vector<2x128xf32>
    %69 = tpu.matmul %42, %6, %cst_21 {dimension_numbers = #tpu.dot_dimension_numbers<[1], [0], [0], [1], [0, 0, 1, 1], [], []>} : vector<2x32xf32>, vector<32x128xf32>, vector<2x128xf32> -> vector<2x128xf32>
    %70 = arith.addf %68, %69 : vector<2x128xf32>
    %71 = vector.extract_strided_slice %5 {offsets = [12, 128], sizes = [2, 128], strides = [1, 1]} : vector<16x256xf32> to vector<2x128xf32>
    %cst_22 = arith.constant dense<0.000000e+00> : vector<2x128xf32>
    %72 = tpu.matmul %67, %7, %cst_22 {dimension_numbers = #tpu.dot_dimension_numbers<[1], [0], [0], [1], [0, 0, 1, 1], [], []>} : vector<2x32xf32>, vector<32x128xf32>, vector<2x128xf32> -> vector<2x128xf32>
    %73 = arith.addf %71, %72 : vector<2x128xf32>
    %74 = vector.extract_strided_slice %70 {offsets = [0, 0], sizes = [2, 32], strides = [1, 1]} : vector<2x128xf32> to vector<2x32xf32>
    %75 = arith.negf %74 : vector<2x32xf32>
    %76 = math.exp %75 : vector<2x32xf32>
    %cst_23 = arith.constant 1.000000e+00 : f32
    %77 = vector.broadcast %cst_23 : f32 to vector<2x32xf32>
    %78 = arith.addf %77, %76 : vector<2x32xf32>
    %79 = arith.divf %77, %78 : vector<2x32xf32>
    %80 = vector.extract_strided_slice %70 {offsets = [0, 32], sizes = [2, 32], strides = [1, 1]} : vector<2x128xf32> to vector<2x32xf32>
    %81 = arith.negf %80 : vector<2x32xf32>
    %82 = math.exp %81 : vector<2x32xf32>
    %cst_24 = arith.constant 1.000000e+00 : f32
    %83 = vector.broadcast %cst_24 : f32 to vector<2x32xf32>
    %84 = arith.addf %83, %82 : vector<2x32xf32>
    %85 = arith.divf %83, %84 : vector<2x32xf32>
    %86 = vector.extract_strided_slice %70 {offsets = [0, 64], sizes = [2, 32], strides = [1, 1]} : vector<2x128xf32> to vector<2x32xf32>
    %87 = math.tanh %86 : vector<2x32xf32>
    %88 = vector.extract_strided_slice %70 {offsets = [0, 96], sizes = [2, 32], strides = [1, 1]} : vector<2x128xf32> to vector<2x32xf32>
    %89 = arith.negf %88 : vector<2x32xf32>
    %90 = math.exp %89 : vector<2x32xf32>
    %cst_25 = arith.constant 1.000000e+00 : f32
    %91 = vector.broadcast %cst_25 : f32 to vector<2x32xf32>
    %92 = arith.addf %91, %90 : vector<2x32xf32>
    %93 = arith.divf %91, %92 : vector<2x32xf32>
    %94 = arith.mulf %85, %40 : vector<2x32xf32>
    %95 = arith.mulf %79, %87 : vector<2x32xf32>
    %96 = arith.addf %94, %95 : vector<2x32xf32>
    %97 = math.tanh %96 : vector<2x32xf32>
    %98 = arith.mulf %93, %97 : vector<2x32xf32>
    %99 = vector.extract_strided_slice %73 {offsets = [0, 0], sizes = [2, 32], strides = [1, 1]} : vector<2x128xf32> to vector<2x32xf32>
    %100 = arith.negf %99 : vector<2x32xf32>
    %101 = math.exp %100 : vector<2x32xf32>
    %cst_26 = arith.constant 1.000000e+00 : f32
    %102 = vector.broadcast %cst_26 : f32 to vector<2x32xf32>
    %103 = arith.addf %102, %101 : vector<2x32xf32>
    %104 = arith.divf %102, %103 : vector<2x32xf32>
    %105 = vector.extract_strided_slice %73 {offsets = [0, 32], sizes = [2, 32], strides = [1, 1]} : vector<2x128xf32> to vector<2x32xf32>
    %106 = arith.negf %105 : vector<2x32xf32>
    %107 = math.exp %106 : vector<2x32xf32>
    %cst_27 = arith.constant 1.000000e+00 : f32
    %108 = vector.broadcast %cst_27 : f32 to vector<2x32xf32>
    %109 = arith.addf %108, %107 : vector<2x32xf32>
    %110 = arith.divf %108, %109 : vector<2x32xf32>
    %111 = vector.extract_strided_slice %73 {offsets = [0, 64], sizes = [2, 32], strides = [1, 1]} : vector<2x128xf32> to vector<2x32xf32>
    %112 = math.tanh %111 : vector<2x32xf32>
    %113 = vector.extract_strided_slice %73 {offsets = [0, 96], sizes = [2, 32], strides = [1, 1]} : vector<2x128xf32> to vector<2x32xf32>
    %114 = arith.negf %113 : vector<2x32xf32>
    %115 = math.exp %114 : vector<2x32xf32>
    %cst_28 = arith.constant 1.000000e+00 : f32
    %116 = vector.broadcast %cst_28 : f32 to vector<2x32xf32>
    %117 = arith.addf %116, %115 : vector<2x32xf32>
    %118 = arith.divf %116, %117 : vector<2x32xf32>
    %119 = arith.mulf %110, %65 : vector<2x32xf32>
    %120 = arith.mulf %104, %112 : vector<2x32xf32>
    %121 = arith.addf %119, %120 : vector<2x32xf32>
    %122 = math.tanh %121 : vector<2x32xf32>
    %123 = arith.mulf %118, %122 : vector<2x32xf32>
    %124 = vector.extract_strided_slice %5 {offsets = [4, 0], sizes = [2, 128], strides = [1, 1]} : vector<16x256xf32> to vector<2x128xf32>
    %cst_29 = arith.constant dense<0.000000e+00> : vector<2x128xf32>
    %125 = tpu.matmul %98, %6, %cst_29 {dimension_numbers = #tpu.dot_dimension_numbers<[1], [0], [0], [1], [0, 0, 1, 1], [], []>} : vector<2x32xf32>, vector<32x128xf32>, vector<2x128xf32> -> vector<2x128xf32>
    %126 = arith.addf %124, %125 : vector<2x128xf32>
    %127 = vector.extract_strided_slice %5 {offsets = [10, 128], sizes = [2, 128], strides = [1, 1]} : vector<16x256xf32> to vector<2x128xf32>
    %cst_30 = arith.constant dense<0.000000e+00> : vector<2x128xf32>
    %128 = tpu.matmul %123, %7, %cst_30 {dimension_numbers = #tpu.dot_dimension_numbers<[1], [0], [0], [1], [0, 0, 1, 1], [], []>} : vector<2x32xf32>, vector<32x128xf32>, vector<2x128xf32> -> vector<2x128xf32>
    %129 = arith.addf %127, %128 : vector<2x128xf32>
    %130 = vector.extract_strided_slice %126 {offsets = [0, 0], sizes = [2, 32], strides = [1, 1]} : vector<2x128xf32> to vector<2x32xf32>
    %131 = arith.negf %130 : vector<2x32xf32>
    %132 = math.exp %131 : vector<2x32xf32>
    %cst_31 = arith.constant 1.000000e+00 : f32
    %133 = vector.broadcast %cst_31 : f32 to vector<2x32xf32>
    %134 = arith.addf %133, %132 : vector<2x32xf32>
    %135 = arith.divf %133, %134 : vector<2x32xf32>
    %136 = vector.extract_strided_slice %126 {offsets = [0, 32], sizes = [2, 32], strides = [1, 1]} : vector<2x128xf32> to vector<2x32xf32>
    %137 = arith.negf %136 : vector<2x32xf32>
    %138 = math.exp %137 : vector<2x32xf32>
    %cst_32 = arith.constant 1.000000e+00 : f32
    %139 = vector.broadcast %cst_32 : f32 to vector<2x32xf32>
    %140 = arith.addf %139, %138 : vector<2x32xf32>
    %141 = arith.divf %139, %140 : vector<2x32xf32>
    %142 = vector.extract_strided_slice %126 {offsets = [0, 64], sizes = [2, 32], strides = [1, 1]} : vector<2x128xf32> to vector<2x32xf32>
    %143 = math.tanh %142 : vector<2x32xf32>
    %144 = vector.extract_strided_slice %126 {offsets = [0, 96], sizes = [2, 32], strides = [1, 1]} : vector<2x128xf32> to vector<2x32xf32>
    %145 = arith.negf %144 : vector<2x32xf32>
    %146 = math.exp %145 : vector<2x32xf32>
    %cst_33 = arith.constant 1.000000e+00 : f32
    %147 = vector.broadcast %cst_33 : f32 to vector<2x32xf32>
    %148 = arith.addf %147, %146 : vector<2x32xf32>
    %149 = arith.divf %147, %148 : vector<2x32xf32>
    %150 = arith.mulf %141, %96 : vector<2x32xf32>
    %151 = arith.mulf %135, %143 : vector<2x32xf32>
    %152 = arith.addf %150, %151 : vector<2x32xf32>
    %153 = math.tanh %152 : vector<2x32xf32>
    %154 = arith.mulf %149, %153 : vector<2x32xf32>
    %155 = vector.extract_strided_slice %129 {offsets = [0, 0], sizes = [2, 32], strides = [1, 1]} : vector<2x128xf32> to vector<2x32xf32>
    %156 = arith.negf %155 : vector<2x32xf32>
    %157 = math.exp %156 : vector<2x32xf32>
    %cst_34 = arith.constant 1.000000e+00 : f32
    %158 = vector.broadcast %cst_34 : f32 to vector<2x32xf32>
    %159 = arith.addf %158, %157 : vector<2x32xf32>
    %160 = arith.divf %158, %159 : vector<2x32xf32>
    %161 = vector.extract_strided_slice %129 {offsets = [0, 32], sizes = [2, 32], strides = [1, 1]} : vector<2x128xf32> to vector<2x32xf32>
    %162 = arith.negf %161 : vector<2x32xf32>
    %163 = math.exp %162 : vector<2x32xf32>
    %cst_35 = arith.constant 1.000000e+00 : f32
    %164 = vector.broadcast %cst_35 : f32 to vector<2x32xf32>
    %165 = arith.addf %164, %163 : vector<2x32xf32>
    %166 = arith.divf %164, %165 : vector<2x32xf32>
    %167 = vector.extract_strided_slice %129 {offsets = [0, 64], sizes = [2, 32], strides = [1, 1]} : vector<2x128xf32> to vector<2x32xf32>
    %168 = math.tanh %167 : vector<2x32xf32>
    %169 = vector.extract_strided_slice %129 {offsets = [0, 96], sizes = [2, 32], strides = [1, 1]} : vector<2x128xf32> to vector<2x32xf32>
    %170 = arith.negf %169 : vector<2x32xf32>
    %171 = math.exp %170 : vector<2x32xf32>
    %cst_36 = arith.constant 1.000000e+00 : f32
    %172 = vector.broadcast %cst_36 : f32 to vector<2x32xf32>
    %173 = arith.addf %172, %171 : vector<2x32xf32>
    %174 = arith.divf %172, %173 : vector<2x32xf32>
    %175 = arith.mulf %166, %121 : vector<2x32xf32>
    %176 = arith.mulf %160, %168 : vector<2x32xf32>
    %177 = arith.addf %175, %176 : vector<2x32xf32>
    %178 = math.tanh %177 : vector<2x32xf32>
    %179 = arith.mulf %174, %178 : vector<2x32xf32>
    %180 = vector.extract_strided_slice %5 {offsets = [6, 0], sizes = [2, 128], strides = [1, 1]} : vector<16x256xf32> to vector<2x128xf32>
    %cst_37 = arith.constant dense<0.000000e+00> : vector<2x128xf32>
    %181 = tpu.matmul %154, %6, %cst_37 {dimension_numbers = #tpu.dot_dimension_numbers<[1], [0], [0], [1], [0, 0, 1, 1], [], []>} : vector<2x32xf32>, vector<32x128xf32>, vector<2x128xf32> -> vector<2x128xf32>
    %182 = arith.addf %180, %181 : vector<2x128xf32>
    %183 = vector.extract_strided_slice %5 {offsets = [8, 128], sizes = [2, 128], strides = [1, 1]} : vector<16x256xf32> to vector<2x128xf32>
    %cst_38 = arith.constant dense<0.000000e+00> : vector<2x128xf32>
    %184 = tpu.matmul %179, %7, %cst_38 {dimension_numbers = #tpu.dot_dimension_numbers<[1], [0], [0], [1], [0, 0, 1, 1], [], []>} : vector<2x32xf32>, vector<32x128xf32>, vector<2x128xf32> -> vector<2x128xf32>
    %185 = arith.addf %183, %184 : vector<2x128xf32>
    %186 = vector.extract_strided_slice %182 {offsets = [0, 0], sizes = [2, 32], strides = [1, 1]} : vector<2x128xf32> to vector<2x32xf32>
    %187 = arith.negf %186 : vector<2x32xf32>
    %188 = math.exp %187 : vector<2x32xf32>
    %cst_39 = arith.constant 1.000000e+00 : f32
    %189 = vector.broadcast %cst_39 : f32 to vector<2x32xf32>
    %190 = arith.addf %189, %188 : vector<2x32xf32>
    %191 = arith.divf %189, %190 : vector<2x32xf32>
    %192 = vector.extract_strided_slice %182 {offsets = [0, 32], sizes = [2, 32], strides = [1, 1]} : vector<2x128xf32> to vector<2x32xf32>
    %193 = arith.negf %192 : vector<2x32xf32>
    %194 = math.exp %193 : vector<2x32xf32>
    %cst_40 = arith.constant 1.000000e+00 : f32
    %195 = vector.broadcast %cst_40 : f32 to vector<2x32xf32>
    %196 = arith.addf %195, %194 : vector<2x32xf32>
    %197 = arith.divf %195, %196 : vector<2x32xf32>
    %198 = vector.extract_strided_slice %182 {offsets = [0, 64], sizes = [2, 32], strides = [1, 1]} : vector<2x128xf32> to vector<2x32xf32>
    %199 = math.tanh %198 : vector<2x32xf32>
    %200 = vector.extract_strided_slice %182 {offsets = [0, 96], sizes = [2, 32], strides = [1, 1]} : vector<2x128xf32> to vector<2x32xf32>
    %201 = arith.negf %200 : vector<2x32xf32>
    %202 = math.exp %201 : vector<2x32xf32>
    %cst_41 = arith.constant 1.000000e+00 : f32
    %203 = vector.broadcast %cst_41 : f32 to vector<2x32xf32>
    %204 = arith.addf %203, %202 : vector<2x32xf32>
    %205 = arith.divf %203, %204 : vector<2x32xf32>
    %206 = arith.mulf %197, %152 : vector<2x32xf32>
    %207 = arith.mulf %191, %199 : vector<2x32xf32>
    %208 = arith.addf %206, %207 : vector<2x32xf32>
    %209 = math.tanh %208 : vector<2x32xf32>
    %210 = arith.mulf %205, %209 : vector<2x32xf32>
    %211 = vector.extract_strided_slice %185 {offsets = [0, 0], sizes = [2, 32], strides = [1, 1]} : vector<2x128xf32> to vector<2x32xf32>
    %212 = arith.negf %211 : vector<2x32xf32>
    %213 = math.exp %212 : vector<2x32xf32>
    %cst_42 = arith.constant 1.000000e+00 : f32
    %214 = vector.broadcast %cst_42 : f32 to vector<2x32xf32>
    %215 = arith.addf %214, %213 : vector<2x32xf32>
    %216 = arith.divf %214, %215 : vector<2x32xf32>
    %217 = vector.extract_strided_slice %185 {offsets = [0, 32], sizes = [2, 32], strides = [1, 1]} : vector<2x128xf32> to vector<2x32xf32>
    %218 = arith.negf %217 : vector<2x32xf32>
    %219 = math.exp %218 : vector<2x32xf32>
    %cst_43 = arith.constant 1.000000e+00 : f32
    %220 = vector.broadcast %cst_43 : f32 to vector<2x32xf32>
    %221 = arith.addf %220, %219 : vector<2x32xf32>
    %222 = arith.divf %220, %221 : vector<2x32xf32>
    %223 = vector.extract_strided_slice %185 {offsets = [0, 64], sizes = [2, 32], strides = [1, 1]} : vector<2x128xf32> to vector<2x32xf32>
    %224 = math.tanh %223 : vector<2x32xf32>
    %225 = vector.extract_strided_slice %185 {offsets = [0, 96], sizes = [2, 32], strides = [1, 1]} : vector<2x128xf32> to vector<2x32xf32>
    %226 = arith.negf %225 : vector<2x32xf32>
    %227 = math.exp %226 : vector<2x32xf32>
    %cst_44 = arith.constant 1.000000e+00 : f32
    %228 = vector.broadcast %cst_44 : f32 to vector<2x32xf32>
    %229 = arith.addf %228, %227 : vector<2x32xf32>
    %230 = arith.divf %228, %229 : vector<2x32xf32>
    %231 = arith.mulf %222, %177 : vector<2x32xf32>
    %232 = arith.mulf %216, %224 : vector<2x32xf32>
    %233 = arith.addf %231, %232 : vector<2x32xf32>
    %234 = math.tanh %233 : vector<2x32xf32>
    %235 = arith.mulf %230, %234 : vector<2x32xf32>
    %236 = vector.extract_strided_slice %5 {offsets = [8, 0], sizes = [2, 128], strides = [1, 1]} : vector<16x256xf32> to vector<2x128xf32>
    %cst_45 = arith.constant dense<0.000000e+00> : vector<2x128xf32>
    %237 = tpu.matmul %210, %6, %cst_45 {dimension_numbers = #tpu.dot_dimension_numbers<[1], [0], [0], [1], [0, 0, 1, 1], [], []>} : vector<2x32xf32>, vector<32x128xf32>, vector<2x128xf32> -> vector<2x128xf32>
    %238 = arith.addf %236, %237 : vector<2x128xf32>
    %239 = vector.extract_strided_slice %5 {offsets = [6, 128], sizes = [2, 128], strides = [1, 1]} : vector<16x256xf32> to vector<2x128xf32>
    %cst_46 = arith.constant dense<0.000000e+00> : vector<2x128xf32>
    %240 = tpu.matmul %235, %7, %cst_46 {dimension_numbers = #tpu.dot_dimension_numbers<[1], [0], [0], [1], [0, 0, 1, 1], [], []>} : vector<2x32xf32>, vector<32x128xf32>, vector<2x128xf32> -> vector<2x128xf32>
    %241 = arith.addf %239, %240 : vector<2x128xf32>
    %242 = vector.extract_strided_slice %238 {offsets = [0, 0], sizes = [2, 32], strides = [1, 1]} : vector<2x128xf32> to vector<2x32xf32>
    %243 = arith.negf %242 : vector<2x32xf32>
    %244 = math.exp %243 : vector<2x32xf32>
    %cst_47 = arith.constant 1.000000e+00 : f32
    %245 = vector.broadcast %cst_47 : f32 to vector<2x32xf32>
    %246 = arith.addf %245, %244 : vector<2x32xf32>
    %247 = arith.divf %245, %246 : vector<2x32xf32>
    %248 = vector.extract_strided_slice %238 {offsets = [0, 32], sizes = [2, 32], strides = [1, 1]} : vector<2x128xf32> to vector<2x32xf32>
    %249 = arith.negf %248 : vector<2x32xf32>
    %250 = math.exp %249 : vector<2x32xf32>
    %cst_48 = arith.constant 1.000000e+00 : f32
    %251 = vector.broadcast %cst_48 : f32 to vector<2x32xf32>
    %252 = arith.addf %251, %250 : vector<2x32xf32>
    %253 = arith.divf %251, %252 : vector<2x32xf32>
    %254 = vector.extract_strided_slice %238 {offsets = [0, 64], sizes = [2, 32], strides = [1, 1]} : vector<2x128xf32> to vector<2x32xf32>
    %255 = math.tanh %254 : vector<2x32xf32>
    %256 = vector.extract_strided_slice %238 {offsets = [0, 96], sizes = [2, 32], strides = [1, 1]} : vector<2x128xf32> to vector<2x32xf32>
    %257 = arith.negf %256 : vector<2x32xf32>
    %258 = math.exp %257 : vector<2x32xf32>
    %cst_49 = arith.constant 1.000000e+00 : f32
    %259 = vector.broadcast %cst_49 : f32 to vector<2x32xf32>
    %260 = arith.addf %259, %258 : vector<2x32xf32>
    %261 = arith.divf %259, %260 : vector<2x32xf32>
    %262 = arith.mulf %253, %208 : vector<2x32xf32>
    %263 = arith.mulf %247, %255 : vector<2x32xf32>
    %264 = arith.addf %262, %263 : vector<2x32xf32>
    %265 = math.tanh %264 : vector<2x32xf32>
    %266 = arith.mulf %261, %265 : vector<2x32xf32>
    %267 = vector.extract_strided_slice %241 {offsets = [0, 0], sizes = [2, 32], strides = [1, 1]} : vector<2x128xf32> to vector<2x32xf32>
    %268 = arith.negf %267 : vector<2x32xf32>
    %269 = math.exp %268 : vector<2x32xf32>
    %cst_50 = arith.constant 1.000000e+00 : f32
    %270 = vector.broadcast %cst_50 : f32 to vector<2x32xf32>
    %271 = arith.addf %270, %269 : vector<2x32xf32>
    %272 = arith.divf %270, %271 : vector<2x32xf32>
    %273 = vector.extract_strided_slice %241 {offsets = [0, 32], sizes = [2, 32], strides = [1, 1]} : vector<2x128xf32> to vector<2x32xf32>
    %274 = arith.negf %273 : vector<2x32xf32>
    %275 = math.exp %274 : vector<2x32xf32>
    %cst_51 = arith.constant 1.000000e+00 : f32
    %276 = vector.broadcast %cst_51 : f32 to vector<2x32xf32>
    %277 = arith.addf %276, %275 : vector<2x32xf32>
    %278 = arith.divf %276, %277 : vector<2x32xf32>
    %279 = vector.extract_strided_slice %241 {offsets = [0, 64], sizes = [2, 32], strides = [1, 1]} : vector<2x128xf32> to vector<2x32xf32>
    %280 = math.tanh %279 : vector<2x32xf32>
    %281 = vector.extract_strided_slice %241 {offsets = [0, 96], sizes = [2, 32], strides = [1, 1]} : vector<2x128xf32> to vector<2x32xf32>
    %282 = arith.negf %281 : vector<2x32xf32>
    %283 = math.exp %282 : vector<2x32xf32>
    %cst_52 = arith.constant 1.000000e+00 : f32
    %284 = vector.broadcast %cst_52 : f32 to vector<2x32xf32>
    %285 = arith.addf %284, %283 : vector<2x32xf32>
    %286 = arith.divf %284, %285 : vector<2x32xf32>
    %287 = arith.mulf %278, %233 : vector<2x32xf32>
    %288 = arith.mulf %272, %280 : vector<2x32xf32>
    %289 = arith.addf %287, %288 : vector<2x32xf32>
    %290 = math.tanh %289 : vector<2x32xf32>
    %291 = arith.mulf %286, %290 : vector<2x32xf32>
    %292 = vector.extract_strided_slice %5 {offsets = [10, 0], sizes = [2, 128], strides = [1, 1]} : vector<16x256xf32> to vector<2x128xf32>
    %cst_53 = arith.constant dense<0.000000e+00> : vector<2x128xf32>
    %293 = tpu.matmul %266, %6, %cst_53 {dimension_numbers = #tpu.dot_dimension_numbers<[1], [0], [0], [1], [0, 0, 1, 1], [], []>} : vector<2x32xf32>, vector<32x128xf32>, vector<2x128xf32> -> vector<2x128xf32>
    %294 = arith.addf %292, %293 : vector<2x128xf32>
    %295 = vector.extract_strided_slice %5 {offsets = [4, 128], sizes = [2, 128], strides = [1, 1]} : vector<16x256xf32> to vector<2x128xf32>
    %cst_54 = arith.constant dense<0.000000e+00> : vector<2x128xf32>
    %296 = tpu.matmul %291, %7, %cst_54 {dimension_numbers = #tpu.dot_dimension_numbers<[1], [0], [0], [1], [0, 0, 1, 1], [], []>} : vector<2x32xf32>, vector<32x128xf32>, vector<2x128xf32> -> vector<2x128xf32>
    %297 = arith.addf %295, %296 : vector<2x128xf32>
    %298 = vector.extract_strided_slice %294 {offsets = [0, 0], sizes = [2, 32], strides = [1, 1]} : vector<2x128xf32> to vector<2x32xf32>
    %299 = arith.negf %298 : vector<2x32xf32>
    %300 = math.exp %299 : vector<2x32xf32>
    %cst_55 = arith.constant 1.000000e+00 : f32
    %301 = vector.broadcast %cst_55 : f32 to vector<2x32xf32>
    %302 = arith.addf %301, %300 : vector<2x32xf32>
    %303 = arith.divf %301, %302 : vector<2x32xf32>
    %304 = vector.extract_strided_slice %294 {offsets = [0, 32], sizes = [2, 32], strides = [1, 1]} : vector<2x128xf32> to vector<2x32xf32>
    %305 = arith.negf %304 : vector<2x32xf32>
    %306 = math.exp %305 : vector<2x32xf32>
    %cst_56 = arith.constant 1.000000e+00 : f32
    %307 = vector.broadcast %cst_56 : f32 to vector<2x32xf32>
    %308 = arith.addf %307, %306 : vector<2x32xf32>
    %309 = arith.divf %307, %308 : vector<2x32xf32>
    %310 = vector.extract_strided_slice %294 {offsets = [0, 64], sizes = [2, 32], strides = [1, 1]} : vector<2x128xf32> to vector<2x32xf32>
    %311 = math.tanh %310 : vector<2x32xf32>
    %312 = vector.extract_strided_slice %294 {offsets = [0, 96], sizes = [2, 32], strides = [1, 1]} : vector<2x128xf32> to vector<2x32xf32>
    %313 = arith.negf %312 : vector<2x32xf32>
    %314 = math.exp %313 : vector<2x32xf32>
    %cst_57 = arith.constant 1.000000e+00 : f32
    %315 = vector.broadcast %cst_57 : f32 to vector<2x32xf32>
    %316 = arith.addf %315, %314 : vector<2x32xf32>
    %317 = arith.divf %315, %316 : vector<2x32xf32>
    %318 = arith.mulf %309, %264 : vector<2x32xf32>
    %319 = arith.mulf %303, %311 : vector<2x32xf32>
    %320 = arith.addf %318, %319 : vector<2x32xf32>
    %321 = math.tanh %320 : vector<2x32xf32>
    %322 = arith.mulf %317, %321 : vector<2x32xf32>
    %323 = vector.extract_strided_slice %297 {offsets = [0, 0], sizes = [2, 32], strides = [1, 1]} : vector<2x128xf32> to vector<2x32xf32>
    %324 = arith.negf %323 : vector<2x32xf32>
    %325 = math.exp %324 : vector<2x32xf32>
    %cst_58 = arith.constant 1.000000e+00 : f32
    %326 = vector.broadcast %cst_58 : f32 to vector<2x32xf32>
    %327 = arith.addf %326, %325 : vector<2x32xf32>
    %328 = arith.divf %326, %327 : vector<2x32xf32>
    %329 = vector.extract_strided_slice %297 {offsets = [0, 32], sizes = [2, 32], strides = [1, 1]} : vector<2x128xf32> to vector<2x32xf32>
    %330 = arith.negf %329 : vector<2x32xf32>
    %331 = math.exp %330 : vector<2x32xf32>
    %cst_59 = arith.constant 1.000000e+00 : f32
    %332 = vector.broadcast %cst_59 : f32 to vector<2x32xf32>
    %333 = arith.addf %332, %331 : vector<2x32xf32>
    %334 = arith.divf %332, %333 : vector<2x32xf32>
    %335 = vector.extract_strided_slice %297 {offsets = [0, 64], sizes = [2, 32], strides = [1, 1]} : vector<2x128xf32> to vector<2x32xf32>
    %336 = math.tanh %335 : vector<2x32xf32>
    %337 = vector.extract_strided_slice %297 {offsets = [0, 96], sizes = [2, 32], strides = [1, 1]} : vector<2x128xf32> to vector<2x32xf32>
    %338 = arith.negf %337 : vector<2x32xf32>
    %339 = math.exp %338 : vector<2x32xf32>
    %cst_60 = arith.constant 1.000000e+00 : f32
    %340 = vector.broadcast %cst_60 : f32 to vector<2x32xf32>
    %341 = arith.addf %340, %339 : vector<2x32xf32>
    %342 = arith.divf %340, %341 : vector<2x32xf32>
    %343 = arith.mulf %334, %289 : vector<2x32xf32>
    %344 = arith.mulf %328, %336 : vector<2x32xf32>
    %345 = arith.addf %343, %344 : vector<2x32xf32>
    %346 = math.tanh %345 : vector<2x32xf32>
    %347 = arith.mulf %342, %346 : vector<2x32xf32>
    %348 = vector.extract_strided_slice %5 {offsets = [12, 0], sizes = [2, 128], strides = [1, 1]} : vector<16x256xf32> to vector<2x128xf32>
    %cst_61 = arith.constant dense<0.000000e+00> : vector<2x128xf32>
    %349 = tpu.matmul %322, %6, %cst_61 {dimension_numbers = #tpu.dot_dimension_numbers<[1], [0], [0], [1], [0, 0, 1, 1], [], []>} : vector<2x32xf32>, vector<32x128xf32>, vector<2x128xf32> -> vector<2x128xf32>
    %350 = arith.addf %348, %349 : vector<2x128xf32>
    %351 = vector.extract_strided_slice %5 {offsets = [2, 128], sizes = [2, 128], strides = [1, 1]} : vector<16x256xf32> to vector<2x128xf32>
    %cst_62 = arith.constant dense<0.000000e+00> : vector<2x128xf32>
    %352 = tpu.matmul %347, %7, %cst_62 {dimension_numbers = #tpu.dot_dimension_numbers<[1], [0], [0], [1], [0, 0, 1, 1], [], []>} : vector<2x32xf32>, vector<32x128xf32>, vector<2x128xf32> -> vector<2x128xf32>
    %353 = arith.addf %351, %352 : vector<2x128xf32>
    %354 = vector.extract_strided_slice %350 {offsets = [0, 0], sizes = [2, 32], strides = [1, 1]} : vector<2x128xf32> to vector<2x32xf32>
    %355 = arith.negf %354 : vector<2x32xf32>
    %356 = math.exp %355 : vector<2x32xf32>
    %cst_63 = arith.constant 1.000000e+00 : f32
    %357 = vector.broadcast %cst_63 : f32 to vector<2x32xf32>
    %358 = arith.addf %357, %356 : vector<2x32xf32>
    %359 = arith.divf %357, %358 : vector<2x32xf32>
    %360 = vector.extract_strided_slice %350 {offsets = [0, 32], sizes = [2, 32], strides = [1, 1]} : vector<2x128xf32> to vector<2x32xf32>
    %361 = arith.negf %360 : vector<2x32xf32>
    %362 = math.exp %361 : vector<2x32xf32>
    %cst_64 = arith.constant 1.000000e+00 : f32
    %363 = vector.broadcast %cst_64 : f32 to vector<2x32xf32>
    %364 = arith.addf %363, %362 : vector<2x32xf32>
    %365 = arith.divf %363, %364 : vector<2x32xf32>
    %366 = vector.extract_strided_slice %350 {offsets = [0, 64], sizes = [2, 32], strides = [1, 1]} : vector<2x128xf32> to vector<2x32xf32>
    %367 = math.tanh %366 : vector<2x32xf32>
    %368 = vector.extract_strided_slice %350 {offsets = [0, 96], sizes = [2, 32], strides = [1, 1]} : vector<2x128xf32> to vector<2x32xf32>
    %369 = arith.negf %368 : vector<2x32xf32>
    %370 = math.exp %369 : vector<2x32xf32>
    %cst_65 = arith.constant 1.000000e+00 : f32
    %371 = vector.broadcast %cst_65 : f32 to vector<2x32xf32>
    %372 = arith.addf %371, %370 : vector<2x32xf32>
    %373 = arith.divf %371, %372 : vector<2x32xf32>
    %374 = arith.mulf %365, %320 : vector<2x32xf32>
    %375 = arith.mulf %359, %367 : vector<2x32xf32>
    %376 = arith.addf %374, %375 : vector<2x32xf32>
    %377 = math.tanh %376 : vector<2x32xf32>
    %378 = arith.mulf %373, %377 : vector<2x32xf32>
    %379 = vector.extract_strided_slice %353 {offsets = [0, 0], sizes = [2, 32], strides = [1, 1]} : vector<2x128xf32> to vector<2x32xf32>
    %380 = arith.negf %379 : vector<2x32xf32>
    %381 = math.exp %380 : vector<2x32xf32>
    %cst_66 = arith.constant 1.000000e+00 : f32
    %382 = vector.broadcast %cst_66 : f32 to vector<2x32xf32>
    %383 = arith.addf %382, %381 : vector<2x32xf32>
    %384 = arith.divf %382, %383 : vector<2x32xf32>
    %385 = vector.extract_strided_slice %353 {offsets = [0, 32], sizes = [2, 32], strides = [1, 1]} : vector<2x128xf32> to vector<2x32xf32>
    %386 = arith.negf %385 : vector<2x32xf32>
    %387 = math.exp %386 : vector<2x32xf32>
    %cst_67 = arith.constant 1.000000e+00 : f32
    %388 = vector.broadcast %cst_67 : f32 to vector<2x32xf32>
    %389 = arith.addf %388, %387 : vector<2x32xf32>
    %390 = arith.divf %388, %389 : vector<2x32xf32>
    %391 = vector.extract_strided_slice %353 {offsets = [0, 64], sizes = [2, 32], strides = [1, 1]} : vector<2x128xf32> to vector<2x32xf32>
    %392 = math.tanh %391 : vector<2x32xf32>
    %393 = vector.extract_strided_slice %353 {offsets = [0, 96], sizes = [2, 32], strides = [1, 1]} : vector<2x128xf32> to vector<2x32xf32>
    %394 = arith.negf %393 : vector<2x32xf32>
    %395 = math.exp %394 : vector<2x32xf32>
    %cst_68 = arith.constant 1.000000e+00 : f32
    %396 = vector.broadcast %cst_68 : f32 to vector<2x32xf32>
    %397 = arith.addf %396, %395 : vector<2x32xf32>
    %398 = arith.divf %396, %397 : vector<2x32xf32>
    %399 = arith.mulf %390, %345 : vector<2x32xf32>
    %400 = arith.mulf %384, %392 : vector<2x32xf32>
    %401 = arith.addf %399, %400 : vector<2x32xf32>
    %402 = math.tanh %401 : vector<2x32xf32>
    %403 = arith.mulf %398, %402 : vector<2x32xf32>
    %404 = vector.extract_strided_slice %5 {offsets = [14, 0], sizes = [2, 128], strides = [1, 1]} : vector<16x256xf32> to vector<2x128xf32>
    %cst_69 = arith.constant dense<0.000000e+00> : vector<2x128xf32>
    %405 = tpu.matmul %378, %6, %cst_69 {dimension_numbers = #tpu.dot_dimension_numbers<[1], [0], [0], [1], [0, 0, 1, 1], [], []>} : vector<2x32xf32>, vector<32x128xf32>, vector<2x128xf32> -> vector<2x128xf32>
    %406 = arith.addf %404, %405 : vector<2x128xf32>
    %407 = vector.extract_strided_slice %5 {offsets = [0, 128], sizes = [2, 128], strides = [1, 1]} : vector<16x256xf32> to vector<2x128xf32>
    %cst_70 = arith.constant dense<0.000000e+00> : vector<2x128xf32>
    %408 = tpu.matmul %403, %7, %cst_70 {dimension_numbers = #tpu.dot_dimension_numbers<[1], [0], [0], [1], [0, 0, 1, 1], [], []>} : vector<2x32xf32>, vector<32x128xf32>, vector<2x128xf32> -> vector<2x128xf32>
    %409 = arith.addf %407, %408 : vector<2x128xf32>
    %410 = vector.extract_strided_slice %406 {offsets = [0, 0], sizes = [2, 32], strides = [1, 1]} : vector<2x128xf32> to vector<2x32xf32>
    %411 = arith.negf %410 : vector<2x32xf32>
    %412 = math.exp %411 : vector<2x32xf32>
    %cst_71 = arith.constant 1.000000e+00 : f32
    %413 = vector.broadcast %cst_71 : f32 to vector<2x32xf32>
    %414 = arith.addf %413, %412 : vector<2x32xf32>
    %415 = arith.divf %413, %414 : vector<2x32xf32>
    %416 = vector.extract_strided_slice %406 {offsets = [0, 32], sizes = [2, 32], strides = [1, 1]} : vector<2x128xf32> to vector<2x32xf32>
    %417 = arith.negf %416 : vector<2x32xf32>
    %418 = math.exp %417 : vector<2x32xf32>
    %cst_72 = arith.constant 1.000000e+00 : f32
    %419 = vector.broadcast %cst_72 : f32 to vector<2x32xf32>
    %420 = arith.addf %419, %418 : vector<2x32xf32>
    %421 = arith.divf %419, %420 : vector<2x32xf32>
    %422 = vector.extract_strided_slice %406 {offsets = [0, 64], sizes = [2, 32], strides = [1, 1]} : vector<2x128xf32> to vector<2x32xf32>
    %423 = math.tanh %422 : vector<2x32xf32>
    %424 = vector.extract_strided_slice %406 {offsets = [0, 96], sizes = [2, 32], strides = [1, 1]} : vector<2x128xf32> to vector<2x32xf32>
    %425 = arith.negf %424 : vector<2x32xf32>
    %426 = math.exp %425 : vector<2x32xf32>
    %cst_73 = arith.constant 1.000000e+00 : f32
    %427 = vector.broadcast %cst_73 : f32 to vector<2x32xf32>
    %428 = arith.addf %427, %426 : vector<2x32xf32>
    %429 = arith.divf %427, %428 : vector<2x32xf32>
    %430 = arith.mulf %421, %376 : vector<2x32xf32>
    %431 = arith.mulf %415, %423 : vector<2x32xf32>
    %432 = arith.addf %430, %431 : vector<2x32xf32>
    %433 = math.tanh %432 : vector<2x32xf32>
    %434 = arith.mulf %429, %433 : vector<2x32xf32>
    %435 = vector.extract_strided_slice %409 {offsets = [0, 0], sizes = [2, 32], strides = [1, 1]} : vector<2x128xf32> to vector<2x32xf32>
    %436 = arith.negf %435 : vector<2x32xf32>
    %437 = math.exp %436 : vector<2x32xf32>
    %cst_74 = arith.constant 1.000000e+00 : f32
    %438 = vector.broadcast %cst_74 : f32 to vector<2x32xf32>
    %439 = arith.addf %438, %437 : vector<2x32xf32>
    %440 = arith.divf %438, %439 : vector<2x32xf32>
    %441 = vector.extract_strided_slice %409 {offsets = [0, 32], sizes = [2, 32], strides = [1, 1]} : vector<2x128xf32> to vector<2x32xf32>
    %442 = arith.negf %441 : vector<2x32xf32>
    %443 = math.exp %442 : vector<2x32xf32>
    %cst_75 = arith.constant 1.000000e+00 : f32
    %444 = vector.broadcast %cst_75 : f32 to vector<2x32xf32>
    %445 = arith.addf %444, %443 : vector<2x32xf32>
    %446 = arith.divf %444, %445 : vector<2x32xf32>
    %447 = vector.extract_strided_slice %409 {offsets = [0, 64], sizes = [2, 32], strides = [1, 1]} : vector<2x128xf32> to vector<2x32xf32>
    %448 = math.tanh %447 : vector<2x32xf32>
    %449 = vector.extract_strided_slice %409 {offsets = [0, 96], sizes = [2, 32], strides = [1, 1]} : vector<2x128xf32> to vector<2x32xf32>
    %450 = arith.negf %449 : vector<2x32xf32>
    %451 = math.exp %450 : vector<2x32xf32>
    %cst_76 = arith.constant 1.000000e+00 : f32
    %452 = vector.broadcast %cst_76 : f32 to vector<2x32xf32>
    %453 = arith.addf %452, %451 : vector<2x32xf32>
    %454 = arith.divf %452, %453 : vector<2x32xf32>
    %455 = arith.mulf %446, %401 : vector<2x32xf32>
    %456 = arith.mulf %440, %448 : vector<2x32xf32>
    %457 = arith.addf %455, %456 : vector<2x32xf32>
    %458 = math.tanh %457 : vector<2x32xf32>
    %459 = arith.mulf %454, %458 : vector<2x32xf32>
    %460 = tpu.concatenate %42, %459 in 1 : vector<2x32xf32>, vector<2x32xf32> -> vector<2x64xf32>
    %461 = tpu.concatenate %98, %403 in 1 : vector<2x32xf32>, vector<2x32xf32> -> vector<2x64xf32>
    %462 = tpu.concatenate %154, %347 in 1 : vector<2x32xf32>, vector<2x32xf32> -> vector<2x64xf32>
    %463 = tpu.concatenate %210, %291 in 1 : vector<2x32xf32>, vector<2x32xf32> -> vector<2x64xf32>
    %464 = tpu.concatenate %266, %235 in 1 : vector<2x32xf32>, vector<2x32xf32> -> vector<2x64xf32>
    %465 = tpu.concatenate %322, %179 in 1 : vector<2x32xf32>, vector<2x32xf32> -> vector<2x64xf32>
    %466 = tpu.concatenate %378, %123 in 1 : vector<2x32xf32>, vector<2x32xf32> -> vector<2x64xf32>
    %467 = tpu.concatenate %434, %67 in 1 : vector<2x32xf32>, vector<2x32xf32> -> vector<2x64xf32>
    %468 = tpu.concatenate %460, %461, %462, %463, %464, %465, %466, %467 in 0 : vector<2x64xf32>, vector<2x64xf32>, vector<2x64xf32>, vector<2x64xf32>, vector<2x64xf32>, vector<2x64xf32>, vector<2x64xf32>, vector<2x64xf32> -> vector<16x64xf32>
    %c0_77 = arith.constant 0 : index
    %c0_78 = arith.constant 0 : index
    %469 = vector.load %arg5[%c0_77, %c0_78] : memref<64x256xf32, #tpu.memory_space<vmem>>, vector<64x256xf32>
    %cst_79 = arith.constant dense<0.000000e+00> : vector<16x256xf32>
    %470 = tpu.matmul %468, %469, %cst_79 {dimension_numbers = #tpu.dot_dimension_numbers<[1], [0], [0], [1], [0, 0, 1, 1], [], []>} : vector<16x64xf32>, vector<64x256xf32>, vector<16x256xf32> -> vector<16x256xf32>
    %c0_80 = arith.constant 0 : index
    %c0_81 = arith.constant 0 : index
    %471 = vector.load %arg8[%c0_80, %c0_81] : memref<1x256xf32, #tpu.memory_space<vmem>>, vector<1x256xf32>
    %472 = vector.broadcast %471 : vector<1x256xf32> to vector<16x256xf32>
    %473 = arith.addf %470, %472 : vector<16x256xf32>
    %c0_82 = arith.constant 0 : index
    %c0_83 = arith.constant 0 : index
    %474 = vector.load %arg6[%c0_82, %c0_83] : memref<32x128xf32, #tpu.memory_space<vmem>>, vector<32x128xf32>
    %c0_84 = arith.constant 0 : index
    %c0_85 = arith.constant 0 : index
    %475 = vector.load %arg7[%c0_84, %c0_85] : memref<32x128xf32, #tpu.memory_space<vmem>>, vector<32x128xf32>
    %cst_86 = arith.constant 0.000000e+00 : f32
    %476 = vector.broadcast %cst_86 : f32 to vector<2x32xf32>
    %cst_87 = arith.constant 0.000000e+00 : f32
    %477 = vector.broadcast %cst_87 : f32 to vector<2x32xf32>
    %cst_88 = arith.constant 0.000000e+00 : f32
    %478 = vector.broadcast %cst_88 : f32 to vector<2x32xf32>
    %cst_89 = arith.constant 0.000000e+00 : f32
    %479 = vector.broadcast %cst_89 : f32 to vector<2x32xf32>
    %480 = vector.extract_strided_slice %473 {offsets = [0, 0], sizes = [2, 128], strides = [1, 1]} : vector<16x256xf32> to vector<2x128xf32>
    %cst_90 = arith.constant dense<0.000000e+00> : vector<2x128xf32>
    %481 = tpu.matmul %476, %474, %cst_90 {dimension_numbers = #tpu.dot_dimension_numbers<[1], [0], [0], [1], [0, 0, 1, 1], [], []>} : vector<2x32xf32>, vector<32x128xf32>, vector<2x128xf32> -> vector<2x128xf32>
    %482 = arith.addf %480, %481 : vector<2x128xf32>
    %483 = vector.extract_strided_slice %473 {offsets = [14, 128], sizes = [2, 128], strides = [1, 1]} : vector<16x256xf32> to vector<2x128xf32>
    %cst_91 = arith.constant dense<0.000000e+00> : vector<2x128xf32>
    %484 = tpu.matmul %478, %475, %cst_91 {dimension_numbers = #tpu.dot_dimension_numbers<[1], [0], [0], [1], [0, 0, 1, 1], [], []>} : vector<2x32xf32>, vector<32x128xf32>, vector<2x128xf32> -> vector<2x128xf32>
    %485 = arith.addf %483, %484 : vector<2x128xf32>
    %486 = vector.extract_strided_slice %482 {offsets = [0, 0], sizes = [2, 32], strides = [1, 1]} : vector<2x128xf32> to vector<2x32xf32>
    %487 = arith.negf %486 : vector<2x32xf32>
    %488 = math.exp %487 : vector<2x32xf32>
    %cst_92 = arith.constant 1.000000e+00 : f32
    %489 = vector.broadcast %cst_92 : f32 to vector<2x32xf32>
    %490 = arith.addf %489, %488 : vector<2x32xf32>
    %491 = arith.divf %489, %490 : vector<2x32xf32>
    %492 = vector.extract_strided_slice %482 {offsets = [0, 32], sizes = [2, 32], strides = [1, 1]} : vector<2x128xf32> to vector<2x32xf32>
    %493 = arith.negf %492 : vector<2x32xf32>
    %494 = math.exp %493 : vector<2x32xf32>
    %cst_93 = arith.constant 1.000000e+00 : f32
    %495 = vector.broadcast %cst_93 : f32 to vector<2x32xf32>
    %496 = arith.addf %495, %494 : vector<2x32xf32>
    %497 = arith.divf %495, %496 : vector<2x32xf32>
    %498 = vector.extract_strided_slice %482 {offsets = [0, 64], sizes = [2, 32], strides = [1, 1]} : vector<2x128xf32> to vector<2x32xf32>
    %499 = math.tanh %498 : vector<2x32xf32>
    %500 = vector.extract_strided_slice %482 {offsets = [0, 96], sizes = [2, 32], strides = [1, 1]} : vector<2x128xf32> to vector<2x32xf32>
    %501 = arith.negf %500 : vector<2x32xf32>
    %502 = math.exp %501 : vector<2x32xf32>
    %cst_94 = arith.constant 1.000000e+00 : f32
    %503 = vector.broadcast %cst_94 : f32 to vector<2x32xf32>
    %504 = arith.addf %503, %502 : vector<2x32xf32>
    %505 = arith.divf %503, %504 : vector<2x32xf32>
    %506 = arith.mulf %497, %477 : vector<2x32xf32>
    %507 = arith.mulf %491, %499 : vector<2x32xf32>
    %508 = arith.addf %506, %507 : vector<2x32xf32>
    %509 = math.tanh %508 : vector<2x32xf32>
    %510 = arith.mulf %505, %509 : vector<2x32xf32>
    %511 = vector.extract_strided_slice %485 {offsets = [0, 0], sizes = [2, 32], strides = [1, 1]} : vector<2x128xf32> to vector<2x32xf32>
    %512 = arith.negf %511 : vector<2x32xf32>
    %513 = math.exp %512 : vector<2x32xf32>
    %cst_95 = arith.constant 1.000000e+00 : f32
    %514 = vector.broadcast %cst_95 : f32 to vector<2x32xf32>
    %515 = arith.addf %514, %513 : vector<2x32xf32>
    %516 = arith.divf %514, %515 : vector<2x32xf32>
    %517 = vector.extract_strided_slice %485 {offsets = [0, 32], sizes = [2, 32], strides = [1, 1]} : vector<2x128xf32> to vector<2x32xf32>
    %518 = arith.negf %517 : vector<2x32xf32>
    %519 = math.exp %518 : vector<2x32xf32>
    %cst_96 = arith.constant 1.000000e+00 : f32
    %520 = vector.broadcast %cst_96 : f32 to vector<2x32xf32>
    %521 = arith.addf %520, %519 : vector<2x32xf32>
    %522 = arith.divf %520, %521 : vector<2x32xf32>
    %523 = vector.extract_strided_slice %485 {offsets = [0, 64], sizes = [2, 32], strides = [1, 1]} : vector<2x128xf32> to vector<2x32xf32>
    %524 = math.tanh %523 : vector<2x32xf32>
    %525 = vector.extract_strided_slice %485 {offsets = [0, 96], sizes = [2, 32], strides = [1, 1]} : vector<2x128xf32> to vector<2x32xf32>
    %526 = arith.negf %525 : vector<2x32xf32>
    %527 = math.exp %526 : vector<2x32xf32>
    %cst_97 = arith.constant 1.000000e+00 : f32
    %528 = vector.broadcast %cst_97 : f32 to vector<2x32xf32>
    %529 = arith.addf %528, %527 : vector<2x32xf32>
    %530 = arith.divf %528, %529 : vector<2x32xf32>
    %531 = arith.mulf %522, %479 : vector<2x32xf32>
    %532 = arith.mulf %516, %524 : vector<2x32xf32>
    %533 = arith.addf %531, %532 : vector<2x32xf32>
    %534 = math.tanh %533 : vector<2x32xf32>
    %535 = arith.mulf %530, %534 : vector<2x32xf32>
    %536 = vector.extract_strided_slice %473 {offsets = [2, 0], sizes = [2, 128], strides = [1, 1]} : vector<16x256xf32> to vector<2x128xf32>
    %cst_98 = arith.constant dense<0.000000e+00> : vector<2x128xf32>
    %537 = tpu.matmul %510, %474, %cst_98 {dimension_numbers = #tpu.dot_dimension_numbers<[1], [0], [0], [1], [0, 0, 1, 1], [], []>} : vector<2x32xf32>, vector<32x128xf32>, vector<2x128xf32> -> vector<2x128xf32>
    %538 = arith.addf %536, %537 : vector<2x128xf32>
    %539 = vector.extract_strided_slice %473 {offsets = [12, 128], sizes = [2, 128], strides = [1, 1]} : vector<16x256xf32> to vector<2x128xf32>
    %cst_99 = arith.constant dense<0.000000e+00> : vector<2x128xf32>
    %540 = tpu.matmul %535, %475, %cst_99 {dimension_numbers = #tpu.dot_dimension_numbers<[1], [0], [0], [1], [0, 0, 1, 1], [], []>} : vector<2x32xf32>, vector<32x128xf32>, vector<2x128xf32> -> vector<2x128xf32>
    %541 = arith.addf %539, %540 : vector<2x128xf32>
    %542 = vector.extract_strided_slice %538 {offsets = [0, 0], sizes = [2, 32], strides = [1, 1]} : vector<2x128xf32> to vector<2x32xf32>
    %543 = arith.negf %542 : vector<2x32xf32>
    %544 = math.exp %543 : vector<2x32xf32>
    %cst_100 = arith.constant 1.000000e+00 : f32
    %545 = vector.broadcast %cst_100 : f32 to vector<2x32xf32>
    %546 = arith.addf %545, %544 : vector<2x32xf32>
    %547 = arith.divf %545, %546 : vector<2x32xf32>
    %548 = vector.extract_strided_slice %538 {offsets = [0, 32], sizes = [2, 32], strides = [1, 1]} : vector<2x128xf32> to vector<2x32xf32>
    %549 = arith.negf %548 : vector<2x32xf32>
    %550 = math.exp %549 : vector<2x32xf32>
    %cst_101 = arith.constant 1.000000e+00 : f32
    %551 = vector.broadcast %cst_101 : f32 to vector<2x32xf32>
    %552 = arith.addf %551, %550 : vector<2x32xf32>
    %553 = arith.divf %551, %552 : vector<2x32xf32>
    %554 = vector.extract_strided_slice %538 {offsets = [0, 64], sizes = [2, 32], strides = [1, 1]} : vector<2x128xf32> to vector<2x32xf32>
    %555 = math.tanh %554 : vector<2x32xf32>
    %556 = vector.extract_strided_slice %538 {offsets = [0, 96], sizes = [2, 32], strides = [1, 1]} : vector<2x128xf32> to vector<2x32xf32>
    %557 = arith.negf %556 : vector<2x32xf32>
    %558 = math.exp %557 : vector<2x32xf32>
    %cst_102 = arith.constant 1.000000e+00 : f32
    %559 = vector.broadcast %cst_102 : f32 to vector<2x32xf32>
    %560 = arith.addf %559, %558 : vector<2x32xf32>
    %561 = arith.divf %559, %560 : vector<2x32xf32>
    %562 = arith.mulf %553, %508 : vector<2x32xf32>
    %563 = arith.mulf %547, %555 : vector<2x32xf32>
    %564 = arith.addf %562, %563 : vector<2x32xf32>
    %565 = math.tanh %564 : vector<2x32xf32>
    %566 = arith.mulf %561, %565 : vector<2x32xf32>
    %567 = vector.extract_strided_slice %541 {offsets = [0, 0], sizes = [2, 32], strides = [1, 1]} : vector<2x128xf32> to vector<2x32xf32>
    %568 = arith.negf %567 : vector<2x32xf32>
    %569 = math.exp %568 : vector<2x32xf32>
    %cst_103 = arith.constant 1.000000e+00 : f32
    %570 = vector.broadcast %cst_103 : f32 to vector<2x32xf32>
    %571 = arith.addf %570, %569 : vector<2x32xf32>
    %572 = arith.divf %570, %571 : vector<2x32xf32>
    %573 = vector.extract_strided_slice %541 {offsets = [0, 32], sizes = [2, 32], strides = [1, 1]} : vector<2x128xf32> to vector<2x32xf32>
    %574 = arith.negf %573 : vector<2x32xf32>
    %575 = math.exp %574 : vector<2x32xf32>
    %cst_104 = arith.constant 1.000000e+00 : f32
    %576 = vector.broadcast %cst_104 : f32 to vector<2x32xf32>
    %577 = arith.addf %576, %575 : vector<2x32xf32>
    %578 = arith.divf %576, %577 : vector<2x32xf32>
    %579 = vector.extract_strided_slice %541 {offsets = [0, 64], sizes = [2, 32], strides = [1, 1]} : vector<2x128xf32> to vector<2x32xf32>
    %580 = math.tanh %579 : vector<2x32xf32>
    %581 = vector.extract_strided_slice %541 {offsets = [0, 96], sizes = [2, 32], strides = [1, 1]} : vector<2x128xf32> to vector<2x32xf32>
    %582 = arith.negf %581 : vector<2x32xf32>
    %583 = math.exp %582 : vector<2x32xf32>
    %cst_105 = arith.constant 1.000000e+00 : f32
    %584 = vector.broadcast %cst_105 : f32 to vector<2x32xf32>
    %585 = arith.addf %584, %583 : vector<2x32xf32>
    %586 = arith.divf %584, %585 : vector<2x32xf32>
    %587 = arith.mulf %578, %533 : vector<2x32xf32>
    %588 = arith.mulf %572, %580 : vector<2x32xf32>
    %589 = arith.addf %587, %588 : vector<2x32xf32>
    %590 = math.tanh %589 : vector<2x32xf32>
    %591 = arith.mulf %586, %590 : vector<2x32xf32>
    %592 = vector.extract_strided_slice %473 {offsets = [4, 0], sizes = [2, 128], strides = [1, 1]} : vector<16x256xf32> to vector<2x128xf32>
    %cst_106 = arith.constant dense<0.000000e+00> : vector<2x128xf32>
    %593 = tpu.matmul %566, %474, %cst_106 {dimension_numbers = #tpu.dot_dimension_numbers<[1], [0], [0], [1], [0, 0, 1, 1], [], []>} : vector<2x32xf32>, vector<32x128xf32>, vector<2x128xf32> -> vector<2x128xf32>
    %594 = arith.addf %592, %593 : vector<2x128xf32>
    %595 = vector.extract_strided_slice %473 {offsets = [10, 128], sizes = [2, 128], strides = [1, 1]} : vector<16x256xf32> to vector<2x128xf32>
    %cst_107 = arith.constant dense<0.000000e+00> : vector<2x128xf32>
    %596 = tpu.matmul %591, %475, %cst_107 {dimension_numbers = #tpu.dot_dimension_numbers<[1], [0], [0], [1], [0, 0, 1, 1], [], []>} : vector<2x32xf32>, vector<32x128xf32>, vector<2x128xf32> -> vector<2x128xf32>
    %597 = arith.addf %595, %596 : vector<2x128xf32>
    %598 = vector.extract_strided_slice %594 {offsets = [0, 0], sizes = [2, 32], strides = [1, 1]} : vector<2x128xf32> to vector<2x32xf32>
    %599 = arith.negf %598 : vector<2x32xf32>
    %600 = math.exp %599 : vector<2x32xf32>
    %cst_108 = arith.constant 1.000000e+00 : f32
    %601 = vector.broadcast %cst_108 : f32 to vector<2x32xf32>
    %602 = arith.addf %601, %600 : vector<2x32xf32>
    %603 = arith.divf %601, %602 : vector<2x32xf32>
    %604 = vector.extract_strided_slice %594 {offsets = [0, 32], sizes = [2, 32], strides = [1, 1]} : vector<2x128xf32> to vector<2x32xf32>
    %605 = arith.negf %604 : vector<2x32xf32>
    %606 = math.exp %605 : vector<2x32xf32>
    %cst_109 = arith.constant 1.000000e+00 : f32
    %607 = vector.broadcast %cst_109 : f32 to vector<2x32xf32>
    %608 = arith.addf %607, %606 : vector<2x32xf32>
    %609 = arith.divf %607, %608 : vector<2x32xf32>
    %610 = vector.extract_strided_slice %594 {offsets = [0, 64], sizes = [2, 32], strides = [1, 1]} : vector<2x128xf32> to vector<2x32xf32>
    %611 = math.tanh %610 : vector<2x32xf32>
    %612 = vector.extract_strided_slice %594 {offsets = [0, 96], sizes = [2, 32], strides = [1, 1]} : vector<2x128xf32> to vector<2x32xf32>
    %613 = arith.negf %612 : vector<2x32xf32>
    %614 = math.exp %613 : vector<2x32xf32>
    %cst_110 = arith.constant 1.000000e+00 : f32
    %615 = vector.broadcast %cst_110 : f32 to vector<2x32xf32>
    %616 = arith.addf %615, %614 : vector<2x32xf32>
    %617 = arith.divf %615, %616 : vector<2x32xf32>
    %618 = arith.mulf %609, %564 : vector<2x32xf32>
    %619 = arith.mulf %603, %611 : vector<2x32xf32>
    %620 = arith.addf %618, %619 : vector<2x32xf32>
    %621 = math.tanh %620 : vector<2x32xf32>
    %622 = arith.mulf %617, %621 : vector<2x32xf32>
    %623 = vector.extract_strided_slice %597 {offsets = [0, 0], sizes = [2, 32], strides = [1, 1]} : vector<2x128xf32> to vector<2x32xf32>
    %624 = arith.negf %623 : vector<2x32xf32>
    %625 = math.exp %624 : vector<2x32xf32>
    %cst_111 = arith.constant 1.000000e+00 : f32
    %626 = vector.broadcast %cst_111 : f32 to vector<2x32xf32>
    %627 = arith.addf %626, %625 : vector<2x32xf32>
    %628 = arith.divf %626, %627 : vector<2x32xf32>
    %629 = vector.extract_strided_slice %597 {offsets = [0, 32], sizes = [2, 32], strides = [1, 1]} : vector<2x128xf32> to vector<2x32xf32>
    %630 = arith.negf %629 : vector<2x32xf32>
    %631 = math.exp %630 : vector<2x32xf32>
    %cst_112 = arith.constant 1.000000e+00 : f32
    %632 = vector.broadcast %cst_112 : f32 to vector<2x32xf32>
    %633 = arith.addf %632, %631 : vector<2x32xf32>
    %634 = arith.divf %632, %633 : vector<2x32xf32>
    %635 = vector.extract_strided_slice %597 {offsets = [0, 64], sizes = [2, 32], strides = [1, 1]} : vector<2x128xf32> to vector<2x32xf32>
    %636 = math.tanh %635 : vector<2x32xf32>
    %637 = vector.extract_strided_slice %597 {offsets = [0, 96], sizes = [2, 32], strides = [1, 1]} : vector<2x128xf32> to vector<2x32xf32>
    %638 = arith.negf %637 : vector<2x32xf32>
    %639 = math.exp %638 : vector<2x32xf32>
    %cst_113 = arith.constant 1.000000e+00 : f32
    %640 = vector.broadcast %cst_113 : f32 to vector<2x32xf32>
    %641 = arith.addf %640, %639 : vector<2x32xf32>
    %642 = arith.divf %640, %641 : vector<2x32xf32>
    %643 = arith.mulf %634, %589 : vector<2x32xf32>
    %644 = arith.mulf %628, %636 : vector<2x32xf32>
    %645 = arith.addf %643, %644 : vector<2x32xf32>
    %646 = math.tanh %645 : vector<2x32xf32>
    %647 = arith.mulf %642, %646 : vector<2x32xf32>
    %648 = vector.extract_strided_slice %473 {offsets = [6, 0], sizes = [2, 128], strides = [1, 1]} : vector<16x256xf32> to vector<2x128xf32>
    %cst_114 = arith.constant dense<0.000000e+00> : vector<2x128xf32>
    %649 = tpu.matmul %622, %474, %cst_114 {dimension_numbers = #tpu.dot_dimension_numbers<[1], [0], [0], [1], [0, 0, 1, 1], [], []>} : vector<2x32xf32>, vector<32x128xf32>, vector<2x128xf32> -> vector<2x128xf32>
    %650 = arith.addf %648, %649 : vector<2x128xf32>
    %651 = vector.extract_strided_slice %473 {offsets = [8, 128], sizes = [2, 128], strides = [1, 1]} : vector<16x256xf32> to vector<2x128xf32>
    %cst_115 = arith.constant dense<0.000000e+00> : vector<2x128xf32>
    %652 = tpu.matmul %647, %475, %cst_115 {dimension_numbers = #tpu.dot_dimension_numbers<[1], [0], [0], [1], [0, 0, 1, 1], [], []>} : vector<2x32xf32>, vector<32x128xf32>, vector<2x128xf32> -> vector<2x128xf32>
    %653 = arith.addf %651, %652 : vector<2x128xf32>
    %654 = vector.extract_strided_slice %650 {offsets = [0, 0], sizes = [2, 32], strides = [1, 1]} : vector<2x128xf32> to vector<2x32xf32>
    %655 = arith.negf %654 : vector<2x32xf32>
    %656 = math.exp %655 : vector<2x32xf32>
    %cst_116 = arith.constant 1.000000e+00 : f32
    %657 = vector.broadcast %cst_116 : f32 to vector<2x32xf32>
    %658 = arith.addf %657, %656 : vector<2x32xf32>
    %659 = arith.divf %657, %658 : vector<2x32xf32>
    %660 = vector.extract_strided_slice %650 {offsets = [0, 32], sizes = [2, 32], strides = [1, 1]} : vector<2x128xf32> to vector<2x32xf32>
    %661 = arith.negf %660 : vector<2x32xf32>
    %662 = math.exp %661 : vector<2x32xf32>
    %cst_117 = arith.constant 1.000000e+00 : f32
    %663 = vector.broadcast %cst_117 : f32 to vector<2x32xf32>
    %664 = arith.addf %663, %662 : vector<2x32xf32>
    %665 = arith.divf %663, %664 : vector<2x32xf32>
    %666 = vector.extract_strided_slice %650 {offsets = [0, 64], sizes = [2, 32], strides = [1, 1]} : vector<2x128xf32> to vector<2x32xf32>
    %667 = math.tanh %666 : vector<2x32xf32>
    %668 = vector.extract_strided_slice %650 {offsets = [0, 96], sizes = [2, 32], strides = [1, 1]} : vector<2x128xf32> to vector<2x32xf32>
    %669 = arith.negf %668 : vector<2x32xf32>
    %670 = math.exp %669 : vector<2x32xf32>
    %cst_118 = arith.constant 1.000000e+00 : f32
    %671 = vector.broadcast %cst_118 : f32 to vector<2x32xf32>
    %672 = arith.addf %671, %670 : vector<2x32xf32>
    %673 = arith.divf %671, %672 : vector<2x32xf32>
    %674 = arith.mulf %665, %620 : vector<2x32xf32>
    %675 = arith.mulf %659, %667 : vector<2x32xf32>
    %676 = arith.addf %674, %675 : vector<2x32xf32>
    %677 = math.tanh %676 : vector<2x32xf32>
    %678 = arith.mulf %673, %677 : vector<2x32xf32>
    %679 = vector.extract_strided_slice %653 {offsets = [0, 0], sizes = [2, 32], strides = [1, 1]} : vector<2x128xf32> to vector<2x32xf32>
    %680 = arith.negf %679 : vector<2x32xf32>
    %681 = math.exp %680 : vector<2x32xf32>
    %cst_119 = arith.constant 1.000000e+00 : f32
    %682 = vector.broadcast %cst_119 : f32 to vector<2x32xf32>
    %683 = arith.addf %682, %681 : vector<2x32xf32>
    %684 = arith.divf %682, %683 : vector<2x32xf32>
    %685 = vector.extract_strided_slice %653 {offsets = [0, 32], sizes = [2, 32], strides = [1, 1]} : vector<2x128xf32> to vector<2x32xf32>
    %686 = arith.negf %685 : vector<2x32xf32>
    %687 = math.exp %686 : vector<2x32xf32>
    %cst_120 = arith.constant 1.000000e+00 : f32
    %688 = vector.broadcast %cst_120 : f32 to vector<2x32xf32>
    %689 = arith.addf %688, %687 : vector<2x32xf32>
    %690 = arith.divf %688, %689 : vector<2x32xf32>
    %691 = vector.extract_strided_slice %653 {offsets = [0, 64], sizes = [2, 32], strides = [1, 1]} : vector<2x128xf32> to vector<2x32xf32>
    %692 = math.tanh %691 : vector<2x32xf32>
    %693 = vector.extract_strided_slice %653 {offsets = [0, 96], sizes = [2, 32], strides = [1, 1]} : vector<2x128xf32> to vector<2x32xf32>
    %694 = arith.negf %693 : vector<2x32xf32>
    %695 = math.exp %694 : vector<2x32xf32>
    %cst_121 = arith.constant 1.000000e+00 : f32
    %696 = vector.broadcast %cst_121 : f32 to vector<2x32xf32>
    %697 = arith.addf %696, %695 : vector<2x32xf32>
    %698 = arith.divf %696, %697 : vector<2x32xf32>
    %699 = arith.mulf %690, %645 : vector<2x32xf32>
    %700 = arith.mulf %684, %692 : vector<2x32xf32>
    %701 = arith.addf %699, %700 : vector<2x32xf32>
    %702 = math.tanh %701 : vector<2x32xf32>
    %703 = arith.mulf %698, %702 : vector<2x32xf32>
    %704 = vector.extract_strided_slice %473 {offsets = [8, 0], sizes = [2, 128], strides = [1, 1]} : vector<16x256xf32> to vector<2x128xf32>
    %cst_122 = arith.constant dense<0.000000e+00> : vector<2x128xf32>
    %705 = tpu.matmul %678, %474, %cst_122 {dimension_numbers = #tpu.dot_dimension_numbers<[1], [0], [0], [1], [0, 0, 1, 1], [], []>} : vector<2x32xf32>, vector<32x128xf32>, vector<2x128xf32> -> vector<2x128xf32>
    %706 = arith.addf %704, %705 : vector<2x128xf32>
    %707 = vector.extract_strided_slice %473 {offsets = [6, 128], sizes = [2, 128], strides = [1, 1]} : vector<16x256xf32> to vector<2x128xf32>
    %cst_123 = arith.constant dense<0.000000e+00> : vector<2x128xf32>
    %708 = tpu.matmul %703, %475, %cst_123 {dimension_numbers = #tpu.dot_dimension_numbers<[1], [0], [0], [1], [0, 0, 1, 1], [], []>} : vector<2x32xf32>, vector<32x128xf32>, vector<2x128xf32> -> vector<2x128xf32>
    %709 = arith.addf %707, %708 : vector<2x128xf32>
    %710 = vector.extract_strided_slice %706 {offsets = [0, 0], sizes = [2, 32], strides = [1, 1]} : vector<2x128xf32> to vector<2x32xf32>
    %711 = arith.negf %710 : vector<2x32xf32>
    %712 = math.exp %711 : vector<2x32xf32>
    %cst_124 = arith.constant 1.000000e+00 : f32
    %713 = vector.broadcast %cst_124 : f32 to vector<2x32xf32>
    %714 = arith.addf %713, %712 : vector<2x32xf32>
    %715 = arith.divf %713, %714 : vector<2x32xf32>
    %716 = vector.extract_strided_slice %706 {offsets = [0, 32], sizes = [2, 32], strides = [1, 1]} : vector<2x128xf32> to vector<2x32xf32>
    %717 = arith.negf %716 : vector<2x32xf32>
    %718 = math.exp %717 : vector<2x32xf32>
    %cst_125 = arith.constant 1.000000e+00 : f32
    %719 = vector.broadcast %cst_125 : f32 to vector<2x32xf32>
    %720 = arith.addf %719, %718 : vector<2x32xf32>
    %721 = arith.divf %719, %720 : vector<2x32xf32>
    %722 = vector.extract_strided_slice %706 {offsets = [0, 64], sizes = [2, 32], strides = [1, 1]} : vector<2x128xf32> to vector<2x32xf32>
    %723 = math.tanh %722 : vector<2x32xf32>
    %724 = vector.extract_strided_slice %706 {offsets = [0, 96], sizes = [2, 32], strides = [1, 1]} : vector<2x128xf32> to vector<2x32xf32>
    %725 = arith.negf %724 : vector<2x32xf32>
    %726 = math.exp %725 : vector<2x32xf32>
    %cst_126 = arith.constant 1.000000e+00 : f32
    %727 = vector.broadcast %cst_126 : f32 to vector<2x32xf32>
    %728 = arith.addf %727, %726 : vector<2x32xf32>
    %729 = arith.divf %727, %728 : vector<2x32xf32>
    %730 = arith.mulf %721, %676 : vector<2x32xf32>
    %731 = arith.mulf %715, %723 : vector<2x32xf32>
    %732 = arith.addf %730, %731 : vector<2x32xf32>
    %733 = math.tanh %732 : vector<2x32xf32>
    %734 = arith.mulf %729, %733 : vector<2x32xf32>
    %735 = vector.extract_strided_slice %709 {offsets = [0, 0], sizes = [2, 32], strides = [1, 1]} : vector<2x128xf32> to vector<2x32xf32>
    %736 = arith.negf %735 : vector<2x32xf32>
    %737 = math.exp %736 : vector<2x32xf32>
    %cst_127 = arith.constant 1.000000e+00 : f32
    %738 = vector.broadcast %cst_127 : f32 to vector<2x32xf32>
    %739 = arith.addf %738, %737 : vector<2x32xf32>
    %740 = arith.divf %738, %739 : vector<2x32xf32>
    %741 = vector.extract_strided_slice %709 {offsets = [0, 32], sizes = [2, 32], strides = [1, 1]} : vector<2x128xf32> to vector<2x32xf32>
    %742 = arith.negf %741 : vector<2x32xf32>
    %743 = math.exp %742 : vector<2x32xf32>
    %cst_128 = arith.constant 1.000000e+00 : f32
    %744 = vector.broadcast %cst_128 : f32 to vector<2x32xf32>
    %745 = arith.addf %744, %743 : vector<2x32xf32>
    %746 = arith.divf %744, %745 : vector<2x32xf32>
    %747 = vector.extract_strided_slice %709 {offsets = [0, 64], sizes = [2, 32], strides = [1, 1]} : vector<2x128xf32> to vector<2x32xf32>
    %748 = math.tanh %747 : vector<2x32xf32>
    %749 = vector.extract_strided_slice %709 {offsets = [0, 96], sizes = [2, 32], strides = [1, 1]} : vector<2x128xf32> to vector<2x32xf32>
    %750 = arith.negf %749 : vector<2x32xf32>
    %751 = math.exp %750 : vector<2x32xf32>
    %cst_129 = arith.constant 1.000000e+00 : f32
    %752 = vector.broadcast %cst_129 : f32 to vector<2x32xf32>
    %753 = arith.addf %752, %751 : vector<2x32xf32>
    %754 = arith.divf %752, %753 : vector<2x32xf32>
    %755 = arith.mulf %746, %701 : vector<2x32xf32>
    %756 = arith.mulf %740, %748 : vector<2x32xf32>
    %757 = arith.addf %755, %756 : vector<2x32xf32>
    %758 = math.tanh %757 : vector<2x32xf32>
    %759 = arith.mulf %754, %758 : vector<2x32xf32>
    %760 = vector.extract_strided_slice %473 {offsets = [10, 0], sizes = [2, 128], strides = [1, 1]} : vector<16x256xf32> to vector<2x128xf32>
    %cst_130 = arith.constant dense<0.000000e+00> : vector<2x128xf32>
    %761 = tpu.matmul %734, %474, %cst_130 {dimension_numbers = #tpu.dot_dimension_numbers<[1], [0], [0], [1], [0, 0, 1, 1], [], []>} : vector<2x32xf32>, vector<32x128xf32>, vector<2x128xf32> -> vector<2x128xf32>
    %762 = arith.addf %760, %761 : vector<2x128xf32>
    %763 = vector.extract_strided_slice %473 {offsets = [4, 128], sizes = [2, 128], strides = [1, 1]} : vector<16x256xf32> to vector<2x128xf32>
    %cst_131 = arith.constant dense<0.000000e+00> : vector<2x128xf32>
    %764 = tpu.matmul %759, %475, %cst_131 {dimension_numbers = #tpu.dot_dimension_numbers<[1], [0], [0], [1], [0, 0, 1, 1], [], []>} : vector<2x32xf32>, vector<32x128xf32>, vector<2x128xf32> -> vector<2x128xf32>
    %765 = arith.addf %763, %764 : vector<2x128xf32>
    %766 = vector.extract_strided_slice %762 {offsets = [0, 0], sizes = [2, 32], strides = [1, 1]} : vector<2x128xf32> to vector<2x32xf32>
    %767 = arith.negf %766 : vector<2x32xf32>
    %768 = math.exp %767 : vector<2x32xf32>
    %cst_132 = arith.constant 1.000000e+00 : f32
    %769 = vector.broadcast %cst_132 : f32 to vector<2x32xf32>
    %770 = arith.addf %769, %768 : vector<2x32xf32>
    %771 = arith.divf %769, %770 : vector<2x32xf32>
    %772 = vector.extract_strided_slice %762 {offsets = [0, 32], sizes = [2, 32], strides = [1, 1]} : vector<2x128xf32> to vector<2x32xf32>
    %773 = arith.negf %772 : vector<2x32xf32>
    %774 = math.exp %773 : vector<2x32xf32>
    %cst_133 = arith.constant 1.000000e+00 : f32
    %775 = vector.broadcast %cst_133 : f32 to vector<2x32xf32>
    %776 = arith.addf %775, %774 : vector<2x32xf32>
    %777 = arith.divf %775, %776 : vector<2x32xf32>
    %778 = vector.extract_strided_slice %762 {offsets = [0, 64], sizes = [2, 32], strides = [1, 1]} : vector<2x128xf32> to vector<2x32xf32>
    %779 = math.tanh %778 : vector<2x32xf32>
    %780 = vector.extract_strided_slice %762 {offsets = [0, 96], sizes = [2, 32], strides = [1, 1]} : vector<2x128xf32> to vector<2x32xf32>
    %781 = arith.negf %780 : vector<2x32xf32>
    %782 = math.exp %781 : vector<2x32xf32>
    %cst_134 = arith.constant 1.000000e+00 : f32
    %783 = vector.broadcast %cst_134 : f32 to vector<2x32xf32>
    %784 = arith.addf %783, %782 : vector<2x32xf32>
    %785 = arith.divf %783, %784 : vector<2x32xf32>
    %786 = arith.mulf %777, %732 : vector<2x32xf32>
    %787 = arith.mulf %771, %779 : vector<2x32xf32>
    %788 = arith.addf %786, %787 : vector<2x32xf32>
    %789 = math.tanh %788 : vector<2x32xf32>
    %790 = arith.mulf %785, %789 : vector<2x32xf32>
    %791 = vector.extract_strided_slice %765 {offsets = [0, 0], sizes = [2, 32], strides = [1, 1]} : vector<2x128xf32> to vector<2x32xf32>
    %792 = arith.negf %791 : vector<2x32xf32>
    %793 = math.exp %792 : vector<2x32xf32>
    %cst_135 = arith.constant 1.000000e+00 : f32
    %794 = vector.broadcast %cst_135 : f32 to vector<2x32xf32>
    %795 = arith.addf %794, %793 : vector<2x32xf32>
    %796 = arith.divf %794, %795 : vector<2x32xf32>
    %797 = vector.extract_strided_slice %765 {offsets = [0, 32], sizes = [2, 32], strides = [1, 1]} : vector<2x128xf32> to vector<2x32xf32>
    %798 = arith.negf %797 : vector<2x32xf32>
    %799 = math.exp %798 : vector<2x32xf32>
    %cst_136 = arith.constant 1.000000e+00 : f32
    %800 = vector.broadcast %cst_136 : f32 to vector<2x32xf32>
    %801 = arith.addf %800, %799 : vector<2x32xf32>
    %802 = arith.divf %800, %801 : vector<2x32xf32>
    %803 = vector.extract_strided_slice %765 {offsets = [0, 64], sizes = [2, 32], strides = [1, 1]} : vector<2x128xf32> to vector<2x32xf32>
    %804 = math.tanh %803 : vector<2x32xf32>
    %805 = vector.extract_strided_slice %765 {offsets = [0, 96], sizes = [2, 32], strides = [1, 1]} : vector<2x128xf32> to vector<2x32xf32>
    %806 = arith.negf %805 : vector<2x32xf32>
    %807 = math.exp %806 : vector<2x32xf32>
    %cst_137 = arith.constant 1.000000e+00 : f32
    %808 = vector.broadcast %cst_137 : f32 to vector<2x32xf32>
    %809 = arith.addf %808, %807 : vector<2x32xf32>
    %810 = arith.divf %808, %809 : vector<2x32xf32>
    %811 = arith.mulf %802, %757 : vector<2x32xf32>
    %812 = arith.mulf %796, %804 : vector<2x32xf32>
    %813 = arith.addf %811, %812 : vector<2x32xf32>
    %814 = math.tanh %813 : vector<2x32xf32>
    %815 = arith.mulf %810, %814 : vector<2x32xf32>
    %816 = vector.extract_strided_slice %473 {offsets = [12, 0], sizes = [2, 128], strides = [1, 1]} : vector<16x256xf32> to vector<2x128xf32>
    %cst_138 = arith.constant dense<0.000000e+00> : vector<2x128xf32>
    %817 = tpu.matmul %790, %474, %cst_138 {dimension_numbers = #tpu.dot_dimension_numbers<[1], [0], [0], [1], [0, 0, 1, 1], [], []>} : vector<2x32xf32>, vector<32x128xf32>, vector<2x128xf32> -> vector<2x128xf32>
    %818 = arith.addf %816, %817 : vector<2x128xf32>
    %819 = vector.extract_strided_slice %473 {offsets = [2, 128], sizes = [2, 128], strides = [1, 1]} : vector<16x256xf32> to vector<2x128xf32>
    %cst_139 = arith.constant dense<0.000000e+00> : vector<2x128xf32>
    %820 = tpu.matmul %815, %475, %cst_139 {dimension_numbers = #tpu.dot_dimension_numbers<[1], [0], [0], [1], [0, 0, 1, 1], [], []>} : vector<2x32xf32>, vector<32x128xf32>, vector<2x128xf32> -> vector<2x128xf32>
    %821 = arith.addf %819, %820 : vector<2x128xf32>
    %822 = vector.extract_strided_slice %818 {offsets = [0, 0], sizes = [2, 32], strides = [1, 1]} : vector<2x128xf32> to vector<2x32xf32>
    %823 = arith.negf %822 : vector<2x32xf32>
    %824 = math.exp %823 : vector<2x32xf32>
    %cst_140 = arith.constant 1.000000e+00 : f32
    %825 = vector.broadcast %cst_140 : f32 to vector<2x32xf32>
    %826 = arith.addf %825, %824 : vector<2x32xf32>
    %827 = arith.divf %825, %826 : vector<2x32xf32>
    %828 = vector.extract_strided_slice %818 {offsets = [0, 32], sizes = [2, 32], strides = [1, 1]} : vector<2x128xf32> to vector<2x32xf32>
    %829 = arith.negf %828 : vector<2x32xf32>
    %830 = math.exp %829 : vector<2x32xf32>
    %cst_141 = arith.constant 1.000000e+00 : f32
    %831 = vector.broadcast %cst_141 : f32 to vector<2x32xf32>
    %832 = arith.addf %831, %830 : vector<2x32xf32>
    %833 = arith.divf %831, %832 : vector<2x32xf32>
    %834 = vector.extract_strided_slice %818 {offsets = [0, 64], sizes = [2, 32], strides = [1, 1]} : vector<2x128xf32> to vector<2x32xf32>
    %835 = math.tanh %834 : vector<2x32xf32>
    %836 = vector.extract_strided_slice %818 {offsets = [0, 96], sizes = [2, 32], strides = [1, 1]} : vector<2x128xf32> to vector<2x32xf32>
    %837 = arith.negf %836 : vector<2x32xf32>
    %838 = math.exp %837 : vector<2x32xf32>
    %cst_142 = arith.constant 1.000000e+00 : f32
    %839 = vector.broadcast %cst_142 : f32 to vector<2x32xf32>
    %840 = arith.addf %839, %838 : vector<2x32xf32>
    %841 = arith.divf %839, %840 : vector<2x32xf32>
    %842 = arith.mulf %833, %788 : vector<2x32xf32>
    %843 = arith.mulf %827, %835 : vector<2x32xf32>
    %844 = arith.addf %842, %843 : vector<2x32xf32>
    %845 = math.tanh %844 : vector<2x32xf32>
    %846 = arith.mulf %841, %845 : vector<2x32xf32>
    %847 = vector.extract_strided_slice %821 {offsets = [0, 0], sizes = [2, 32], strides = [1, 1]} : vector<2x128xf32> to vector<2x32xf32>
    %848 = arith.negf %847 : vector<2x32xf32>
    %849 = math.exp %848 : vector<2x32xf32>
    %cst_143 = arith.constant 1.000000e+00 : f32
    %850 = vector.broadcast %cst_143 : f32 to vector<2x32xf32>
    %851 = arith.addf %850, %849 : vector<2x32xf32>
    %852 = arith.divf %850, %851 : vector<2x32xf32>
    %853 = vector.extract_strided_slice %821 {offsets = [0, 32], sizes = [2, 32], strides = [1, 1]} : vector<2x128xf32> to vector<2x32xf32>
    %854 = arith.negf %853 : vector<2x32xf32>
    %855 = math.exp %854 : vector<2x32xf32>
    %cst_144 = arith.constant 1.000000e+00 : f32
    %856 = vector.broadcast %cst_144 : f32 to vector<2x32xf32>
    %857 = arith.addf %856, %855 : vector<2x32xf32>
    %858 = arith.divf %856, %857 : vector<2x32xf32>
    %859 = vector.extract_strided_slice %821 {offsets = [0, 64], sizes = [2, 32], strides = [1, 1]} : vector<2x128xf32> to vector<2x32xf32>
    %860 = math.tanh %859 : vector<2x32xf32>
    %861 = vector.extract_strided_slice %821 {offsets = [0, 96], sizes = [2, 32], strides = [1, 1]} : vector<2x128xf32> to vector<2x32xf32>
    %862 = arith.negf %861 : vector<2x32xf32>
    %863 = math.exp %862 : vector<2x32xf32>
    %cst_145 = arith.constant 1.000000e+00 : f32
    %864 = vector.broadcast %cst_145 : f32 to vector<2x32xf32>
    %865 = arith.addf %864, %863 : vector<2x32xf32>
    %866 = arith.divf %864, %865 : vector<2x32xf32>
    %867 = arith.mulf %858, %813 : vector<2x32xf32>
    %868 = arith.mulf %852, %860 : vector<2x32xf32>
    %869 = arith.addf %867, %868 : vector<2x32xf32>
    %870 = math.tanh %869 : vector<2x32xf32>
    %871 = arith.mulf %866, %870 : vector<2x32xf32>
    %872 = vector.extract_strided_slice %473 {offsets = [14, 0], sizes = [2, 128], strides = [1, 1]} : vector<16x256xf32> to vector<2x128xf32>
    %cst_146 = arith.constant dense<0.000000e+00> : vector<2x128xf32>
    %873 = tpu.matmul %846, %474, %cst_146 {dimension_numbers = #tpu.dot_dimension_numbers<[1], [0], [0], [1], [0, 0, 1, 1], [], []>} : vector<2x32xf32>, vector<32x128xf32>, vector<2x128xf32> -> vector<2x128xf32>
    %874 = arith.addf %872, %873 : vector<2x128xf32>
    %875 = vector.extract_strided_slice %473 {offsets = [0, 128], sizes = [2, 128], strides = [1, 1]} : vector<16x256xf32> to vector<2x128xf32>
    %cst_147 = arith.constant dense<0.000000e+00> : vector<2x128xf32>
    %876 = tpu.matmul %871, %475, %cst_147 {dimension_numbers = #tpu.dot_dimension_numbers<[1], [0], [0], [1], [0, 0, 1, 1], [], []>} : vector<2x32xf32>, vector<32x128xf32>, vector<2x128xf32> -> vector<2x128xf32>
    %877 = arith.addf %875, %876 : vector<2x128xf32>
    %878 = vector.extract_strided_slice %874 {offsets = [0, 0], sizes = [2, 32], strides = [1, 1]} : vector<2x128xf32> to vector<2x32xf32>
    %879 = arith.negf %878 : vector<2x32xf32>
    %880 = math.exp %879 : vector<2x32xf32>
    %cst_148 = arith.constant 1.000000e+00 : f32
    %881 = vector.broadcast %cst_148 : f32 to vector<2x32xf32>
    %882 = arith.addf %881, %880 : vector<2x32xf32>
    %883 = arith.divf %881, %882 : vector<2x32xf32>
    %884 = vector.extract_strided_slice %874 {offsets = [0, 32], sizes = [2, 32], strides = [1, 1]} : vector<2x128xf32> to vector<2x32xf32>
    %885 = arith.negf %884 : vector<2x32xf32>
    %886 = math.exp %885 : vector<2x32xf32>
    %cst_149 = arith.constant 1.000000e+00 : f32
    %887 = vector.broadcast %cst_149 : f32 to vector<2x32xf32>
    %888 = arith.addf %887, %886 : vector<2x32xf32>
    %889 = arith.divf %887, %888 : vector<2x32xf32>
    %890 = vector.extract_strided_slice %874 {offsets = [0, 64], sizes = [2, 32], strides = [1, 1]} : vector<2x128xf32> to vector<2x32xf32>
    %891 = math.tanh %890 : vector<2x32xf32>
    %892 = vector.extract_strided_slice %874 {offsets = [0, 96], sizes = [2, 32], strides = [1, 1]} : vector<2x128xf32> to vector<2x32xf32>
    %893 = arith.negf %892 : vector<2x32xf32>
    %894 = math.exp %893 : vector<2x32xf32>
    %cst_150 = arith.constant 1.000000e+00 : f32
    %895 = vector.broadcast %cst_150 : f32 to vector<2x32xf32>
    %896 = arith.addf %895, %894 : vector<2x32xf32>
    %897 = arith.divf %895, %896 : vector<2x32xf32>
    %898 = arith.mulf %889, %844 : vector<2x32xf32>
    %899 = arith.mulf %883, %891 : vector<2x32xf32>
    %900 = arith.addf %898, %899 : vector<2x32xf32>
    %901 = math.tanh %900 : vector<2x32xf32>
    %902 = arith.mulf %897, %901 : vector<2x32xf32>
    %903 = vector.extract_strided_slice %877 {offsets = [0, 0], sizes = [2, 32], strides = [1, 1]} : vector<2x128xf32> to vector<2x32xf32>
    %904 = arith.negf %903 : vector<2x32xf32>
    %905 = math.exp %904 : vector<2x32xf32>
    %cst_151 = arith.constant 1.000000e+00 : f32
    %906 = vector.broadcast %cst_151 : f32 to vector<2x32xf32>
    %907 = arith.addf %906, %905 : vector<2x32xf32>
    %908 = arith.divf %906, %907 : vector<2x32xf32>
    %909 = vector.extract_strided_slice %877 {offsets = [0, 32], sizes = [2, 32], strides = [1, 1]} : vector<2x128xf32> to vector<2x32xf32>
    %910 = arith.negf %909 : vector<2x32xf32>
    %911 = math.exp %910 : vector<2x32xf32>
    %cst_152 = arith.constant 1.000000e+00 : f32
    %912 = vector.broadcast %cst_152 : f32 to vector<2x32xf32>
    %913 = arith.addf %912, %911 : vector<2x32xf32>
    %914 = arith.divf %912, %913 : vector<2x32xf32>
    %915 = vector.extract_strided_slice %877 {offsets = [0, 64], sizes = [2, 32], strides = [1, 1]} : vector<2x128xf32> to vector<2x32xf32>
    %916 = math.tanh %915 : vector<2x32xf32>
    %917 = vector.extract_strided_slice %877 {offsets = [0, 96], sizes = [2, 32], strides = [1, 1]} : vector<2x128xf32> to vector<2x32xf32>
    %918 = arith.negf %917 : vector<2x32xf32>
    %919 = math.exp %918 : vector<2x32xf32>
    %cst_153 = arith.constant 1.000000e+00 : f32
    %920 = vector.broadcast %cst_153 : f32 to vector<2x32xf32>
    %921 = arith.addf %920, %919 : vector<2x32xf32>
    %922 = arith.divf %920, %921 : vector<2x32xf32>
    %923 = arith.mulf %914, %869 : vector<2x32xf32>
    %924 = arith.mulf %908, %916 : vector<2x32xf32>
    %925 = arith.addf %923, %924 : vector<2x32xf32>
    %926 = math.tanh %925 : vector<2x32xf32>
    %927 = arith.mulf %922, %926 : vector<2x32xf32>
    %928 = tpu.concatenate %510, %927 in 1 : vector<2x32xf32>, vector<2x32xf32> -> vector<2x64xf32>
    %929 = tpu.concatenate %566, %871 in 1 : vector<2x32xf32>, vector<2x32xf32> -> vector<2x64xf32>
    %930 = tpu.concatenate %622, %815 in 1 : vector<2x32xf32>, vector<2x32xf32> -> vector<2x64xf32>
    %931 = tpu.concatenate %678, %759 in 1 : vector<2x32xf32>, vector<2x32xf32> -> vector<2x64xf32>
    %932 = tpu.concatenate %734, %703 in 1 : vector<2x32xf32>, vector<2x32xf32> -> vector<2x64xf32>
    %933 = tpu.concatenate %790, %647 in 1 : vector<2x32xf32>, vector<2x32xf32> -> vector<2x64xf32>
    %934 = tpu.concatenate %846, %591 in 1 : vector<2x32xf32>, vector<2x32xf32> -> vector<2x64xf32>
    %935 = tpu.concatenate %902, %535 in 1 : vector<2x32xf32>, vector<2x32xf32> -> vector<2x64xf32>
    %936 = tpu.concatenate %928, %929, %930, %931, %932, %933, %934, %935 in 0 : vector<2x64xf32>, vector<2x64xf32>, vector<2x64xf32>, vector<2x64xf32>, vector<2x64xf32>, vector<2x64xf32>, vector<2x64xf32>, vector<2x64xf32> -> vector<16x64xf32>
    %c0_154 = arith.constant 0 : index
    %c0_155 = arith.constant 0 : index
    %937 = vector.load %arg9[%c0_154, %c0_155] : memref<64x128xf32, #tpu.memory_space<vmem>>, vector<64x128xf32>
    %cst_156 = arith.constant dense<0.000000e+00> : vector<16x128xf32>
    %938 = tpu.matmul %936, %937, %cst_156 {dimension_numbers = #tpu.dot_dimension_numbers<[1], [0], [0], [1], [0, 0, 1, 1], [], []>} : vector<16x64xf32>, vector<64x128xf32>, vector<16x128xf32> -> vector<16x128xf32>
    %c0_157 = arith.constant 0 : index
    %c0_158 = arith.constant 0 : index
    %939 = vector.load %arg10[%c0_157, %c0_158] : memref<1x128xf32, #tpu.memory_space<vmem>>, vector<1x128xf32>
    %940 = vector.broadcast %939 : vector<1x128xf32> to vector<16x128xf32>
    %941 = arith.addf %938, %940 : vector<16x128xf32>
    %c0_159 = arith.constant 0 : index
    %c0_160 = arith.constant 0 : index
    %942 = vector.load %arg11[%c0_159, %c0_160] : memref<16x128xf32, #tpu.memory_space<vmem>>, vector<16x128xf32>
    tpu.vector_store %arg11[%c0_159, %c0_160], %941 {strides = array<i32>} : memref<16x128xf32, #tpu.memory_space<vmem>>, vector<16x128xf32>,
    return
  }
}

</mosaic_0001>

<llo_original>
// kernel: tpu_custom_call.1
$region0: #{tpu_custom_call.1}
  #allocation0 [shape = 'u32[]', space=smem, size = 0x4, offset = 0x4, fixed_abs, tag = 'smem constant byte address 0x4 - core index']
  #allocation1 [shape = 'u32[144,128]{1,0:T(1,128)}', space=vmem, size = 0x12000, scoped, tag = 'internal scratch']
  %s0 = inlined_call_operand.hbm [shape: f32[16,32], index: 0, kind: input, shape index: {}]
  %s1 = inlined_call_operand.hbm [shape: f32[32,256], index: 1, kind: input, shape index: {}]
  %s2 = inlined_call_operand.hbm [shape: f32[32,128], index: 2, kind: input, shape index: {}]
  %s3 = inlined_call_operand.hbm [shape: f32[32,128], index: 3, kind: input, shape index: {}]
  %s4 = inlined_call_operand.vmem [shape: f32[1,256], index: 4, kind: input, shape index: {}]
  %s5 = inlined_call_operand.hbm [shape: f32[64,256], index: 5, kind: input, shape index: {}]
  %s6 = inlined_call_operand.hbm [shape: f32[32,128], index: 6, kind: input, shape index: {}]
  %s7 = inlined_call_operand.hbm [shape: f32[32,128], index: 7, kind: input, shape index: {}]
  %s8 = inlined_call_operand.vmem [shape: f32[1,256], index: 8, kind: input, shape index: {}]
  %s9 = inlined_call_operand.hbm [shape: f32[64,128], index: 9, kind: input, shape index: {}]
  %s10 = inlined_call_operand.vmem [shape: f32[1,128], index: 10, kind: input, shape index: {}]
  %s11 = inlined_call_operand.hbm [shape: f32[16,128], index: 11, kind: output, shape index: {}]
  %s12 = sld [smem:[#allocation0]]
  $region86: #{tpu_custom_call.1} parent=0
    _
  %s14 = ssub.s32 1, %s12
  %s15 = scalar_select 0, %s14, %s12
  $region1: #{tpu_custom_call.1} parent=0
    #allocation2 [shape = 'u8[8192]{0}', space=vmem, size = 0x2000, scoped, tag = 'input window, operand 0, single buffered']
    #allocation3 [shape = 's32[1]{0}', space=sflag, size = 0x4, scoped, tag = 'scoped memory for tpu_custom_call.1']
    #allocation4 [shape = 's32[1]{0}', space=sflag, size = 0x4, scoped, tag = 'scoped memory for tpu_custom_call.1']
    #allocation5 [shape = 'u8[32768]{0}', space=vmem, size = 0x8000, scoped, tag = 'input window, operand 1, single buffered']
    #allocation6 [shape = 's32[1]{0}', space=sflag, size = 0x4, scoped, tag = 'scoped memory for tpu_custom_call.1']
    #allocation7 [shape = 'u8[16384]{0}', space=vmem, size = 0x4000, scoped, tag = 'input window, operand 2, single buffered']
    #allocation8 [shape = 'u8[16384]{0}', space=vmem, size = 0x4000, scoped, tag = 'input window, operand 3, single buffered']
    #allocation9 [shape = 's32[1]{0}', space=sflag, size = 0x4, scoped, tag = 'scoped memory for tpu_custom_call.1']
    #allocation10 [shape = 'u8[65536]{0}', space=vmem, size = 0x10000, scoped, tag = 'input window, operand 5, single buffered']
    #allocation11 [shape = 'u8[16384]{0}', space=vmem, size = 0x4000, scoped, tag = 'input window, operand 6, single buffered']
    #allocation12 [shape = 's32[1]{0}', space=sflag, size = 0x4, scoped, tag = 'scoped memory for tpu_custom_call.1']
    #allocation13 [shape = 'u8[16384]{0}', space=vmem, size = 0x4000, scoped, tag = 'input window, operand 7, single buffered']
    #allocation14 [shape = 'u8[32768]{0}', space=vmem, size = 0x8000, scoped, tag = 'input window, operand 9, single buffered']
    #allocation15 [shape = 's32[1]{0}', space=sflag, size = 0x4, scoped, tag = 'scoped memory for tpu_custom_call.1']
    #allocation16 [shape = 'u8[8192]{0}', space=vmem, size = 0x2000, scoped, tag = 'output window, operand 0, single buffered']
    %16 = vsyncpa [#allocation3], 0
    %17 = vsyncpa [#allocation6], 0
    %18 = vsyncpa [#allocation9], 0
    %19 = vsyncpa [#allocation12], 0
    %20 = vsyncpa [#allocation15], 0
    %21 = vsyncpa [#allocation4], 0
    // Predicated region
    $region2: #{tpu_custom_call.1} parent=1 // pred_check
      _
    $region3: #{tpu_custom_call.1} parent=1 // pred_check_branch
      %23 = sbr.rel (0) target = $region5
    $region4: #{tpu_custom_call.1} parent=1 // pred_region
      %s25 = ssub.s32 256, 256
      %26 = vsyncadd [#allocation3], %s25
      %s27 = sshll.u32 [#allocation2], 4
      %s28 = int_to_ptr.vmem [resolvable:$true] %s27
      %33 = dma.hbm_to_vmem [thread:$0]  %s0, 256, %s28, [#allocation3], 128, 128, 8
    $region5: #{tpu_custom_call.1} parent=1 // pred_fallthru
      _
    // Predicated region
    $region6: #{tpu_custom_call.1} parent=1 // pred_check
      _
    $region7: #{tpu_custom_call.1} parent=1 // pred_check_branch
      %35 = sbr.rel (0) target = $region9
    $region8: #{tpu_custom_call.1} parent=1 // pred_region
      %s37 = ssub.s32 1024, 1024
      %38 = vsyncadd [#allocation6], %s37
      %s39 = sshll.u32 [#allocation5], 4
      %s40 = int_to_ptr.vmem [resolvable:$true] %s39
      %45 = dma.hbm_to_vmem [thread:$0]  %s1, 1024, %s40, [#allocation6], 256, 256, 16
    $region9: #{tpu_custom_call.1} parent=1 // pred_fallthru
      _
    // Predicated region
    $region10: #{tpu_custom_call.1} parent=1 // pred_check
      _
    $region11: #{tpu_custom_call.1} parent=1 // pred_check_branch
      %47 = sbr.rel (0) target = $region13
    $region12: #{tpu_custom_call.1} parent=1 // pred_region
      %s49 = ssub.s32 512, 512
      %50 = vsyncadd [#allocation6], %s49
      %s51 = sshll.u32 [#allocation7], 4
      %s52 = int_to_ptr.vmem [resolvable:$true] %s51
      %57 = dma.hbm_to_vmem [thread:$0]  %s2, 512, %s52, [#allocation6], 128, 128, 8
    $region13: #{tpu_custom_call.1} parent=1 // pred_fallthru
      _
    // Predicated region
    $region14: #{tpu_custom_call.1} parent=1 // pred_check
      _
    $region15: #{tpu_custom_call.1} parent=1 // pred_check_branch
      %59 = sbr.rel (0) target = $region17
    $region16: #{tpu_custom_call.1} parent=1 // pred_region
      %s61 = ssub.s32 512, 512
      %62 = vsyncadd [#allocation9], %s61
      %s63 = sshll.u32 [#allocation8], 4
      %s64 = int_to_ptr.vmem [resolvable:$true] %s63
      %69 = dma.hbm_to_vmem [thread:$0]  %s3, 512, %s64, [#allocation9], 128, 128, 8
    $region17: #{tpu_custom_call.1} parent=1 // pred_fallthru
      _
    // Predicated region
    $region18: #{tpu_custom_call.1} parent=1 // pred_check
      _
    $region19: #{tpu_custom_call.1} parent=1 // pred_check_branch
      %71 = sbr.rel (0) target = $region21
    $region20: #{tpu_custom_call.1} parent=1 // pred_region
      _
    $region21: #{tpu_custom_call.1} parent=1 // pred_fallthru
      _
    // Predicated region
    $region22: #{tpu_custom_call.1} parent=1 // pred_check
      _
    $region23: #{tpu_custom_call.1} parent=1 // pred_check_branch
      %73 = sbr.rel (0) target = $region25
    $region24: #{tpu_custom_call.1} parent=1 // pred_region
      %s75 = ssub.s32 2048, 2048
      %76 = vsyncadd [#allocation9], %s75
      %s77 = sshll.u32 [#allocation10], 4
      %s78 = int_to_ptr.vmem [resolvable:$true] %s77
      %83 = dma.hbm_to_vmem [thread:$0]  %s5, 2048, %s78, [#allocation9], 256, 256, 16
    $region25: #{tpu_custom_call.1} parent=1 // pred_fallthru
      _
    // Predicated region
    $region26: #{tpu_custom_call.1} parent=1 // pred_check
      _
    $region27: #{tpu_custom_call.1} parent=1 // pred_check_branch
      %85 = sbr.rel (0) target = $region29
    $region28: #{tpu_custom_call.1} parent=1 // pred_region
      %s87 = ssub.s32 512, 512
      %88 = vsyncadd [#allocation12], %s87
      %s89 = sshll.u32 [#allocation11], 4
      %s90 = int_to_ptr.vmem [resolvable:$true] %s89
      %95 = dma.hbm_to_vmem [thread:$0]  %s6, 512, %s90, [#allocation12], 128, 128, 8
    $region29: #{tpu_custom_call.1} parent=1 // pred_fallthru
      _
    // Predicated region
    $region30: #{tpu_custom_call.1} parent=1 // pred_check
      _
    $region31: #{tpu_custom_call.1} parent=1 // pred_check_branch
      %97 = sbr.rel (0) target = $region33
    $region32: #{tpu_custom_call.1} parent=1 // pred_region
      %s99 = ssub.s32 512, 512
      %100 = vsyncadd [#allocation12], %s99
      %s101 = sshll.u32 [#allocation13], 4
      %s102 = int_to_ptr.vmem [resolvable:$true] %s101
      %107 = dma.hbm_to_vmem [thread:$0]  %s7, 512, %s102, [#allocation12], 128, 128, 8
    $region33: #{tpu_custom_call.1} parent=1 // pred_fallthru
      _
    // Predicated region
    $region34: #{tpu_custom_call.1} parent=1 // pred_check
      _
    $region35: #{tpu_custom_call.1} parent=1 // pred_check_branch
      %109 = sbr.rel (0) target = $region37
    $region36: #{tpu_custom_call.1} parent=1 // pred_region
      _
    $region37: #{tpu_custom_call.1} parent=1 // pred_fallthru
      _
    // Predicated region
    $region38: #{tpu_custom_call.1} parent=1 // pred_check
      _
    $region39: #{tpu_custom_call.1} parent=1 // pred_check_branch
      %111 = sbr.rel (0) target = $region41
    $region40: #{tpu_custom_call.1} parent=1 // pred_region
      %s113 = ssub.s32 1024, 1024
      %114 = vsyncadd [#allocation15], %s113
      %s115 = sshll.u32 [#allocation14], 4
      %s116 = int_to_ptr.vmem [resolvable:$true] %s115
      %121 = dma.hbm_to_vmem [thread:$0]  %s9, 1024, %s116, [#allocation15], 128, 128, 8
    $region41: #{tpu_custom_call.1} parent=1 // pred_fallthru
      _
    // Predicated region
    $region42: #{tpu_custom_call.1} parent=1 // pred_check
      _
    $region43: #{tpu_custom_call.1} parent=1 // pred_check_branch
      %123 = sbr.rel (0) target = $region45
    $region44: #{tpu_custom_call.1} parent=1 // pred_region
      _
    $region45: #{tpu_custom_call.1} parent=1 // pred_fallthru
      _
    // Predicated region
    $region46: #{tpu_custom_call.1} parent=1 // pred_check
      _
    $region47: #{tpu_custom_call.1} parent=1 // pred_check_branch
      %125 = sbr.rel (0) target = $region49
    $region48: #{tpu_custom_call.1} parent=1 // pred_region
      %126 = dma.done [#allocation3], 256
    $region49: #{tpu_custom_call.1} parent=1 // pred_fallthru
      _
    // Predicated region
    $region50: #{tpu_custom_call.1} parent=1 // pred_check
      _
    $region51: #{tpu_custom_call.1} parent=1 // pred_check_branch
      %128 = sbr.rel (0) target = $region53
    $region52: #{tpu_custom_call.1} parent=1 // pred_region
      %129 = dma.done [#allocation6], 1024
    $region53: #{tpu_custom_call.1} parent=1 // pred_fallthru
      _
    // Predicated region
    $region54: #{tpu_custom_call.1} parent=1 // pred_check
      _
    $region55: #{tpu_custom_call.1} parent=1 // pred_check_branch
      %131 = sbr.rel (0) target = $region57
    $region56: #{tpu_custom_call.1} parent=1 // pred_region
      %132 = dma.done [#allocation6], 512
    $region57: #{tpu_custom_call.1} parent=1 // pred_fallthru
      _
    // Predicated region
    $region58: #{tpu_custom_call.1} parent=1 // pred_check
      _
    $region59: #{tpu_custom_call.1} parent=1 // pred_check_branch
      %134 = sbr.rel (0) target = $region61
    $region60: #{tpu_custom_call.1} parent=1 // pred_region
      %135 = dma.done [#allocation9], 512
    $region61: #{tpu_custom_call.1} parent=1 // pred_fallthru
      _
    // Predicated region
    $region62: #{tpu_custom_call.1} parent=1 // pred_check
      _
    $region63: #{tpu_custom_call.1} parent=1 // pred_check_branch
      %137 = sbr.rel (0) target = $region65
    $region64: #{tpu_custom_call.1} parent=1 // pred_region
      %138 = dma.done [#allocation9], 2048
    $region65: #{tpu_custom_call.1} parent=1 // pred_fallthru
      _
    // Predicated region
    $region66: #{tpu_custom_call.1} parent=1 // pred_check
      _
    $region67: #{tpu_custom_call.1} parent=1 // pred_check_branch
      %140 = sbr.rel (0) target = $region69
    $region68: #{tpu_custom_call.1} parent=1 // pred_region
      %141 = dma.done [#allocation12], 512
    $region69: #{tpu_custom_call.1} parent=1 // pred_fallthru
      _
    // Predicated region
    $region70: #{tpu_custom_call.1} parent=1 // pred_check
      _
    $region71: #{tpu_custom_call.1} parent=1 // pred_check_branch
      %143 = sbr.rel (0) target = $region73
    $region72: #{tpu_custom_call.1} parent=1 // pred_region
      %144 = dma.done [#allocation12], 512
    $region73: #{tpu_custom_call.1} parent=1 // pred_fallthru
      _
    // Predicated region
    $region74: #{tpu_custom_call.1} parent=1 // pred_check
      _
    $region75: #{tpu_custom_call.1} parent=1 // pred_check_branch
      %146 = sbr.rel (0) target = $region77
    $region76: #{tpu_custom_call.1} parent=1 // pred_region
      %147 = dma.done [#allocation15], 1024
    $region77: #{tpu_custom_call.1} parent=1 // pred_fallthru
      _
    %v148 = vld [vmem:[#allocation2] sm:$0xff]
    %v149 = vld [vmem:[#allocation2 + $0x8] sm:$0xff]
    %v150 = vld [vmem:[#allocation5] sm:$0xff]
    %v151 = vld [vmem:[#allocation5 + $0x8] sm:$0xff]
    %v152 = vld [vmem:[#allocation5 + $0x10] sm:$0xff]
    %v153 = vld [vmem:[#allocation5 + $0x18] sm:$0xff]
    %v154 = vld [vmem:[#allocation5 + $0x20] sm:$0xff]
    %v155 = vld [vmem:[#allocation5 + $0x28] sm:$0xff]
    %v156 = vld [vmem:[#allocation5 + $0x30] sm:$0xff]
    %v157 = vld [vmem:[#allocation5 + $0x38] sm:$0xff]
    %v158 = vld [vmem:[%s4] sm:$0x3]
    %v160 = vlaneseq
    %v161 = vshrl.u32 %v160, 7
    %v162 = vsub.s32 0, %v161
    %v163 = vrot.slane %v158, %v162
    %v164 = vlaneseq
    %v165 = vshrl.u32 %v164, 7
    %v166 = vsub.s32 1, %v165
    %v167 = vrot.slane %v158, %v166
    %vm170 = vcmask 261120
    %v172 = vsel %vm170, %v148, 0
    %v175 = vsel %vm170, %v149, 0
    %177 = vmatprep.subr.mxu0 %v151
    %178 = vmatpush1.msra.mxu0 %v150
    %179 = vmatprep.subr.mxu0 %v153
    %180 = vmatpush1.msra.mxu0 %v152
    %181 = vmatprep.subr.mxu0 %v155
    %182 = vmatpush1.msra.mxu0 %v154
    %183 = vmatprep.subr.mxu0 %v157
    %184 = vmatpush1.msra.mxu0 %v156
    %185 = vmatprep.subr.mxu0 0.0
    %186 = vmatpush1.msra.mxu0 0.0
    %187 = vmatprep.subr.mxu0 0.0
    %188 = vmatpush1.msra.mxu0 0.0
    %189 = vmatprep.subr.mxu0 0.0
    %190 = vmatpush1.msra.mxu0 0.0
    %191 = vmatprep.subr.mxu0 0.0
    %192 = vmatpush1.msra.mxu0 0.0
    %193 = vmatprep.subr.mxu0 0.0
    %194 = vmatpush1.msra.mxu0 0.0
    %195 = vmatprep.subr.mxu0 0.0
    %196 = vmatpush1.msra.mxu0 0.0
    %197 = vmatprep.subr.mxu0 0.0
    %198 = vmatpush1.msra.mxu0 0.0
    %199 = vmatprep.subr.mxu0 0.0
    %200 = vmatpush1.msra.mxu0 0.0
    %201 = vmatprep.subr.mxu0 0.0
    %202 = vmatpush1.msra.mxu0 0.0
    %203 = vmatprep.subr.mxu0 0.0
    %204 = vmatpush1.msra.mxu0 0.0
    %205 = vmatprep.subr.mxu0 0.0
    %206 = vmatpush1.msra.mxu0 0.0
    %207 = vmatprep.subr.mxu0 0.0
    %208 = vmatpush1.msra.mxu0 0.0
    %209 = vmatprep.subr.mxu0 0.0
    %210 = vmatpush1.msra.mxu0 0.0
    %211 = vmatprep.subr.mxu0 0.0
    %212 = vmatpush1.msra.mxu0 0.0
    %213 = vmatprep.subr.mxu0 0.0
    %214 = vmatpush1.msra.mxu0 0.0
    %215 = vmatprep.subr.mxu0 0.0
    %216 = vmatpush1.msra.mxu0 0.0
    %217 = vmatprep.subr.mxu0 0.0
    %218 = vmatpush1.msra.mxu0 0.0
    %219 = vmatprep.subr.mxu0 0.0
    %220 = vmatpush1.msra.mxu0 0.0
    %221 = vmatprep.subr.mxu0 0.0
    %222 = vmatpush1.msra.mxu0 0.0
    %223 = vmatprep.subr.mxu0 0.0
    %224 = vmatpush1.msra.mxu0 0.0
    %225 = vmatprep.subr.mxu0 0.0
    %226 = vmatpush1.msra.mxu0 0.0
    %227 = vmatprep.subr.mxu0 0.0
    %228 = vmatpush1.msra.mxu0 0.0
    %229 = vmatprep.subr.mxu0 0.0
    %230 = vmatpush1.msra.mxu0 0.0
    %231 = vmatprep.subr.mxu0 0.0
    %232 = vmatpush1.msra.mxu0 0.0
    %233 = vmatprep.subr.mxu0 0.0
    %234 = vmatpush1.msra.mxu0 0.0
    %235 = vmatprep.subr.mxu0 0.0
    %236 = vmatpush1.msra.mxu0 0.0
    %237 = vmatprep.subr.mxu0 0.0
    %238 = vmatpush1.msra.mxu0 0.0
    %239 = vmatprep.subr.mxu0 0.0
    %240 = vmatpush1.msra.mxu0 0.0
    %241 = vmatprep.mubr.f32.mxu0 0.0
    %242 = vmatmul.mubr.f32.gmra.mrb[0].mxu0 %v172
    %v243 = vpop.f32.mrb[0].mxu0
    %v244 = vadd.f32 %v163, %v243
    %v245 = vpop.f32.mrb[0].mxu0
    %v246 = vadd.f32 %v167, %v245
    %247 = vmatprep.mubr.f32.mxu0 0.0
    %248 = vmatmul.mubr.f32.gmra.mrb[0].mxu0 %v175
    %v249 = vpop.f32.mrb[0].mxu0
    %v250 = vadd.f32 %v163, %v249
    %v251 = vpop.f32.mrb[0].mxu0
    %v252 = vadd.f32 %v167, %v251
    %253 = vdwg.mxu0
    %v254 = vld [vmem:[#allocation7] sm:$0xff]
    %v255 = vld [vmem:[#allocation7 + $0x8] sm:$0xff]
    %v256 = vld [vmem:[#allocation7 + $0x10] sm:$0xff]
    %v257 = vld [vmem:[#allocation7 + $0x18] sm:$0xff]
    %v258 = vld [vmem:[#allocation8] sm:$0xff]
    %v259 = vld [vmem:[#allocation8 + $0x8] sm:$0xff]
    %v260 = vld [vmem:[#allocation8 + $0x10] sm:$0xff]
    %v261 = vld [vmem:[#allocation8 + $0x18] sm:$0xff]
    %v263 = vsel %vm170, 0.0, 0
    %265 = vmatprep.subr.mxu0 0.0
    %266 = vmatpush1.msra.mxu0 %v254
    %267 = vmatprep.subr.mxu0 0.0
    %268 = vmatpush1.msra.mxu0 %v255
    %269 = vmatprep.subr.mxu0 0.0
    %270 = vmatpush1.msra.mxu0 %v256
    %271 = vmatprep.subr.mxu0 0.0
    %272 = vmatpush1.msra.mxu0 %v257
    %273 = vmatprep.subr.mxu0 0.0
    %274 = vmatpush1.msra.mxu0 0.0
    %275 = vmatprep.subr.mxu0 0.0
    %276 = vmatpush1.msra.mxu0 0.0
    %277 = vmatprep.subr.mxu0 0.0
    %278 = vmatpush1.msra.mxu0 0.0
    %279 = vmatprep.subr.mxu0 0.0
    %280 = vmatpush1.msra.mxu0 0.0
    %281 = vmatprep.subr.mxu0 0.0
    %282 = vmatpush1.msra.mxu0 0.0
    %283 = vmatprep.subr.mxu0 0.0
    %284 = vmatpush1.msra.mxu0 0.0
    %285 = vmatprep.subr.mxu0 0.0
    %286 = vmatpush1.msra.mxu0 0.0
    %287 = vmatprep.subr.mxu0 0.0
    %288 = vmatpush1.msra.mxu0 0.0
    %289 = vmatprep.subr.mxu0 0.0
    %290 = vmatpush1.msra.mxu0 0.0
    %291 = vmatprep.subr.mxu0 0.0
    %292 = vmatpush1.msra.mxu0 0.0
    %293 = vmatprep.subr.mxu0 0.0
    %294 = vmatpush1.msra.mxu0 0.0
    %295 = vmatprep.subr.mxu0 0.0
    %296 = vmatpush1.msra.mxu0 0.0
    %297 = vmatprep.subr.mxu0 0.0
    %298 = vmatpush1.msra.mxu0 0.0
    %299 = vmatprep.subr.mxu0 0.0
    %300 = vmatpush1.msra.mxu0 0.0
    %301 = vmatprep.subr.mxu0 0.0
    %302 = vmatpush1.msra.mxu0 0.0
    %303 = vmatprep.subr.mxu0 0.0
    %304 = vmatpush1.msra.mxu0 0.0
    %305 = vmatprep.subr.mxu0 0.0
    %306 = vmatpush1.msra.mxu0 0.0
    %307 = vmatprep.subr.mxu0 0.0
    %308 = vmatpush1.msra.mxu0 0.0
    %309 = vmatprep.subr.mxu0 0.0
    %310 = vmatpush1.msra.mxu0 0.0
    %311 = vmatprep.subr.mxu0 0.0
    %312 = vmatpush1.msra.mxu0 0.0
    %313 = vmatprep.subr.mxu0 0.0
    %314 = vmatpush1.msra.mxu0 0.0
    %315 = vmatprep.subr.mxu0 0.0
    %316 = vmatpush1.msra.mxu0 0.0
    %317 = vmatprep.subr.mxu0 0.0
    %318 = vmatpush1.msra.mxu0 0.0
    %319 = vmatprep.subr.mxu0 0.0
    %320 = vmatpush1.msra.mxu0 0.0
    %321 = vmatprep.subr.mxu0 0.0
    %322 = vmatpush1.msra.mxu0 0.0
    %323 = vmatprep.subr.mxu0 0.0
    %324 = vmatpush1.msra.mxu0 0.0
    %325 = vmatprep.subr.mxu0 0.0
    %326 = vmatpush1.msra.mxu0 0.0
    %327 = vmatprep.subr.mxu0 0.0
    %328 = vmatpush1.msra.mxu0 0.0
    %329 = vmatprep.mubr.f32.mxu0 0.0
    %330 = vmatmul.mubr.f32.gmra.mrb[0].mxu0 %v263
    %v331 = vpop.f32.mrb[0].mxu0
    %v332 = vadd.f32 0.0, %v331
    %v333 = vpop.f32.mrb[0].mxu0
    %334 = vdwg.mxu0
    %v335 = vadd.f32 %v244, %v332
    %336 = vmatprep.subr.mxu0 0.0
    %337 = vmatpush1.msra.mxu0 %v258
    %338 = vmatprep.subr.mxu0 0.0
    %339 = vmatpush1.msra.mxu0 %v259
    %340 = vmatprep.subr.mxu0 0.0
    %341 = vmatpush1.msra.mxu0 %v260
    %342 = vmatprep.subr.mxu0 0.0
    %343 = vmatpush1.msra.mxu0 %v261
    %344 = vmatprep.subr.mxu0 0.0
    %345 = vmatpush1.msra.mxu0 0.0
    %346 = vmatprep.subr.mxu0 0.0
    %347 = vmatpush1.msra.mxu0 0.0
    %348 = vmatprep.subr.mxu0 0.0
    %349 = vmatpush1.msra.mxu0 0.0
    %350 = vmatprep.subr.mxu0 0.0
    %351 = vmatpush1.msra.mxu0 0.0
    %352 = vmatprep.subr.mxu0 0.0
    %353 = vmatpush1.msra.mxu0 0.0
    %354 = vmatprep.subr.mxu0 0.0
    %355 = vmatpush1.msra.mxu0 0.0
    %356 = vmatprep.subr.mxu0 0.0
    %357 = vmatpush1.msra.mxu0 0.0
    %358 = vmatprep.subr.mxu0 0.0
    %359 = vmatpush1.msra.mxu0 0.0
    %360 = vmatprep.subr.mxu0 0.0
    %361 = vmatpush1.msra.mxu0 0.0
    %362 = vmatprep.subr.mxu0 0.0
    %363 = vmatpush1.msra.mxu0 0.0
    %364 = vmatprep.subr.mxu0 0.0
    %365 = vmatpush1.msra.mxu0 0.0
    %366 = vmatprep.subr.mxu0 0.0
    %367 = vmatpush1.msra.mxu0 0.0
    %368 = vmatprep.subr.mxu0 0.0
    %369 = vmatpush1.msra.mxu0 0.0
    %370 = vmatprep.subr.mxu0 0.0
    %371 = vmatpush1.msra.mxu0 0.0
    %372 = vmatprep.subr.mxu0 0.0
    %373 = vmatpush1.msra.mxu0 0.0
    %374 = vmatprep.subr.mxu0 0.0
    %375 = vmatpush1.msra.mxu0 0.0
    %376 = vmatprep.subr.mxu0 0.0
    %377 = vmatpush1.msra.mxu0 0.0
    %378 = vmatprep.subr.mxu0 0.0
    %379 = vmatpush1.msra.mxu0 0.0
    %380 = vmatprep.subr.mxu0 0.0
    %381 = vmatpush1.msra.mxu0 0.0
    %382 = vmatprep.subr.mxu0 0.0
    %383 = vmatpush1.msra.mxu0 0.0
    %384 = vmatprep.subr.mxu0 0.0
    %385 = vmatpush1.msra.mxu0 0.0
    %386 = vmatprep.subr.mxu0 0.0
    %387 = vmatpush1.msra.mxu0 0.0
    %388 = vmatprep.subr.mxu0 0.0
    %389 = vmatpush1.msra.mxu0 0.0
    %390 = vmatprep.subr.mxu0 0.0
    %391 = vmatpush1.msra.mxu0 0.0
    %392 = vmatprep.subr.mxu0 0.0
    %393 = vmatpush1.msra.mxu0 0.0
    %394 = vmatprep.subr.mxu0 0.0
    %395 = vmatpush1.msra.mxu0 0.0
    %396 = vmatprep.subr.mxu0 0.0
    %397 = vmatpush1.msra.mxu0 0.0
    %398 = vmatprep.subr.mxu0 0.0
    %399 = vmatpush1.msra.mxu0 0.0
    %400 = vmatprep.mubr.f32.mxu0 0.0
    %401 = vmatmul.mubr.f32.gmra.mrb[0].mxu0 %v263
    %v402 = vpop.f32.mrb[0].mxu0
    %v403 = vadd.f32 0.0, %v402
    %v404 = vpop.f32.mrb[0].mxu0
    %405 = vdwg.mxu0
    %v407 = vrot.slane %v403, 2
    %v409 = vadd.f32 %v252, %v407
    %v410 = vxor.u32 %v335, 2147483648
    %v411 = vmul.f32 %v410, 1.442695
    %v412 = vpow.pop %v411
    %v413 = vadd.f32 %v412, 1.0
    %v414 = vrcp.pop %v413
    %v415 = vmul.f32 1.0, %v414
    %v416 = vtanh.pop %v335
    %v417 = vmul.f32 %v415, 0.0
    %419 = vrot.lane.b32.xlu0 %v416, 64
    %v420 = vpop.permute.xlu0 %419
    %v422 = vmul.f32 %v415, %v420
    %424 = vrot.lane.b32.xlu0 %v422, 32
    %v425 = vpop.permute.xlu0 %424
    %v427 = vadd.f32 %v417, %v425
    %v428 = vtanh.pop %v427
    %430 = vrot.lane.b32.xlu0 %v428, 64
    %v431 = vpop.permute.xlu0 %430
    %v433 = vmul.f32 %v415, %v431
    %v434 = vxor.u32 %v409, 2147483648
    %v435 = vmul.f32 %v434, 1.442695
    %v436 = vpow.pop %v435
    %v437 = vadd.f32 %v436, 1.0
    %v438 = vrcp.pop %v437
    %v439 = vmul.f32 1.0, %v438
    %v440 = vtanh.pop %v409
    %v441 = vmul.f32 %v439, 0.0
    %443 = vrot.lane.b32.xlu0 %v440, 64
    %v444 = vpop.permute.xlu0 %443
    %v446 = vmul.f32 %v439, %v444
    %448 = vrot.lane.b32.xlu0 %v446, 32
    %v449 = vpop.permute.xlu0 %448
    %v451 = vadd.f32 %v441, %v449
    %v452 = vtanh.pop %v451
    %454 = vrot.lane.b32.xlu0 %v452, 64
    %v455 = vpop.permute.xlu0 %454
    %v457 = vmul.f32 %v439, %v455
    %459 = vrot.lane.b32.xlu0 %v433, 32
    %v460 = vpop.permute.xlu0 %459
    %v461 = vsel %vm170, %v460, 0
    %463 = vmatprep.subr.mxu0 0.0
    %464 = vmatpush1.msra.mxu0 %v254
    %465 = vmatprep.subr.mxu0 0.0
    %466 = vmatpush1.msra.mxu0 %v255
    %467 = vmatprep.subr.mxu0 0.0
    %468 = vmatpush1.msra.mxu0 %v256
    %469 = vmatprep.subr.mxu0 0.0
    %470 = vmatpush1.msra.mxu0 %v257
    %471 = vmatprep.subr.mxu0 0.0
    %472 = vmatpush1.msra.mxu0 0.0
    %473 = vmatprep.subr.mxu0 0.0
    %474 = vmatpush1.msra.mxu0 0.0
    %475 = vmatprep.subr.mxu0 0.0
    %476 = vmatpush1.msra.mxu0 0.0
    %477 = vmatprep.subr.mxu0 0.0
    %478 = vmatpush1.msra.mxu0 0.0
    %479 = vmatprep.subr.mxu0 0.0
    %480 = vmatpush1.msra.mxu0 0.0
    %481 = vmatprep.subr.mxu0 0.0
    %482 = vmatpush1.msra.mxu0 0.0
    %483 = vmatprep.subr.mxu0 0.0
    %484 = vmatpush1.msra.mxu0 0.0
    %485 = vmatprep.subr.mxu0 0.0
    %486 = vmatpush1.msra.mxu0 0.0
    %487 = vmatprep.subr.mxu0 0.0
    %488 = vmatpush1.msra.mxu0 0.0
    %489 = vmatprep.subr.mxu0 0.0
    %490 = vmatpush1.msra.mxu0 0.0
    %491 = vmatprep.subr.mxu0 0.0
    %492 = vmatpush1.msra.mxu0 0.0
    %493 = vmatprep.subr.mxu0 0.0
    %494 = vmatpush1.msra.mxu0 0.0
    %495 = vmatprep.subr.mxu0 0.0
    %496 = vmatpush1.msra.mxu0 0.0
    %497 = vmatprep.subr.mxu0 0.0
    %498 = vmatpush1.msra.mxu0 0.0
    %499 = vmatprep.subr.mxu0 0.0
    %500 = vmatpush1.msra.mxu0 0.0
    %501 = vmatprep.subr.mxu0 0.0
    %502 = vmatpush1.msra.mxu0 0.0
    %503 = vmatprep.subr.mxu0 0.0
    %504 = vmatpush1.msra.mxu0 0.0
    %505 = vmatprep.subr.mxu0 0.0
    %506 = vmatpush1.msra.mxu0 0.0
    %507 = vmatprep.subr.mxu0 0.0
    %508 = vmatpush1.msra.mxu0 0.0
    %509 = vmatprep.subr.mxu0 0.0
    %510 = vmatpush1.msra.mxu0 0.0
    %511 = vmatprep.subr.mxu0 0.0
    %512 = vmatpush1.msra.mxu0 0.0
    %513 = vmatprep.subr.mxu0 0.0
    %514 = vmatpush1.msra.mxu0 0.0
    %515 = vmatprep.subr.mxu0 0.0
    %516 = vmatpush1.msra.mxu0 0.0
    %517 = vmatprep.subr.mxu0 0.0
    %518 = vmatpush1.msra.mxu0 0.0
    %519 = vmatprep.subr.mxu0 0.0
    %520 = vmatpush1.msra.mxu0 0.0
    %521 = vmatprep.subr.mxu0 0.0
    %522 = vmatpush1.msra.mxu0 0.0
    %523 = vmatprep.subr.mxu0 0.0
    %524 = vmatpush1.msra.mxu0 0.0
    %525 = vmatprep.subr.mxu0 0.0
    %526 = vmatpush1.msra.mxu0 0.0
    %527 = vmatprep.mubr.f32.mxu0 0.0
    %528 = vmatmul.mubr.f32.gmra.mrb[0].mxu0 %v461
    %v529 = vpop.f32.mrb[0].mxu0
    %v530 = vadd.f32 0.0, %v529
    %v531 = vpop.f32.mrb[0].mxu0
    %532 = vdwg.mxu0
    %v534 = vrot.slane %v530, 6
    %v536 = vadd.f32 %v244, %v534
    %v538 = vrot.slane %v457, 6
    %539 = vrot.lane.b32.xlu0 %v538, 32
    %v540 = vpop.permute.xlu0 %539
    %v541 = vsel %vm170, %v540, 0
    %543 = vmatprep.subr.mxu0 0.0
    %544 = vmatpush1.msra.mxu0 %v258
    %545 = vmatprep.subr.mxu0 0.0
    %546 = vmatpush1.msra.mxu0 %v259
    %547 = vmatprep.subr.mxu0 0.0
    %548 = vmatpush1.msra.mxu0 %v260
    %549 = vmatprep.subr.mxu0 0.0
    %550 = vmatpush1.msra.mxu0 %v261
    %551 = vmatprep.subr.mxu0 0.0
    %552 = vmatpush1.msra.mxu0 0.0
    %553 = vmatprep.subr.mxu0 0.0
    %554 = vmatpush1.msra.mxu0 0.0
    %555 = vmatprep.subr.mxu0 0.0
    %556 = vmatpush1.msra.mxu0 0.0
    %557 = vmatprep.subr.mxu0 0.0
    %558 = vmatpush1.msra.mxu0 0.0
    %559 = vmatprep.subr.mxu0 0.0
    %560 = vmatpush1.msra.mxu0 0.0
    %561 = vmatprep.subr.mxu0 0.0
    %562 = vmatpush1.msra.mxu0 0.0
    %563 = vmatprep.subr.mxu0 0.0
    %564 = vmatpush1.msra.mxu0 0.0
    %565 = vmatprep.subr.mxu0 0.0
    %566 = vmatpush1.msra.mxu0 0.0
    %567 = vmatprep.subr.mxu0 0.0
    %568 = vmatpush1.msra.mxu0 0.0
    %569 = vmatprep.subr.mxu0 0.0
    %570 = vmatpush1.msra.mxu0 0.0
    %571 = vmatprep.subr.mxu0 0.0
    %572 = vmatpush1.msra.mxu0 0.0
    %573 = vmatprep.subr.mxu0 0.0
    %574 = vmatpush1.msra.mxu0 0.0
    %575 = vmatprep.subr.mxu0 0.0
    %576 = vmatpush1.msra.mxu0 0.0
    %577 = vmatprep.subr.mxu0 0.0
    %578 = vmatpush1.msra.mxu0 0.0
    %579 = vmatprep.subr.mxu0 0.0
    %580 = vmatpush1.msra.mxu0 0.0
    %581 = vmatprep.subr.mxu0 0.0
    %582 = vmatpush1.msra.mxu0 0.0
    %583 = vmatprep.subr.mxu0 0.0
    %584 = vmatpush1.msra.mxu0 0.0
    %585 = vmatprep.subr.mxu0 0.0
    %586 = vmatpush1.msra.mxu0 0.0
    %587 = vmatprep.subr.mxu0 0.0
    %588 = vmatpush1.msra.mxu0 0.0
    %589 = vmatprep.subr.mxu0 0.0
    %590 = vmatpush1.msra.mxu0 0.0
    %591 = vmatprep.subr.mxu0 0.0
    %592 = vmatpush1.msra.mxu0 0.0
    %593 = vmatprep.subr.mxu0 0.0
    %594 = vmatpush1.msra.mxu0 0.0
    %595 = vmatprep.subr.mxu0 0.0
    %596 = vmatpush1.msra.mxu0 0.0
    %597 = vmatprep.subr.mxu0 0.0
    %598 = vmatpush1.msra.mxu0 0.0
    %599 = vmatprep.subr.mxu0 0.0
    %600 = vmatpush1.msra.mxu0 0.0
    %601 = vmatprep.subr.mxu0 0.0
    %602 = vmatpush1.msra.mxu0 0.0
    %603 = vmatprep.subr.mxu0 0.0
    %604 = vmatpush1.msra.mxu0 0.0
    %605 = vmatprep.subr.mxu0 0.0
    %606 = vmatpush1.msra.mxu0 0.0
    %607 = vmatprep.mubr.f32.mxu0 0.0
    %608 = vmatmul.mubr.f32.gmra.mrb[0].mxu0 %v541
    %v609 = vpop.f32.mrb[0].mxu0
    %v610 = vadd.f32 0.0, %v609
    %v611 = vpop.f32.mrb[0].mxu0
    %612 = vdwg.mxu0
    %v614 = vrot.slane %v610, 4
    %v616 = vadd.f32 %v252, %v614
    %v617 = vxor.u32 %v536, 2147483648
    %v618 = vmul.f32 %v617, 1.442695
    %v619 = vpow.pop %v618
    %v620 = vadd.f32 %v619, 1.0
    %v621 = vrcp.pop %v620
    %v622 = vmul.f32 1.0, %v621
    %v623 = vtanh.pop %v536
    %v625 = vrot.slane %v427, 6
    %v627 = vmul.f32 %v622, %v625
    %629 = vrot.lane.b32.xlu0 %v623, 64
    %v630 = vpop.permute.xlu0 %629
    %v632 = vmul.f32 %v622, %v630
    %634 = vrot.lane.b32.xlu0 %v632, 32
    %v635 = vpop.permute.xlu0 %634
    %v637 = vadd.f32 %v627, %v635
    %v638 = vtanh.pop %v637
    %640 = vrot.lane.b32.xlu0 %v638, 64
    %v641 = vpop.permute.xlu0 %640
    %v643 = vmul.f32 %v622, %v641
    %v644 = vxor.u32 %v616, 2147483648
    %v645 = vmul.f32 %v644, 1.442695
    %v646 = vpow.pop %v645
    %v647 = vadd.f32 %v646, 1.0
    %v648 = vrcp.pop %v647
    %v649 = vmul.f32 1.0, %v648
    %v650 = vtanh.pop %v616
    %v652 = vrot.slane %v451, 2
    %v654 = vmul.f32 %v649, %v652
    %656 = vrot.lane.b32.xlu0 %v650, 64
    %v657 = vpop.permute.xlu0 %656
    %v659 = vmul.f32 %v649, %v657
    %661 = vrot.lane.b32.xlu0 %v659, 32
    %v662 = vpop.permute.xlu0 %661
    %v664 = vadd.f32 %v654, %v662
    %v665 = vtanh.pop %v664
    %667 = vrot.lane.b32.xlu0 %v665, 64
    %v668 = vpop.permute.xlu0 %667
    %v670 = vmul.f32 %v649, %v668
    %v672 = vrot.slane %v643, 2
    %673 = vrot.lane.b32.xlu0 %v672, 32
    %v674 = vpop.permute.xlu0 %673
    %v675 = vsel %vm170, %v674, 0
    %677 = vmatprep.subr.mxu0 0.0
    %678 = vmatpush1.msra.mxu0 %v254
    %679 = vmatprep.subr.mxu0 0.0
    %680 = vmatpush1.msra.mxu0 %v255
    %681 = vmatprep.subr.mxu0 0.0
    %682 = vmatpush1.msra.mxu0 %v256
    %683 = vmatprep.subr.mxu0 0.0
    %684 = vmatpush1.msra.mxu0 %v257
    %685 = vmatprep.subr.mxu0 0.0
    %686 = vmatpush1.msra.mxu0 0.0
    %687 = vmatprep.subr.mxu0 0.0
    %688 = vmatpush1.msra.mxu0 0.0
    %689 = vmatprep.subr.mxu0 0.0
    %690 = vmatpush1.msra.mxu0 0.0
    %691 = vmatprep.subr.mxu0 0.0
    %692 = vmatpush1.msra.mxu0 0.0
    %693 = vmatprep.subr.mxu0 0.0
    %694 = vmatpush1.msra.mxu0 0.0
    %695 = vmatprep.subr.mxu0 0.0
    %696 = vmatpush1.msra.mxu0 0.0
    %697 = vmatprep.subr.mxu0 0.0
    %698 = vmatpush1.msra.mxu0 0.0
    %699 = vmatprep.subr.mxu0 0.0
    %700 = vmatpush1.msra.mxu0 0.0
    %701 = vmatprep.subr.mxu0 0.0
    %702 = vmatpush1.msra.mxu0 0.0
    %703 = vmatprep.subr.mxu0 0.0
    %704 = vmatpush1.msra.mxu0 0.0
    %705 = vmatprep.subr.mxu0 0.0
    %706 = vmatpush1.msra.mxu0 0.0
    %707 = vmatprep.subr.mxu0 0.0
    %708 = vmatpush1.msra.mxu0 0.0
    %709 = vmatprep.subr.mxu0 0.0
    %710 = vmatpush1.msra.mxu0 0.0
    %711 = vmatprep.subr.mxu0 0.0
    %712 = vmatpush1.msra.mxu0 0.0
    %713 = vmatprep.subr.mxu0 0.0
    %714 = vmatpush1.msra.mxu0 0.0
    %715 = vmatprep.subr.mxu0 0.0
    %716 = vmatpush1.msra.mxu0 0.0
    %717 = vmatprep.subr.mxu0 0.0
    %718 = vmatpush1.msra.mxu0 0.0
    %719 = vmatprep.subr.mxu0 0.0
    %720 = vmatpush1.msra.mxu0 0.0
    %721 = vmatprep.subr.mxu0 0.0
    %722 = vmatpush1.msra.mxu0 0.0
    %723 = vmatprep.subr.mxu0 0.0
    %724 = vmatpush1.msra.mxu0 0.0
    %725 = vmatprep.subr.mxu0 0.0
    %726 = vmatpush1.msra.mxu0 0.0
    %727 = vmatprep.subr.mxu0 0.0
    %728 = vmatpush1.msra.mxu0 0.0
    %729 = vmatprep.subr.mxu0 0.0
    %730 = vmatpush1.msra.mxu0 0.0
    %731 = vmatprep.subr.mxu0 0.0
    %732 = vmatpush1.msra.mxu0 0.0
    %733 = vmatprep.subr.mxu0 0.0
    %734 = vmatpush1.msra.mxu0 0.0
    %735 = vmatprep.subr.mxu0 0.0
    %736 = vmatpush1.msra.mxu0 0.0
    %737 = vmatprep.subr.mxu0 0.0
    %738 = vmatpush1.msra.mxu0 0.0
    %739 = vmatprep.subr.mxu0 0.0
    %740 = vmatpush1.msra.mxu0 0.0
    %741 = vmatprep.mubr.f32.mxu0 0.0
    %742 = vmatmul.mubr.f32.gmra.mrb[0].mxu0 %v675
    %v743 = vpop.f32.mrb[0].mxu0
    %v744 = vadd.f32 0.0, %v743
    %v745 = vpop.f32.mrb[0].mxu0
    %746 = vdwg.mxu0
    %v748 = vrot.slane %v744, 4
    %v750 = vadd.f32 %v244, %v748
    %v752 = vrot.slane %v670, 4
    %753 = vrot.lane.b32.xlu0 %v752, 32
    %v754 = vpop.permute.xlu0 %753
    %v755 = vsel %vm170, %v754, 0
    %757 = vmatprep.subr.mxu0 0.0
    %758 = vmatpush1.msra.mxu0 %v258
    %759 = vmatprep.subr.mxu0 0.0
    %760 = vmatpush1.msra.mxu0 %v259
    %761 = vmatprep.subr.mxu0 0.0
    %762 = vmatpush1.msra.mxu0 %v260
    %763 = vmatprep.subr.mxu0 0.0
    %764 = vmatpush1.msra.mxu0 %v261
    %765 = vmatprep.subr.mxu0 0.0
    %766 = vmatpush1.msra.mxu0 0.0
    %767 = vmatprep.subr.mxu0 0.0
    %768 = vmatpush1.msra.mxu0 0.0
    %769 = vmatprep.subr.mxu0 0.0
    %770 = vmatpush1.msra.mxu0 0.0
    %771 = vmatprep.subr.mxu0 0.0
    %772 = vmatpush1.msra.mxu0 0.0
    %773 = vmatprep.subr.mxu0 0.0
    %774 = vmatpush1.msra.mxu0 0.0
    %775 = vmatprep.subr.mxu0 0.0
    %776 = vmatpush1.msra.mxu0 0.0
    %777 = vmatprep.subr.mxu0 0.0
    %778 = vmatpush1.msra.mxu0 0.0
    %779 = vmatprep.subr.mxu0 0.0
    %780 = vmatpush1.msra.mxu0 0.0
    %781 = vmatprep.subr.mxu0 0.0
    %782 = vmatpush1.msra.mxu0 0.0
    %783 = vmatprep.subr.mxu0 0.0
    %784 = vmatpush1.msra.mxu0 0.0
    %785 = vmatprep.subr.mxu0 0.0
    %786 = vmatpush1.msra.mxu0 0.0
    %787 = vmatprep.subr.mxu0 0.0
    %788 = vmatpush1.msra.mxu0 0.0
    %789 = vmatprep.subr.mxu0 0.0
    %790 = vmatpush1.msra.mxu0 0.0
    %791 = vmatprep.subr.mxu0 0.0
    %792 = vmatpush1.msra.mxu0 0.0
    %793 = vmatprep.subr.mxu0 0.0
    %794 = vmatpush1.msra.mxu0 0.0
    %795 = vmatprep.subr.mxu0 0.0
    %796 = vmatpush1.msra.mxu0 0.0
    %797 = vmatprep.subr.mxu0 0.0
    %798 = vmatpush1.msra.mxu0 0.0
    %799 = vmatprep.subr.mxu0 0.0
    %800 = vmatpush1.msra.mxu0 0.0
    %801 = vmatprep.subr.mxu0 0.0
    %802 = vmatpush1.msra.mxu0 0.0
    %803 = vmatprep.subr.mxu0 0.0
    %804 = vmatpush1.msra.mxu0 0.0
    %805 = vmatprep.subr.mxu0 0.0
    %806 = vmatpush1.msra.mxu0 0.0
    %807 = vmatprep.subr.mxu0 0.0
    %808 = vmatpush1.msra.mxu0 0.0
    %809 = vmatprep.subr.mxu0 0.0
    %810 = vmatpush1.msra.mxu0 0.0
    %811 = vmatprep.subr.mxu0 0.0
    %812 = vmatpush1.msra.mxu0 0.0
    %813 = vmatprep.subr.mxu0 0.0
    %814 = vmatpush1.msra.mxu0 0.0
    %815 = vmatprep.subr.mxu0 0.0
    %816 = vmatpush1.msra.mxu0 0.0
    %817 = vmatprep.subr.mxu0 0.0
    %818 = vmatpush1.msra.mxu0 0.0
    %819 = vmatprep.subr.mxu0 0.0
    %820 = vmatpush1.msra.mxu0 0.0
    %821 = vmatprep.mubr.f32.mxu0 0.0
    %822 = vmatmul.mubr.f32.gmra.mrb[0].mxu0 %v755
    %v823 = vpop.f32.mrb[0].mxu0
    %v824 = vadd.f32 0.0, %v823
    %v825 = vpop.f32.mrb[0].mxu0
    %826 = vdwg.mxu0
    %v828 = vrot.slane %v824, 6
    %v830 = vadd.f32 %v252, %v828
    %v831 = vxor.u32 %v750, 2147483648
    %v832 = vmul.f32 %v831, 1.442695
    %v833 = vpow.pop %v832
    %v834 = vadd.f32 %v833, 1.0
    %v835 = vrcp.pop %v834
    %v836 = vmul.f32 1.0, %v835
    %v837 = vtanh.pop %v750
    %v839 = vrot.slane %v637, 6
    %v841 = vmul.f32 %v836, %v839
    %843 = vrot.lane.b32.xlu0 %v837, 64
    %v844 = vpop.permute.xlu0 %843
    %v846 = vmul.f32 %v836, %v844
    %848 = vrot.lane.b32.xlu0 %v846, 32
    %v849 = vpop.permute.xlu0 %848
    %v851 = vadd.f32 %v841, %v849
    %v852 = vtanh.pop %v851
    %854 = vrot.lane.b32.xlu0 %v852, 64
    %v855 = vpop.permute.xlu0 %854
    %v857 = vmul.f32 %v836, %v855
    %v858 = vxor.u32 %v830, 2147483648
    %v859 = vmul.f32 %v858, 1.442695
    %v860 = vpow.pop %v859
    %v861 = vadd.f32 %v860, 1.0
    %v862 = vrcp.pop %v861
    %v863 = vmul.f32 1.0, %v862
    %v864 = vtanh.pop %v830
    %v866 = vrot.slane %v664, 2
    %v868 = vmul.f32 %v863, %v866
    %870 = vrot.lane.b32.xlu0 %v864, 64
    %v871 = vpop.permute.xlu0 %870
    %v873 = vmul.f32 %v863, %v871
    %875 = vrot.lane.b32.xlu0 %v873, 32
    %v876 = vpop.permute.xlu0 %875
    %v878 = vadd.f32 %v868, %v876
    %v879 = vtanh.pop %v878
    %881 = vrot.lane.b32.xlu0 %v879, 64
    %v882 = vpop.permute.xlu0 %881
    %v884 = vmul.f32 %v863, %v882
    %v886 = vrot.slane %v857, 4
    %887 = vrot.lane.b32.xlu0 %v886, 32
    %v888 = vpop.permute.xlu0 %887
    %v889 = vsel %vm170, %v888, 0
    %891 = vmatprep.subr.mxu0 0.0
    %892 = vmatpush1.msra.mxu0 %v254
    %893 = vmatprep.subr.mxu0 0.0
    %894 = vmatpush1.msra.mxu0 %v255
    %895 = vmatprep.subr.mxu0 0.0
    %896 = vmatpush1.msra.mxu0 %v256
    %897 = vmatprep.subr.mxu0 0.0
    %898 = vmatpush1.msra.mxu0 %v257
    %899 = vmatprep.subr.mxu0 0.0
    %900 = vmatpush1.msra.mxu0 0.0
    %901 = vmatprep.subr.mxu0 0.0
    %902 = vmatpush1.msra.mxu0 0.0
    %903 = vmatprep.subr.mxu0 0.0
    %904 = vmatpush1.msra.mxu0 0.0
    %905 = vmatprep.subr.mxu0 0.0
    %906 = vmatpush1.msra.mxu0 0.0
    %907 = vmatprep.subr.mxu0 0.0
    %908 = vmatpush1.msra.mxu0 0.0
    %909 = vmatprep.subr.mxu0 0.0
    %910 = vmatpush1.msra.mxu0 0.0
    %911 = vmatprep.subr.mxu0 0.0
    %912 = vmatpush1.msra.mxu0 0.0
    %913 = vmatprep.subr.mxu0 0.0
    %914 = vmatpush1.msra.mxu0 0.0
    %915 = vmatprep.subr.mxu0 0.0
    %916 = vmatpush1.msra.mxu0 0.0
    %917 = vmatprep.subr.mxu0 0.0
    %918 = vmatpush1.msra.mxu0 0.0
    %919 = vmatprep.subr.mxu0 0.0
    %920 = vmatpush1.msra.mxu0 0.0
    %921 = vmatprep.subr.mxu0 0.0
    %922 = vmatpush1.msra.mxu0 0.0
    %923 = vmatprep.subr.mxu0 0.0
    %924 = vmatpush1.msra.mxu0 0.0
    %925 = vmatprep.subr.mxu0 0.0
    %926 = vmatpush1.msra.mxu0 0.0
    %927 = vmatprep.subr.mxu0 0.0
    %928 = vmatpush1.msra.mxu0 0.0
    %929 = vmatprep.subr.mxu0 0.0
    %930 = vmatpush1.msra.mxu0 0.0
    %931 = vmatprep.subr.mxu0 0.0
    %932 = vmatpush1.msra.mxu0 0.0
    %933 = vmatprep.subr.mxu0 0.0
    %934 = vmatpush1.msra.mxu0 0.0
    %935 = vmatprep.subr.mxu0 0.0
    %936 = vmatpush1.msra.mxu0 0.0
    %937 = vmatprep.subr.mxu0 0.0
    %938 = vmatpush1.msra.mxu0 0.0
    %939 = vmatprep.subr.mxu0 0.0
    %940 = vmatpush1.msra.mxu0 0.0
    %941 = vmatprep.subr.mxu0 0.0
    %942 = vmatpush1.msra.mxu0 0.0
    %943 = vmatprep.subr.mxu0 0.0
    %944 = vmatpush1.msra.mxu0 0.0
    %945 = vmatprep.subr.mxu0 0.0
    %946 = vmatpush1.msra.mxu0 0.0
    %947 = vmatprep.subr.mxu0 0.0
    %948 = vmatpush1.msra.mxu0 0.0
    %949 = vmatprep.subr.mxu0 0.0
    %950 = vmatpush1.msra.mxu0 0.0
    %951 = vmatprep.subr.mxu0 0.0
    %952 = vmatpush1.msra.mxu0 0.0
    %953 = vmatprep.subr.mxu0 0.0
    %954 = vmatpush1.msra.mxu0 0.0
    %955 = vmatprep.mubr.f32.mxu0 0.0
    %956 = vmatmul.mubr.f32.gmra.mrb[0].mxu0 %v889
    %v957 = vpop.f32.mrb[0].mxu0
    %v958 = vadd.f32 0.0, %v957
    %v959 = vpop.f32.mrb[0].mxu0
    %960 = vdwg.mxu0
    %v962 = vrot.slane %v958, 2
    %v964 = vadd.f32 %v244, %v962
    %v966 = vrot.slane %v884, 2
    %967 = vrot.lane.b32.xlu0 %v966, 32
    %v968 = vpop.permute.xlu0 %967
    %v969 = vsel %vm170, %v968, 0
    %971 = vmatprep.subr.mxu0 0.0
    %972 = vmatpush1.msra.mxu0 %v258
    %973 = vmatprep.subr.mxu0 0.0
    %974 = vmatpush1.msra.mxu0 %v259
    %975 = vmatprep.subr.mxu0 0.0
    %976 = vmatpush1.msra.mxu0 %v260
    %977 = vmatprep.subr.mxu0 0.0
    %978 = vmatpush1.msra.mxu0 %v261
    %979 = vmatprep.subr.mxu0 0.0
    %980 = vmatpush1.msra.mxu0 0.0
    %981 = vmatprep.subr.mxu0 0.0
    %982 = vmatpush1.msra.mxu0 0.0
    %983 = vmatprep.subr.mxu0 0.0
    %984 = vmatpush1.msra.mxu0 0.0
    %985 = vmatprep.subr.mxu0 0.0
    %986 = vmatpush1.msra.mxu0 0.0
    %987 = vmatprep.subr.mxu0 0.0
    %988 = vmatpush1.msra.mxu0 0.0
    %989 = vmatprep.subr.mxu0 0.0
    %990 = vmatpush1.msra.mxu0 0.0
    %991 = vmatprep.subr.mxu0 0.0
    %992 = vmatpush1.msra.mxu0 0.0
    %993 = vmatprep.subr.mxu0 0.0
    %994 = vmatpush1.msra.mxu0 0.0
    %995 = vmatprep.subr.mxu0 0.0
    %996 = vmatpush1.msra.mxu0 0.0
    %997 = vmatprep.subr.mxu0 0.0
    %998 = vmatpush1.msra.mxu0 0.0
    %999 = vmatprep.subr.mxu0 0.0
    %1000 = vmatpush1.msra.mxu0 0.0
    %1001 = vmatprep.subr.mxu0 0.0
    %1002 = vmatpush1.msra.mxu0 0.0
    %1003 = vmatprep.subr.mxu0 0.0
    %1004 = vmatpush1.msra.mxu0 0.0
    %1005 = vmatprep.subr.mxu0 0.0
    %1006 = vmatpush1.msra.mxu0 0.0
    %1007 = vmatprep.subr.mxu0 0.0
    %1008 = vmatpush1.msra.mxu0 0.0
    %1009 = vmatprep.subr.mxu0 0.0
    %1010 = vmatpush1.msra.mxu0 0.0
    %1011 = vmatprep.subr.mxu0 0.0
    %1012 = vmatpush1.msra.mxu0 0.0
    %1013 = vmatprep.subr.mxu0 0.0
    %1014 = vmatpush1.msra.mxu0 0.0
    %1015 = vmatprep.subr.mxu0 0.0
    %1016 = vmatpush1.msra.mxu0 0.0
    %1017 = vmatprep.subr.mxu0 0.0
    %1018 = vmatpush1.msra.mxu0 0.0
    %1019 = vmatprep.subr.mxu0 0.0
    %1020 = vmatpush1.msra.mxu0 0.0
    %1021 = vmatprep.subr.mxu0 0.0
    %1022 = vmatpush1.msra.mxu0 0.0
    %1023 = vmatprep.subr.mxu0 0.0
    %1024 = vmatpush1.msra.mxu0 0.0
    %1025 = vmatprep.subr.mxu0 0.0
    %1026 = vmatpush1.msra.mxu0 0.0
    %1027 = vmatprep.subr.mxu0 0.0
    %1028 = vmatpush1.msra.mxu0 0.0
    %1029 = vmatprep.subr.mxu0 0.0
    %1030 = vmatpush1.msra.mxu0 0.0
    %1031 = vmatprep.subr.mxu0 0.0
    %1032 = vmatpush1.msra.mxu0 0.0
    %1033 = vmatprep.subr.mxu0 0.0
    %1034 = vmatpush1.msra.mxu0 0.0
    %1035 = vmatprep.mubr.f32.mxu0 0.0
    %1036 = vmatmul.mubr.f32.gmra.mrb[0].mxu0 %v969
    %v1037 = vpop.f32.mrb[0].mxu0
    %v1038 = vadd.f32 0.0, %v1037
    %v1039 = vpop.f32.mrb[0].mxu0
    %1040 = vdwg.mxu0
    %v1041 = vadd.f32 %v252, %v1038
    %v1042 = vxor.u32 %v964, 2147483648
    %v1043 = vmul.f32 %v1042, 1.442695
    %v1044 = vpow.pop %v1043
    %v1045 = vadd.f32 %v1044, 1.0
    %v1046 = vrcp.pop %v1045
    %v1047 = vmul.f32 1.0, %v1046
    %v1048 = vtanh.pop %v964
    %v1050 = vrot.slane %v851, 6
    %v1052 = vmul.f32 %v1047, %v1050
    %1054 = vrot.lane.b32.xlu0 %v1048, 64
    %v1055 = vpop.permute.xlu0 %1054
    %v1057 = vmul.f32 %v1047, %v1055
    %1059 = vrot.lane.b32.xlu0 %v1057, 32
    %v1060 = vpop.permute.xlu0 %1059
    %v1062 = vadd.f32 %v1052, %v1060
    %v1063 = vtanh.pop %v1062
    %1065 = vrot.lane.b32.xlu0 %v1063, 64
    %v1066 = vpop.permute.xlu0 %1065
    %v1068 = vmul.f32 %v1047, %v1066
    %v1069 = vxor.u32 %v1041, 2147483648
    %v1070 = vmul.f32 %v1069, 1.442695
    %v1071 = vpow.pop %v1070
    %v1072 = vadd.f32 %v1071, 1.0
    %v1073 = vrcp.pop %v1072
    %v1074 = vmul.f32 1.0, %v1073
    %v1075 = vtanh.pop %v1041
    %v1077 = vrot.slane %v878, 2
    %v1079 = vmul.f32 %v1074, %v1077
    %1081 = vrot.lane.b32.xlu0 %v1075, 64
    %v1082 = vpop.permute.xlu0 %1081
    %v1084 = vmul.f32 %v1074, %v1082
    %1086 = vrot.lane.b32.xlu0 %v1084, 32
    %v1087 = vpop.permute.xlu0 %1086
    %v1089 = vadd.f32 %v1079, %v1087
    %v1090 = vtanh.pop %v1089
    %1092 = vrot.lane.b32.xlu0 %v1090, 64
    %v1093 = vpop.permute.xlu0 %1092
    %v1095 = vmul.f32 %v1074, %v1093
    %v1097 = vrot.slane %v1068, 6
    %1098 = vrot.lane.b32.xlu0 %v1097, 32
    %v1099 = vpop.permute.xlu0 %1098
    %v1100 = vsel %vm170, %v1099, 0
    %1102 = vmatprep.subr.mxu0 0.0
    %1103 = vmatpush1.msra.mxu0 %v254
    %1104 = vmatprep.subr.mxu0 0.0
    %1105 = vmatpush1.msra.mxu0 %v255
    %1106 = vmatprep.subr.mxu0 0.0
    %1107 = vmatpush1.msra.mxu0 %v256
    %1108 = vmatprep.subr.mxu0 0.0
    %1109 = vmatpush1.msra.mxu0 %v257
    %1110 = vmatprep.subr.mxu0 0.0
    %1111 = vmatpush1.msra.mxu0 0.0
    %1112 = vmatprep.subr.mxu0 0.0
    %1113 = vmatpush1.msra.mxu0 0.0
    %1114 = vmatprep.subr.mxu0 0.0
    %1115 = vmatpush1.msra.mxu0 0.0
    %1116 = vmatprep.subr.mxu0 0.0
    %1117 = vmatpush1.msra.mxu0 0.0
    %1118 = vmatprep.subr.mxu0 0.0
    %1119 = vmatpush1.msra.mxu0 0.0
    %1120 = vmatprep.subr.mxu0 0.0
    %1121 = vmatpush1.msra.mxu0 0.0
    %1122 = vmatprep.subr.mxu0 0.0
    %1123 = vmatpush1.msra.mxu0 0.0
    %1124 = vmatprep.subr.mxu0 0.0
    %1125 = vmatpush1.msra.mxu0 0.0
    %1126 = vmatprep.subr.mxu0 0.0
    %1127 = vmatpush1.msra.mxu0 0.0
    %1128 = vmatprep.subr.mxu0 0.0
    %1129 = vmatpush1.msra.mxu0 0.0
    %1130 = vmatprep.subr.mxu0 0.0
    %1131 = vmatpush1.msra.mxu0 0.0
    %1132 = vmatprep.subr.mxu0 0.0
    %1133 = vmatpush1.msra.mxu0 0.0
    %1134 = vmatprep.subr.mxu0 0.0
    %1135 = vmatpush1.msra.mxu0 0.0
    %1136 = vmatprep.subr.mxu0 0.0
    %1137 = vmatpush1.msra.mxu0 0.0
    %1138 = vmatprep.subr.mxu0 0.0
    %1139 = vmatpush1.msra.mxu0 0.0
    %1140 = vmatprep.subr.mxu0 0.0
    %1141 = vmatpush1.msra.mxu0 0.0
    %1142 = vmatprep.subr.mxu0 0.0
    %1143 = vmatpush1.msra.mxu0 0.0
    %1144 = vmatprep.subr.mxu0 0.0
    %1145 = vmatpush1.msra.mxu0 0.0
    %1146 = vmatprep.subr.mxu0 0.0
    %1147 = vmatpush1.msra.mxu0 0.0
    %1148 = vmatprep.subr.mxu0 0.0
    %1149 = vmatpush1.msra.mxu0 0.0
    %1150 = vmatprep.subr.mxu0 0.0
    %1151 = vmatpush1.msra.mxu0 0.0
    %1152 = vmatprep.subr.mxu0 0.0
    %1153 = vmatpush1.msra.mxu0 0.0
    %1154 = vmatprep.subr.mxu0 0.0
    %1155 = vmatpush1.msra.mxu0 0.0
    %1156 = vmatprep.subr.mxu0 0.0
    %1157 = vmatpush1.msra.mxu0 0.0
    %1158 = vmatprep.subr.mxu0 0.0
    %1159 = vmatpush1.msra.mxu0 0.0
    %1160 = vmatprep.subr.mxu0 0.0
    %1161 = vmatpush1.msra.mxu0 0.0
    %1162 = vmatprep.subr.mxu0 0.0
    %1163 = vmatpush1.msra.mxu0 0.0
    %1164 = vmatprep.subr.mxu0 0.0
    %1165 = vmatpush1.msra.mxu0 0.0
    %1166 = vmatprep.mubr.f32.mxu0 0.0
    %1167 = vmatmul.mubr.f32.gmra.mrb[0].mxu0 %v1100
    %v1168 = vpop.f32.mrb[0].mxu0
    %v1169 = vadd.f32 0.0, %v1168
    %v1170 = vpop.f32.mrb[0].mxu0
    %1171 = vdwg.mxu0
    %v1172 = vadd.f32 %v250, %v1169
    %1174 = vrot.lane.b32.xlu0 %v1095, 32
    %v1175 = vpop.permute.xlu0 %1174
    %v1176 = vsel %vm170, %v1175, 0
    %1178 = vmatprep.subr.mxu0 0.0
    %1179 = vmatpush1.msra.mxu0 %v258
    %1180 = vmatprep.subr.mxu0 0.0
    %1181 = vmatpush1.msra.mxu0 %v259
    %1182 = vmatprep.subr.mxu0 0.0
    %1183 = vmatpush1.msra.mxu0 %v260
    %1184 = vmatprep.subr.mxu0 0.0
    %1185 = vmatpush1.msra.mxu0 %v261
    %1186 = vmatprep.subr.mxu0 0.0
    %1187 = vmatpush1.msra.mxu0 0.0
    %1188 = vmatprep.subr.mxu0 0.0
    %1189 = vmatpush1.msra.mxu0 0.0
    %1190 = vmatprep.subr.mxu0 0.0
    %1191 = vmatpush1.msra.mxu0 0.0
    %1192 = vmatprep.subr.mxu0 0.0
    %1193 = vmatpush1.msra.mxu0 0.0
    %1194 = vmatprep.subr.mxu0 0.0
    %1195 = vmatpush1.msra.mxu0 0.0
    %1196 = vmatprep.subr.mxu0 0.0
    %1197 = vmatpush1.msra.mxu0 0.0
    %1198 = vmatprep.subr.mxu0 0.0
    %1199 = vmatpush1.msra.mxu0 0.0
    %1200 = vmatprep.subr.mxu0 0.0
    %1201 = vmatpush1.msra.mxu0 0.0
    %1202 = vmatprep.subr.mxu0 0.0
    %1203 = vmatpush1.msra.mxu0 0.0
    %1204 = vmatprep.subr.mxu0 0.0
    %1205 = vmatpush1.msra.mxu0 0.0
    %1206 = vmatprep.subr.mxu0 0.0
    %1207 = vmatpush1.msra.mxu0 0.0
    %1208 = vmatprep.subr.mxu0 0.0
    %1209 = vmatpush1.msra.mxu0 0.0
    %1210 = vmatprep.subr.mxu0 0.0
    %1211 = vmatpush1.msra.mxu0 0.0
    %1212 = vmatprep.subr.mxu0 0.0
    %1213 = vmatpush1.msra.mxu0 0.0
    %1214 = vmatprep.subr.mxu0 0.0
    %1215 = vmatpush1.msra.mxu0 0.0
    %1216 = vmatprep.subr.mxu0 0.0
    %1217 = vmatpush1.msra.mxu0 0.0
    %1218 = vmatprep.subr.mxu0 0.0
    %1219 = vmatpush1.msra.mxu0 0.0
    %1220 = vmatprep.subr.mxu0 0.0
    %1221 = vmatpush1.msra.mxu0 0.0
    %1222 = vmatprep.subr.mxu0 0.0
    %1223 = vmatpush1.msra.mxu0 0.0
    %1224 = vmatprep.subr.mxu0 0.0
    %1225 = vmatpush1.msra.mxu0 0.0
    %1226 = vmatprep.subr.mxu0 0.0
    %1227 = vmatpush1.msra.mxu0 0.0
    %1228 = vmatprep.subr.mxu0 0.0
    %1229 = vmatpush1.msra.mxu0 0.0
    %1230 = vmatprep.subr.mxu0 0.0
    %1231 = vmatpush1.msra.mxu0 0.0
    %1232 = vmatprep.subr.mxu0 0.0
    %1233 = vmatpush1.msra.mxu0 0.0
    %1234 = vmatprep.subr.mxu0 0.0
    %1235 = vmatpush1.msra.mxu0 0.0
    %1236 = vmatprep.subr.mxu0 0.0
    %1237 = vmatpush1.msra.mxu0 0.0
    %1238 = vmatprep.subr.mxu0 0.0
    %1239 = vmatpush1.msra.mxu0 0.0
    %1240 = vmatprep.subr.mxu0 0.0
    %1241 = vmatpush1.msra.mxu0 0.0
    %1242 = vmatprep.mubr.f32.mxu0 0.0
    %1243 = vmatmul.mubr.f32.gmra.mrb[0].mxu0 %v1176
    %v1244 = vpop.f32.mrb[0].mxu0
    %v1245 = vadd.f32 0.0, %v1244
    %v1246 = vpop.f32.mrb[0].mxu0
    %1247 = vdwg.mxu0
    %v1249 = vrot.slane %v1245, 2
    %v1251 = vadd.f32 %v246, %v1249
    %v1252 = vxor.u32 %v1172, 2147483648
    %v1253 = vmul.f32 %v1252, 1.442695
    %v1254 = vpow.pop %v1253
    %v1255 = vadd.f32 %v1254, 1.0
    %v1256 = vrcp.pop %v1255
    %v1257 = vmul.f32 1.0, %v1256
    %v1258 = vtanh.pop %v1172
    %v1260 = vrot.slane %v1062, 6
    %v1262 = vmul.f32 %v1257, %v1260
    %1264 = vrot.lane.b32.xlu0 %v1258, 64
    %v1265 = vpop.permute.xlu0 %1264
    %v1267 = vmul.f32 %v1257, %v1265
    %1269 = vrot.lane.b32.xlu0 %v1267, 32
    %v1270 = vpop.permute.xlu0 %1269
    %v1272 = vadd.f32 %v1262, %v1270
    %v1273 = vtanh.pop %v1272
    %1275 = vrot.lane.b32.xlu0 %v1273, 64
    %v1276 = vpop.permute.xlu0 %1275
    %v1278 = vmul.f32 %v1257, %v1276
    %v1279 = vxor.u32 %v1251, 2147483648
    %v1280 = vmul.f32 %v1279, 1.442695
    %v1281 = vpow.pop %v1280
    %v1282 = vadd.f32 %v1281, 1.0
    %v1283 = vrcp.pop %v1282
    %v1284 = vmul.f32 1.0, %v1283
    %v1285 = vtanh.pop %v1251
    %v1287 = vrot.slane %v1089, 2
    %v1289 = vmul.f32 %v1284, %v1287
    %1291 = vrot.lane.b32.xlu0 %v1285, 64
    %v1292 = vpop.permute.xlu0 %1291
    %v1294 = vmul.f32 %v1284, %v1292
    %1296 = vrot.lane.b32.xlu0 %v1294, 32
    %v1297 = vpop.permute.xlu0 %1296
    %v1299 = vadd.f32 %v1289, %v1297
    %v1300 = vtanh.pop %v1299
    %1302 = vrot.lane.b32.xlu0 %v1300, 64
    %v1303 = vpop.permute.xlu0 %1302
    %v1305 = vmul.f32 %v1284, %v1303
    %1307 = vrot.lane.b32.xlu0 %v1278, 32
    %v1308 = vpop.permute.xlu0 %1307
    %v1309 = vsel %vm170, %v1308, 0
    %1311 = vmatprep.subr.mxu0 0.0
    %1312 = vmatpush1.msra.mxu0 %v254
    %1313 = vmatprep.subr.mxu0 0.0
    %1314 = vmatpush1.msra.mxu0 %v255
    %1315 = vmatprep.subr.mxu0 0.0
    %1316 = vmatpush1.msra.mxu0 %v256
    %1317 = vmatprep.subr.mxu0 0.0
    %1318 = vmatpush1.msra.mxu0 %v257
    %1319 = vmatprep.subr.mxu0 0.0
    %1320 = vmatpush1.msra.mxu0 0.0
    %1321 = vmatprep.subr.mxu0 0.0
    %1322 = vmatpush1.msra.mxu0 0.0
    %1323 = vmatprep.subr.mxu0 0.0
    %1324 = vmatpush1.msra.mxu0 0.0
    %1325 = vmatprep.subr.mxu0 0.0
    %1326 = vmatpush1.msra.mxu0 0.0
    %1327 = vmatprep.subr.mxu0 0.0
    %1328 = vmatpush1.msra.mxu0 0.0
    %1329 = vmatprep.subr.mxu0 0.0
    %1330 = vmatpush1.msra.mxu0 0.0
    %1331 = vmatprep.subr.mxu0 0.0
    %1332 = vmatpush1.msra.mxu0 0.0
    %1333 = vmatprep.subr.mxu0 0.0
    %1334 = vmatpush1.msra.mxu0 0.0
    %1335 = vmatprep.subr.mxu0 0.0
    %1336 = vmatpush1.msra.mxu0 0.0
    %1337 = vmatprep.subr.mxu0 0.0
    %1338 = vmatpush1.msra.mxu0 0.0
    %1339 = vmatprep.subr.mxu0 0.0
    %1340 = vmatpush1.msra.mxu0 0.0
    %1341 = vmatprep.subr.mxu0 0.0
    %1342 = vmatpush1.msra.mxu0 0.0
    %1343 = vmatprep.subr.mxu0 0.0
    %1344 = vmatpush1.msra.mxu0 0.0
    %1345 = vmatprep.subr.mxu0 0.0
    %1346 = vmatpush1.msra.mxu0 0.0
    %1347 = vmatprep.subr.mxu0 0.0
    %1348 = vmatpush1.msra.mxu0 0.0
    %1349 = vmatprep.subr.mxu0 0.0
    %1350 = vmatpush1.msra.mxu0 0.0
    %1351 = vmatprep.subr.mxu0 0.0
    %1352 = vmatpush1.msra.mxu0 0.0
    %1353 = vmatprep.subr.mxu0 0.0
    %1354 = vmatpush1.msra.mxu0 0.0
    %1355 = vmatprep.subr.mxu0 0.0
    %1356 = vmatpush1.msra.mxu0 0.0
    %1357 = vmatprep.subr.mxu0 0.0
    %1358 = vmatpush1.msra.mxu0 0.0
    %1359 = vmatprep.subr.mxu0 0.0
    %1360 = vmatpush1.msra.mxu0 0.0
    %1361 = vmatprep.subr.mxu0 0.0
    %1362 = vmatpush1.msra.mxu0 0.0
    %1363 = vmatprep.subr.mxu0 0.0
    %1364 = vmatpush1.msra.mxu0 0.0
    %1365 = vmatprep.subr.mxu0 0.0
    %1366 = vmatpush1.msra.mxu0 0.0
    %1367 = vmatprep.subr.mxu0 0.0
    %1368 = vmatpush1.msra.mxu0 0.0
    %1369 = vmatprep.subr.mxu0 0.0
    %1370 = vmatpush1.msra.mxu0 0.0
    %1371 = vmatprep.subr.mxu0 0.0
    %1372 = vmatpush1.msra.mxu0 0.0
    %1373 = vmatprep.subr.mxu0 0.0
    %1374 = vmatpush1.msra.mxu0 0.0
    %1375 = vmatprep.mubr.f32.mxu0 0.0
    %1376 = vmatmul.mubr.f32.gmra.mrb[0].mxu0 %v1309
    %v1377 = vpop.f32.mrb[0].mxu0
    %v1378 = vadd.f32 0.0, %v1377
    %v1379 = vpop.f32.mrb[0].mxu0
    %1380 = vdwg.mxu0
    %v1382 = vrot.slane %v1378, 6
    %v1384 = vadd.f32 %v250, %v1382
    %v1386 = vrot.slane %v1305, 6
    %1387 = vrot.lane.b32.xlu0 %v1386, 32
    %v1388 = vpop.permute.xlu0 %1387
    %v1389 = vsel %vm170, %v1388, 0
    %1391 = vmatprep.subr.mxu0 0.0
    %1392 = vmatpush1.msra.mxu0 %v258
    %1393 = vmatprep.subr.mxu0 0.0
    %1394 = vmatpush1.msra.mxu0 %v259
    %1395 = vmatprep.subr.mxu0 0.0
    %1396 = vmatpush1.msra.mxu0 %v260
    %1397 = vmatprep.subr.mxu0 0.0
    %1398 = vmatpush1.msra.mxu0 %v261
    %1399 = vmatprep.subr.mxu0 0.0
    %1400 = vmatpush1.msra.mxu0 0.0
    %1401 = vmatprep.subr.mxu0 0.0
    %1402 = vmatpush1.msra.mxu0 0.0
    %1403 = vmatprep.subr.mxu0 0.0
    %1404 = vmatpush1.msra.mxu0 0.0
    %1405 = vmatprep.subr.mxu0 0.0
    %1406 = vmatpush1.msra.mxu0 0.0
    %1407 = vmatprep.subr.mxu0 0.0
    %1408 = vmatpush1.msra.mxu0 0.0
    %1409 = vmatprep.subr.mxu0 0.0
    %1410 = vmatpush1.msra.mxu0 0.0
    %1411 = vmatprep.subr.mxu0 0.0
    %1412 = vmatpush1.msra.mxu0 0.0
    %1413 = vmatprep.subr.mxu0 0.0
    %1414 = vmatpush1.msra.mxu0 0.0
    %1415 = vmatprep.subr.mxu0 0.0
    %1416 = vmatpush1.msra.mxu0 0.0
    %1417 = vmatprep.subr.mxu0 0.0
    %1418 = vmatpush1.msra.mxu0 0.0
    %1419 = vmatprep.subr.mxu0 0.0
    %1420 = vmatpush1.msra.mxu0 0.0
    %1421 = vmatprep.subr.mxu0 0.0
    %1422 = vmatpush1.msra.mxu0 0.0
    %1423 = vmatprep.subr.mxu0 0.0
    %1424 = vmatpush1.msra.mxu0 0.0
    %1425 = vmatprep.subr.mxu0 0.0
    %1426 = vmatpush1.msra.mxu0 0.0
    %1427 = vmatprep.subr.mxu0 0.0
    %1428 = vmatpush1.msra.mxu0 0.0
    %1429 = vmatprep.subr.mxu0 0.0
    %1430 = vmatpush1.msra.mxu0 0.0
    %1431 = vmatprep.subr.mxu0 0.0
    %1432 = vmatpush1.msra.mxu0 0.0
    %1433 = vmatprep.subr.mxu0 0.0
    %1434 = vmatpush1.msra.mxu0 0.0
    %1435 = vmatprep.subr.mxu0 0.0
    %1436 = vmatpush1.msra.mxu0 0.0
    %1437 = vmatprep.subr.mxu0 0.0
    %1438 = vmatpush1.msra.mxu0 0.0
    %1439 = vmatprep.subr.mxu0 0.0
    %1440 = vmatpush1.msra.mxu0 0.0
    %1441 = vmatprep.subr.mxu0 0.0
    %1442 = vmatpush1.msra.mxu0 0.0
    %1443 = vmatprep.subr.mxu0 0.0
    %1444 = vmatpush1.msra.mxu0 0.0
    %1445 = vmatprep.subr.mxu0 0.0
    %1446 = vmatpush1.msra.mxu0 0.0
    %1447 = vmatprep.subr.mxu0 0.0
    %1448 = vmatpush1.msra.mxu0 0.0
    %1449 = vmatprep.subr.mxu0 0.0
    %1450 = vmatpush1.msra.mxu0 0.0
    %1451 = vmatprep.subr.mxu0 0.0
    %1452 = vmatpush1.msra.mxu0 0.0
    %1453 = vmatprep.subr.mxu0 0.0
    %1454 = vmatpush1.msra.mxu0 0.0
    %1455 = vmatprep.mubr.f32.mxu0 0.0
    %1456 = vmatmul.mubr.f32.gmra.mrb[0].mxu0 %v1389
    %v1457 = vpop.f32.mrb[0].mxu0
    %v1458 = vadd.f32 0.0, %v1457
    %v1459 = vpop.f32.mrb[0].mxu0
    %1460 = vdwg.mxu0
    %v1462 = vrot.slane %v1458, 4
    %v1464 = vadd.f32 %v246, %v1462
    %v1465 = vxor.u32 %v1384, 2147483648
    %v1466 = vmul.f32 %v1465, 1.442695
    %v1467 = vpow.pop %v1466
    %v1468 = vadd.f32 %v1467, 1.0
    %v1469 = vrcp.pop %v1468
    %v1470 = vmul.f32 1.0, %v1469
    %v1471 = vtanh.pop %v1384
    %v1473 = vrot.slane %v1272, 6
    %v1475 = vmul.f32 %v1470, %v1473
    %1477 = vrot.lane.b32.xlu0 %v1471, 64
    %v1478 = vpop.permute.xlu0 %1477
    %v1480 = vmul.f32 %v1470, %v1478
    %1482 = vrot.lane.b32.xlu0 %v1480, 32
    %v1483 = vpop.permute.xlu0 %1482
    %v1485 = vadd.f32 %v1475, %v1483
    %v1486 = vtanh.pop %v1485
    %1488 = vrot.lane.b32.xlu0 %v1486, 64
    %v1489 = vpop.permute.xlu0 %1488
    %v1491 = vmul.f32 %v1470, %v1489
    %v1492 = vxor.u32 %v1464, 2147483648
    %v1493 = vmul.f32 %v1492, 1.442695
    %v1494 = vpow.pop %v1493
    %v1495 = vadd.f32 %v1494, 1.0
    %v1496 = vrcp.pop %v1495
    %v1497 = vmul.f32 1.0, %v1496
    %v1498 = vtanh.pop %v1464
    %v1500 = vrot.slane %v1299, 2
    %v1502 = vmul.f32 %v1497, %v1500
    %1504 = vrot.lane.b32.xlu0 %v1498, 64
    %v1505 = vpop.permute.xlu0 %1504
    %v1507 = vmul.f32 %v1497, %v1505
    %1509 = vrot.lane.b32.xlu0 %v1507, 32
    %v1510 = vpop.permute.xlu0 %1509
    %v1512 = vadd.f32 %v1502, %v1510
    %v1513 = vtanh.pop %v1512
    %1515 = vrot.lane.b32.xlu0 %v1513, 64
    %v1516 = vpop.permute.xlu0 %1515
    %v1518 = vmul.f32 %v1497, %v1516
    %v1520 = vrot.slane %v1491, 2
    %1521 = vrot.lane.b32.xlu0 %v1520, 32
    %v1522 = vpop.permute.xlu0 %1521
    %v1523 = vsel %vm170, %v1522, 0
    %1525 = vmatprep.subr.mxu0 0.0
    %1526 = vmatpush1.msra.mxu0 %v254
    %1527 = vmatprep.subr.mxu0 0.0
    %1528 = vmatpush1.msra.mxu0 %v255
    %1529 = vmatprep.subr.mxu0 0.0
    %1530 = vmatpush1.msra.mxu0 %v256
    %1531 = vmatprep.subr.mxu0 0.0
    %1532 = vmatpush1.msra.mxu0 %v257
    %1533 = vmatprep.subr.mxu0 0.0
    %1534 = vmatpush1.msra.mxu0 0.0
    %1535 = vmatprep.subr.mxu0 0.0
    %1536 = vmatpush1.msra.mxu0 0.0
    %1537 = vmatprep.subr.mxu0 0.0
    %1538 = vmatpush1.msra.mxu0 0.0
    %1539 = vmatprep.subr.mxu0 0.0
    %1540 = vmatpush1.msra.mxu0 0.0
    %1541 = vmatprep.subr.mxu0 0.0
    %1542 = vmatpush1.msra.mxu0 0.0
    %1543 = vmatprep.subr.mxu0 0.0
    %1544 = vmatpush1.msra.mxu0 0.0
    %1545 = vmatprep.subr.mxu0 0.0
    %1546 = vmatpush1.msra.mxu0 0.0
    %1547 = vmatprep.subr.mxu0 0.0
    %1548 = vmatpush1.msra.mxu0 0.0
    %1549 = vmatprep.subr.mxu0 0.0
    %1550 = vmatpush1.msra.mxu0 0.0
    %1551 = vmatprep.subr.mxu0 0.0
    %1552 = vmatpush1.msra.mxu0 0.0
    %1553 = vmatprep.subr.mxu0 0.0
    %1554 = vmatpush1.msra.mxu0 0.0
    %1555 = vmatprep.subr.mxu0 0.0
    %1556 = vmatpush1.msra.mxu0 0.0
    %1557 = vmatprep.subr.mxu0 0.0
    %1558 = vmatpush1.msra.mxu0 0.0
    %1559 = vmatprep.subr.mxu0 0.0
    %1560 = vmatpush1.msra.mxu0 0.0
    %1561 = vmatprep.subr.mxu0 0.0
    %1562 = vmatpush1.msra.mxu0 0.0
    %1563 = vmatprep.subr.mxu0 0.0
    %1564 = vmatpush1.msra.mxu0 0.0
    %1565 = vmatprep.subr.mxu0 0.0
    %1566 = vmatpush1.msra.mxu0 0.0
    %1567 = vmatprep.subr.mxu0 0.0
    %1568 = vmatpush1.msra.mxu0 0.0
    %1569 = vmatprep.subr.mxu0 0.0
    %1570 = vmatpush1.msra.mxu0 0.0
    %1571 = vmatprep.subr.mxu0 0.0
    %1572 = vmatpush1.msra.mxu0 0.0
    %1573 = vmatprep.subr.mxu0 0.0
    %1574 = vmatpush1.msra.mxu0 0.0
    %1575 = vmatprep.subr.mxu0 0.0
    %1576 = vmatpush1.msra.mxu0 0.0
    %1577 = vmatprep.subr.mxu0 0.0
    %1578 = vmatpush1.msra.mxu0 0.0
    %1579 = vmatprep.subr.mxu0 0.0
    %1580 = vmatpush1.msra.mxu0 0.0
    %1581 = vmatprep.subr.mxu0 0.0
    %1582 = vmatpush1.msra.mxu0 0.0
    %1583 = vmatprep.subr.mxu0 0.0
    %1584 = vmatpush1.msra.mxu0 0.0
    %1585 = vmatprep.subr.mxu0 0.0
    %1586 = vmatpush1.msra.mxu0 0.0
    %1587 = vmatprep.subr.mxu0 0.0
    %1588 = vmatpush1.msra.mxu0 0.0
    %1589 = vmatprep.mubr.f32.mxu0 0.0
    %1590 = vmatmul.mubr.f32.gmra.mrb[0].mxu0 %v1523
    %v1591 = vpop.f32.mrb[0].mxu0
    %v1592 = vadd.f32 0.0, %v1591
    %v1593 = vpop.f32.mrb[0].mxu0
    %1594 = vdwg.mxu0
    %v1596 = vrot.slane %v1592, 4
    %v1598 = vadd.f32 %v250, %v1596
    %v1600 = vrot.slane %v1518, 4
    %1601 = vrot.lane.b32.xlu0 %v1600, 32
    %v1602 = vpop.permute.xlu0 %1601
    %v1603 = vsel %vm170, %v1602, 0
    %1605 = vmatprep.subr.mxu0 0.0
    %1606 = vmatpush1.msra.mxu0 %v258
    %1607 = vmatprep.subr.mxu0 0.0
    %1608 = vmatpush1.msra.mxu0 %v259
    %1609 = vmatprep.subr.mxu0 0.0
    %1610 = vmatpush1.msra.mxu0 %v260
    %1611 = vmatprep.subr.mxu0 0.0
    %1612 = vmatpush1.msra.mxu0 %v261
    %1613 = vmatprep.subr.mxu0 0.0
    %1614 = vmatpush1.msra.mxu0 0.0
    %1615 = vmatprep.subr.mxu0 0.0
    %1616 = vmatpush1.msra.mxu0 0.0
    %1617 = vmatprep.subr.mxu0 0.0
    %1618 = vmatpush1.msra.mxu0 0.0
    %1619 = vmatprep.subr.mxu0 0.0
    %1620 = vmatpush1.msra.mxu0 0.0
    %1621 = vmatprep.subr.mxu0 0.0
    %1622 = vmatpush1.msra.mxu0 0.0
    %1623 = vmatprep.subr.mxu0 0.0
    %1624 = vmatpush1.msra.mxu0 0.0
    %1625 = vmatprep.subr.mxu0 0.0
    %1626 = vmatpush1.msra.mxu0 0.0
    %1627 = vmatprep.subr.mxu0 0.0
    %1628 = vmatpush1.msra.mxu0 0.0
    %1629 = vmatprep.subr.mxu0 0.0
    %1630 = vmatpush1.msra.mxu0 0.0
    %1631 = vmatprep.subr.mxu0 0.0
    %1632 = vmatpush1.msra.mxu0 0.0
    %1633 = vmatprep.subr.mxu0 0.0
    %1634 = vmatpush1.msra.mxu0 0.0
    %1635 = vmatprep.subr.mxu0 0.0
    %1636 = vmatpush1.msra.mxu0 0.0
    %1637 = vmatprep.subr.mxu0 0.0
    %1638 = vmatpush1.msra.mxu0 0.0
    %1639 = vmatprep.subr.mxu0 0.0
    %1640 = vmatpush1.msra.mxu0 0.0
    %1641 = vmatprep.subr.mxu0 0.0
    %1642 = vmatpush1.msra.mxu0 0.0
    %1643 = vmatprep.subr.mxu0 0.0
    %1644 = vmatpush1.msra.mxu0 0.0
    %1645 = vmatprep.subr.mxu0 0.0
    %1646 = vmatpush1.msra.mxu0 0.0
    %1647 = vmatprep.subr.mxu0 0.0
    %1648 = vmatpush1.msra.mxu0 0.0
    %1649 = vmatprep.subr.mxu0 0.0
    %1650 = vmatpush1.msra.mxu0 0.0
    %1651 = vmatprep.subr.mxu0 0.0
    %1652 = vmatpush1.msra.mxu0 0.0
    %1653 = vmatprep.subr.mxu0 0.0
    %1654 = vmatpush1.msra.mxu0 0.0
    %1655 = vmatprep.subr.mxu0 0.0
    %1656 = vmatpush1.msra.mxu0 0.0
    %1657 = vmatprep.subr.mxu0 0.0
    %1658 = vmatpush1.msra.mxu0 0.0
    %1659 = vmatprep.subr.mxu0 0.0
    %1660 = vmatpush1.msra.mxu0 0.0
    %1661 = vmatprep.subr.mxu0 0.0
    %1662 = vmatpush1.msra.mxu0 0.0
    %1663 = vmatprep.subr.mxu0 0.0
    %1664 = vmatpush1.msra.mxu0 0.0
    %1665 = vmatprep.subr.mxu0 0.0
    %1666 = vmatpush1.msra.mxu0 0.0
    %1667 = vmatprep.subr.mxu0 0.0
    %1668 = vmatpush1.msra.mxu0 0.0
    %1669 = vmatprep.mubr.f32.mxu0 0.0
    %1670 = vmatmul.mubr.f32.gmra.mrb[0].mxu0 %v1603
    %v1671 = vpop.f32.mrb[0].mxu0
    %v1672 = vadd.f32 0.0, %v1671
    %v1673 = vpop.f32.mrb[0].mxu0
    %1674 = vdwg.mxu0
    %v1676 = vrot.slane %v1672, 6
    %v1678 = vadd.f32 %v246, %v1676
    %v1679 = vxor.u32 %v1598, 2147483648
    %v1680 = vmul.f32 %v1679, 1.442695
    %v1681 = vpow.pop %v1680
    %v1682 = vadd.f32 %v1681, 1.0
    %v1683 = vrcp.pop %v1682
    %v1684 = vmul.f32 1.0, %v1683
    %v1685 = vtanh.pop %v1598
    %v1687 = vrot.slane %v1485, 6
    %v1689 = vmul.f32 %v1684, %v1687
    %1691 = vrot.lane.b32.xlu0 %v1685, 64
    %v1692 = vpop.permute.xlu0 %1691
    %v1694 = vmul.f32 %v1684, %v1692
    %1696 = vrot.lane.b32.xlu0 %v1694, 32
    %v1697 = vpop.permute.xlu0 %1696
    %v1699 = vadd.f32 %v1689, %v1697
    %v1700 = vtanh.pop %v1699
    %1702 = vrot.lane.b32.xlu0 %v1700, 64
    %v1703 = vpop.permute.xlu0 %1702
    %v1705 = vmul.f32 %v1684, %v1703
    %v1706 = vxor.u32 %v1678, 2147483648
    %v1707 = vmul.f32 %v1706, 1.442695
    %v1708 = vpow.pop %v1707
    %v1709 = vadd.f32 %v1708, 1.0
    %v1710 = vrcp.pop %v1709
    %v1711 = vmul.f32 1.0, %v1710
    %v1712 = vtanh.pop %v1678
    %v1714 = vrot.slane %v1512, 2
    %v1716 = vmul.f32 %v1711, %v1714
    %1718 = vrot.lane.b32.xlu0 %v1712, 64
    %v1719 = vpop.permute.xlu0 %1718
    %v1721 = vmul.f32 %v1711, %v1719
    %1723 = vrot.lane.b32.xlu0 %v1721, 32
    %v1724 = vpop.permute.xlu0 %1723
    %v1726 = vadd.f32 %v1716, %v1724
    %v1727 = vtanh.pop %v1726
    %1729 = vrot.lane.b32.xlu0 %v1727, 64
    %v1730 = vpop.permute.xlu0 %1729
    %v1732 = vmul.f32 %v1711, %v1730
    %v1734 = vrot.slane %v1705, 4
    %1735 = vrot.lane.b32.xlu0 %v1734, 32
    %v1736 = vpop.permute.xlu0 %1735
    %v1737 = vsel %vm170, %v1736, 0
    %1739 = vmatprep.subr.mxu0 0.0
    %1740 = vmatpush1.msra.mxu0 %v254
    %1741 = vmatprep.subr.mxu0 0.0
    %1742 = vmatpush1.msra.mxu0 %v255
    %1743 = vmatprep.subr.mxu0 0.0
    %1744 = vmatpush1.msra.mxu0 %v256
    %1745 = vmatprep.subr.mxu0 0.0
    %1746 = vmatpush1.msra.mxu0 %v257
    %1747 = vmatprep.subr.mxu0 0.0
    %1748 = vmatpush1.msra.mxu0 0.0
    %1749 = vmatprep.subr.mxu0 0.0
    %1750 = vmatpush1.msra.mxu0 0.0
    %1751 = vmatprep.subr.mxu0 0.0
    %1752 = vmatpush1.msra.mxu0 0.0
    %1753 = vmatprep.subr.mxu0 0.0
    %1754 = vmatpush1.msra.mxu0 0.0
    %1755 = vmatprep.subr.mxu0 0.0
    %1756 = vmatpush1.msra.mxu0 0.0
    %1757 = vmatprep.subr.mxu0 0.0
    %1758 = vmatpush1.msra.mxu0 0.0
    %1759 = vmatprep.subr.mxu0 0.0
    %1760 = vmatpush1.msra.mxu0 0.0
    %1761 = vmatprep.subr.mxu0 0.0
    %1762 = vmatpush1.msra.mxu0 0.0
    %1763 = vmatprep.subr.mxu0 0.0
    %1764 = vmatpush1.msra.mxu0 0.0
    %1765 = vmatprep.subr.mxu0 0.0
    %1766 = vmatpush1.msra.mxu0 0.0
    %1767 = vmatprep.subr.mxu0 0.0
    %1768 = vmatpush1.msra.mxu0 0.0
    %1769 = vmatprep.subr.mxu0 0.0
    %1770 = vmatpush1.msra.mxu0 0.0
    %1771 = vmatprep.subr.mxu0 0.0
    %1772 = vmatpush1.msra.mxu0 0.0
    %1773 = vmatprep.subr.mxu0 0.0
    %1774 = vmatpush1.msra.mxu0 0.0
    %1775 = vmatprep.subr.mxu0 0.0
    %1776 = vmatpush1.msra.mxu0 0.0
    %1777 = vmatprep.subr.mxu0 0.0
    %1778 = vmatpush1.msra.mxu0 0.0
    %1779 = vmatprep.subr.mxu0 0.0
    %1780 = vmatpush1.msra.mxu0 0.0
    %1781 = vmatprep.subr.mxu0 0.0
    %1782 = vmatpush1.msra.mxu0 0.0
    %1783 = vmatprep.subr.mxu0 0.0
    %1784 = vmatpush1.msra.mxu0 0.0
    %1785 = vmatprep.subr.mxu0 0.0
    %1786 = vmatpush1.msra.mxu0 0.0
    %1787 = vmatprep.subr.mxu0 0.0
    %1788 = vmatpush1.msra.mxu0 0.0
    %1789 = vmatprep.subr.mxu0 0.0
    %1790 = vmatpush1.msra.mxu0 0.0
    %1791 = vmatprep.subr.mxu0 0.0
    %1792 = vmatpush1.msra.mxu0 0.0
    %1793 = vmatprep.subr.mxu0 0.0
    %1794 = vmatpush1.msra.mxu0 0.0
    %1795 = vmatprep.subr.mxu0 0.0
    %1796 = vmatpush1.msra.mxu0 0.0
    %1797 = vmatprep.subr.mxu0 0.0
    %1798 = vmatpush1.msra.mxu0 0.0
    %1799 = vmatprep.subr.mxu0 0.0
    %1800 = vmatpush1.msra.mxu0 0.0
    %1801 = vmatprep.subr.mxu0 0.0
    %1802 = vmatpush1.msra.mxu0 0.0
    %1803 = vmatprep.mubr.f32.mxu0 0.0
    %1804 = vmatmul.mubr.f32.gmra.mrb[0].mxu0 %v1737
    %v1805 = vpop.f32.mrb[0].mxu0
    %v1806 = vadd.f32 0.0, %v1805
    %v1807 = vpop.f32.mrb[0].mxu0
    %1808 = vdwg.mxu0
    %v1810 = vrot.slane %v1806, 2
    %v1812 = vadd.f32 %v250, %v1810
    %v1814 = vrot.slane %v1732, 2
    %1815 = vrot.lane.b32.xlu0 %v1814, 32
    %v1816 = vpop.permute.xlu0 %1815
    %v1817 = vsel %vm170, %v1816, 0
    %1819 = vmatprep.subr.mxu0 0.0
    %1820 = vmatpush1.msra.mxu0 %v258
    %1821 = vmatprep.subr.mxu0 0.0
    %1822 = vmatpush1.msra.mxu0 %v259
    %1823 = vmatprep.subr.mxu0 0.0
    %1824 = vmatpush1.msra.mxu0 %v260
    %1825 = vmatprep.subr.mxu0 0.0
    %1826 = vmatpush1.msra.mxu0 %v261
    %1827 = vmatprep.subr.mxu0 0.0
    %1828 = vmatpush1.msra.mxu0 0.0
    %1829 = vmatprep.subr.mxu0 0.0
    %1830 = vmatpush1.msra.mxu0 0.0
    %1831 = vmatprep.subr.mxu0 0.0
    %1832 = vmatpush1.msra.mxu0 0.0
    %1833 = vmatprep.subr.mxu0 0.0
    %1834 = vmatpush1.msra.mxu0 0.0
    %1835 = vmatprep.subr.mxu0 0.0
    %1836 = vmatpush1.msra.mxu0 0.0
    %1837 = vmatprep.subr.mxu0 0.0
    %1838 = vmatpush1.msra.mxu0 0.0
    %1839 = vmatprep.subr.mxu0 0.0
    %1840 = vmatpush1.msra.mxu0 0.0
    %1841 = vmatprep.subr.mxu0 0.0
    %1842 = vmatpush1.msra.mxu0 0.0
    %1843 = vmatprep.subr.mxu0 0.0
    %1844 = vmatpush1.msra.mxu0 0.0
    %1845 = vmatprep.subr.mxu0 0.0
    %1846 = vmatpush1.msra.mxu0 0.0
    %1847 = vmatprep.subr.mxu0 0.0
    %1848 = vmatpush1.msra.mxu0 0.0
    %1849 = vmatprep.subr.mxu0 0.0
    %1850 = vmatpush1.msra.mxu0 0.0
    %1851 = vmatprep.subr.mxu0 0.0
    %1852 = vmatpush1.msra.mxu0 0.0
    %1853 = vmatprep.subr.mxu0 0.0
    %1854 = vmatpush1.msra.mxu0 0.0
    %1855 = vmatprep.subr.mxu0 0.0
    %1856 = vmatpush1.msra.mxu0 0.0
    %1857 = vmatprep.subr.mxu0 0.0
    %1858 = vmatpush1.msra.mxu0 0.0
    %1859 = vmatprep.subr.mxu0 0.0
    %1860 = vmatpush1.msra.mxu0 0.0
    %1861 = vmatprep.subr.mxu0 0.0
    %1862 = vmatpush1.msra.mxu0 0.0
    %1863 = vmatprep.subr.mxu0 0.0
    %1864 = vmatpush1.msra.mxu0 0.0
    %1865 = vmatprep.subr.mxu0 0.0
    %1866 = vmatpush1.msra.mxu0 0.0
    %1867 = vmatprep.subr.mxu0 0.0
    %1868 = vmatpush1.msra.mxu0 0.0
    %1869 = vmatprep.subr.mxu0 0.0
    %1870 = vmatpush1.msra.mxu0 0.0
    %1871 = vmatprep.subr.mxu0 0.0
    %1872 = vmatpush1.msra.mxu0 0.0
    %1873 = vmatprep.subr.mxu0 0.0
    %1874 = vmatpush1.msra.mxu0 0.0
    %1875 = vmatprep.subr.mxu0 0.0
    %1876 = vmatpush1.msra.mxu0 0.0
    %1877 = vmatprep.subr.mxu0 0.0
    %1878 = vmatpush1.msra.mxu0 0.0
    %1879 = vmatprep.subr.mxu0 0.0
    %1880 = vmatpush1.msra.mxu0 0.0
    %1881 = vmatprep.subr.mxu0 0.0
    %1882 = vmatpush1.msra.mxu0 0.0
    %1883 = vmatprep.mubr.f32.mxu0 0.0
    %1884 = vmatmul.mubr.f32.gmra.mrb[0].mxu0 %v1817
    %v1885 = vpop.f32.mrb[0].mxu0
    %v1886 = vadd.f32 0.0, %v1885
    %v1887 = vpop.f32.mrb[0].mxu0
    %1888 = vdwg.mxu0
    %v1889 = vadd.f32 %v246, %v1886
    %v1890 = vxor.u32 %v1812, 2147483648
    %v1891 = vmul.f32 %v1890, 1.442695
    %v1892 = vpow.pop %v1891
    %v1893 = vadd.f32 %v1892, 1.0
    %v1894 = vrcp.pop %v1893
    %v1895 = vmul.f32 1.0, %v1894
    %v1896 = vtanh.pop %v1812
    %v1898 = vrot.slane %v1699, 6
    %v1900 = vmul.f32 %v1895, %v1898
    %1902 = vrot.lane.b32.xlu0 %v1896, 64
    %v1903 = vpop.permute.xlu0 %1902
    %v1905 = vmul.f32 %v1895, %v1903
    %1907 = vrot.lane.b32.xlu0 %v1905, 32
    %v1908 = vpop.permute.xlu0 %1907
    %v1910 = vadd.f32 %v1900, %v1908
    %v1911 = vtanh.pop %v1910
    %1913 = vrot.lane.b32.xlu0 %v1911, 64
    %v1914 = vpop.permute.xlu0 %1913
    %v1916 = vmul.f32 %v1895, %v1914
    %v1917 = vxor.u32 %v1889, 2147483648
    %v1918 = vmul.f32 %v1917, 1.442695
    %v1919 = vpow.pop %v1918
    %v1920 = vadd.f32 %v1919, 1.0
    %v1921 = vrcp.pop %v1920
    %v1922 = vmul.f32 1.0, %v1921
    %v1923 = vtanh.pop %v1889
    %v1925 = vrot.slane %v1726, 2
    %v1927 = vmul.f32 %v1922, %v1925
    %1929 = vrot.lane.b32.xlu0 %v1923, 64
    %v1930 = vpop.permute.xlu0 %1929
    %v1932 = vmul.f32 %v1922, %v1930
    %1934 = vrot.lane.b32.xlu0 %v1932, 32
    %v1935 = vpop.permute.xlu0 %1934
    %v1937 = vadd.f32 %v1927, %v1935
    %v1938 = vtanh.pop %v1937
    %1940 = vrot.lane.b32.xlu0 %v1938, 64
    %v1941 = vpop.permute.xlu0 %1940
    %v1943 = vmul.f32 %v1922, %v1941
    %1946 = vrot.lane.b32.xlu0 %v1943, 64
    %v1947 = vpop.permute.xlu0 %1946
    %v1949 = vsel %vm170, %v460, %v1947
    %1950 = vrot.lane.b32.xlu0 %v643, 32
    %v1951 = vpop.permute.xlu0 %1950
    %1953 = vrot.lane.b32.xlu0 %v1732, 64
    %v1954 = vpop.permute.xlu0 %1953
    %v1956 = vsel %vm170, %v1951, %v1954
    %1957 = vrot.lane.b32.xlu0 %v857, 32
    %v1958 = vpop.permute.xlu0 %1957
    %1960 = vrot.lane.b32.xlu0 %v1518, 64
    %v1961 = vpop.permute.xlu0 %1960
    %v1963 = vsel %vm170, %v1958, %v1961
    %1964 = vrot.lane.b32.xlu0 %v1068, 32
    %v1965 = vpop.permute.xlu0 %1964
    %1967 = vrot.lane.b32.xlu0 %v1305, 64
    %v1968 = vpop.permute.xlu0 %1967
    %v1970 = vsel %vm170, %v1965, %v1968
    %1972 = vrot.lane.b32.xlu0 %v1095, 64
    %v1973 = vpop.permute.xlu0 %1972
    %v1975 = vsel %vm170, %v1308, %v1973
    %1976 = vrot.lane.b32.xlu0 %v1491, 32
    %v1977 = vpop.permute.xlu0 %1976
    %1979 = vrot.lane.b32.xlu0 %v884, 64
    %v1980 = vpop.permute.xlu0 %1979
    %v1982 = vsel %vm170, %v1977, %v1980
    %1983 = vrot.lane.b32.xlu0 %v1705, 32
    %v1984 = vpop.permute.xlu0 %1983
    %1986 = vrot.lane.b32.xlu0 %v670, 64
    %v1987 = vpop.permute.xlu0 %1986
    %v1989 = vsel %vm170, %v1984, %v1987
    %1991 = vrot.lane.b32.xlu0 %v1916, 32
    %v1992 = vpop.permute.xlu0 %1991
    %1994 = vrot.lane.b32.xlu0 %v457, 64
    %v1995 = vpop.permute.xlu0 %1994
    %v1997 = vsel %vm170, %v1992, %v1995
    %vm1998 = vcmask 1041408
    %v1999 = vsel %vm1998, %v1949, %v1956
    %vm2000 = vcmask 1043456
    %v2001 = vsel %vm2000, %v1999, %v1963
    %vm2002 = vcmask 1045504
    %v2003 = vsel %vm2002, %v2001, %v1970
    %v2004 = vsel %vm1998, %v1975, %v1982
    %v2005 = vsel %vm2000, %v2004, %v1989
    %v2006 = vsel %vm2002, %v2005, %v1997
    %v2007 = vld [vmem:[#allocation10] sm:$0xff]
    %v2008 = vld [vmem:[#allocation10 + $0x8] sm:$0xff]
    %v2009 = vld [vmem:[#allocation10 + $0x10] sm:$0xff]
    %v2010 = vld [vmem:[#allocation10 + $0x18] sm:$0xff]
    %v2011 = vld [vmem:[#allocation10 + $0x20] sm:$0xff]
    %v2012 = vld [vmem:[#allocation10 + $0x28] sm:$0xff]
    %v2013 = vld [vmem:[#allocation10 + $0x30] sm:$0xff]
    %v2014 = vld [vmem:[#allocation10 + $0x38] sm:$0xff]
    %v2015 = vld [vmem:[#allocation10 + $0x40] sm:$0xff]
    %v2016 = vld [vmem:[#allocation10 + $0x48] sm:$0xff]
    %v2017 = vld [vmem:[#allocation10 + $0x50] sm:$0xff]
    %v2018 = vld [vmem:[#allocation10 + $0x58] sm:$0xff]
    %v2019 = vld [vmem:[#allocation10 + $0x60] sm:$0xff]
    %v2020 = vld [vmem:[#allocation10 + $0x68] sm:$0xff]
    %v2021 = vld [vmem:[#allocation10 + $0x70] sm:$0xff]
    %v2022 = vld [vmem:[#allocation10 + $0x78] sm:$0xff]
    %v2023 = vld [vmem:[%s8] sm:$0x3]
    %v2025 = vlaneseq
    %v2026 = vshrl.u32 %v2025, 7
    %v2027 = vsub.s32 0, %v2026
    %v2028 = vrot.slane %v2023, %v2027
    %v2029 = vlaneseq
    %v2030 = vshrl.u32 %v2029, 7
    %v2031 = vsub.s32 1, %v2030
    %v2032 = vrot.slane %v2023, %v2031
    %vm2035 = vcmask 523264
    %v2037 = vsel %vm2035, %v2003, 0
    %v2040 = vsel %vm2035, %v2006, 0
    %2042 = vmatprep.subr.mxu0 %v2008
    %2043 = vmatpush1.msra.mxu0 %v2007
    %2044 = vmatprep.subr.mxu0 %v2010
    %2045 = vmatpush1.msra.mxu0 %v2009
    %2046 = vmatprep.subr.mxu0 %v2012
    %2047 = vmatpush1.msra.mxu0 %v2011
    %2048 = vmatprep.subr.mxu0 %v2014
    %2049 = vmatpush1.msra.mxu0 %v2013
    %2050 = vmatprep.subr.mxu0 %v2016
    %2051 = vmatpush1.msra.mxu0 %v2015
    %2052 = vmatprep.subr.mxu0 %v2018
    %2053 = vmatpush1.msra.mxu0 %v2017
    %2054 = vmatprep.subr.mxu0 %v2020
    %2055 = vmatpush1.msra.mxu0 %v2019
    %2056 = vmatprep.subr.mxu0 %v2022
    %2057 = vmatpush1.msra.mxu0 %v2021
    %2058 = vmatprep.subr.mxu0 0.0
    %2059 = vmatpush1.msra.mxu0 0.0
    %2060 = vmatprep.subr.mxu0 0.0
    %2061 = vmatpush1.msra.mxu0 0.0
    %2062 = vmatprep.subr.mxu0 0.0
    %2063 = vmatpush1.msra.mxu0 0.0
    %2064 = vmatprep.subr.mxu0 0.0
    %2065 = vmatpush1.msra.mxu0 0.0
    %2066 = vmatprep.subr.mxu0 0.0
    %2067 = vmatpush1.msra.mxu0 0.0
    %2068 = vmatprep.subr.mxu0 0.0
    %2069 = vmatpush1.msra.mxu0 0.0
    %2070 = vmatprep.subr.mxu0 0.0
    %2071 = vmatpush1.msra.mxu0 0.0
    %2072 = vmatprep.subr.mxu0 0.0
    %2073 = vmatpush1.msra.mxu0 0.0
    %2074 = vmatprep.subr.mxu0 0.0
    %2075 = vmatpush1.msra.mxu0 0.0
    %2076 = vmatprep.subr.mxu0 0.0
    %2077 = vmatpush1.msra.mxu0 0.0
    %2078 = vmatprep.subr.mxu0 0.0
    %2079 = vmatpush1.msra.mxu0 0.0
    %2080 = vmatprep.subr.mxu0 0.0
    %2081 = vmatpush1.msra.mxu0 0.0
    %2082 = vmatprep.subr.mxu0 0.0
    %2083 = vmatpush1.msra.mxu0 0.0
    %2084 = vmatprep.subr.mxu0 0.0
    %2085 = vmatpush1.msra.mxu0 0.0
    %2086 = vmatprep.subr.mxu0 0.0
    %2087 = vmatpush1.msra.mxu0 0.0
    %2088 = vmatprep.subr.mxu0 0.0
    %2089 = vmatpush1.msra.mxu0 0.0
    %2090 = vmatprep.subr.mxu0 0.0
    %2091 = vmatpush1.msra.mxu0 0.0
    %2092 = vmatprep.subr.mxu0 0.0
    %2093 = vmatpush1.msra.mxu0 0.0
    %2094 = vmatprep.subr.mxu0 0.0
    %2095 = vmatpush1.msra.mxu0 0.0
    %2096 = vmatprep.subr.mxu0 0.0
    %2097 = vmatpush1.msra.mxu0 0.0
    %2098 = vmatprep.subr.mxu0 0.0
    %2099 = vmatpush1.msra.mxu0 0.0
    %2100 = vmatprep.subr.mxu0 0.0
    %2101 = vmatpush1.msra.mxu0 0.0
    %2102 = vmatprep.subr.mxu0 0.0
    %2103 = vmatpush1.msra.mxu0 0.0
    %2104 = vmatprep.subr.mxu0 0.0
    %2105 = vmatpush1.msra.mxu0 0.0
    %2106 = vmatprep.mubr.f32.mxu0 0.0
    %2107 = vmatmul.mubr.f32.gmra.mrb[0].mxu0 %v2037
    %v2108 = vpop.f32.mrb[0].mxu0
    %v2109 = vadd.f32 %v2028, %v2108
    %v2110 = vpop.f32.mrb[0].mxu0
    %v2111 = vadd.f32 %v2032, %v2110
    %2112 = vmatprep.mubr.f32.mxu0 0.0
    %2113 = vmatmul.mubr.f32.gmra.mrb[0].mxu0 %v2040
    %v2114 = vpop.f32.mrb[0].mxu0
    %v2115 = vadd.f32 %v2028, %v2114
    %v2116 = vpop.f32.mrb[0].mxu0
    %v2117 = vadd.f32 %v2032, %v2116
    %2118 = vdwg.mxu0
    %v2119 = vld [vmem:[#allocation11] sm:$0xff]
    %v2120 = vld [vmem:[#allocation11 + $0x8] sm:$0xff]
    %v2121 = vld [vmem:[#allocation11 + $0x10] sm:$0xff]
    %v2122 = vld [vmem:[#allocation11 + $0x18] sm:$0xff]
    %v2123 = vld [vmem:[#allocation13] sm:$0xff]
    %v2124 = vld [vmem:[#allocation13 + $0x8] sm:$0xff]
    %v2125 = vld [vmem:[#allocation13 + $0x10] sm:$0xff]
    %v2126 = vld [vmem:[#allocation13 + $0x18] sm:$0xff]
    %2127 = vmatprep.subr.mxu0 0.0
    %2128 = vmatpush1.msra.mxu0 %v2119
    %2129 = vmatprep.subr.mxu0 0.0
    %2130 = vmatpush1.msra.mxu0 %v2120
    %2131 = vmatprep.subr.mxu0 0.0
    %2132 = vmatpush1.msra.mxu0 %v2121
    %2133 = vmatprep.subr.mxu0 0.0
    %2134 = vmatpush1.msra.mxu0 %v2122
    %2135 = vmatprep.subr.mxu0 0.0
    %2136 = vmatpush1.msra.mxu0 0.0
    %2137 = vmatprep.subr.mxu0 0.0
    %2138 = vmatpush1.msra.mxu0 0.0
    %2139 = vmatprep.subr.mxu0 0.0
    %2140 = vmatpush1.msra.mxu0 0.0
    %2141 = vmatprep.subr.mxu0 0.0
    %2142 = vmatpush1.msra.mxu0 0.0
    %2143 = vmatprep.subr.mxu0 0.0
    %2144 = vmatpush1.msra.mxu0 0.0
    %2145 = vmatprep.subr.mxu0 0.0
    %2146 = vmatpush1.msra.mxu0 0.0
    %2147 = vmatprep.subr.mxu0 0.0
    %2148 = vmatpush1.msra.mxu0 0.0
    %2149 = vmatprep.subr.mxu0 0.0
    %2150 = vmatpush1.msra.mxu0 0.0
    %2151 = vmatprep.subr.mxu0 0.0
    %2152 = vmatpush1.msra.mxu0 0.0
    %2153 = vmatprep.subr.mxu0 0.0
    %2154 = vmatpush1.msra.mxu0 0.0
    %2155 = vmatprep.subr.mxu0 0.0
    %2156 = vmatpush1.msra.mxu0 0.0
    %2157 = vmatprep.subr.mxu0 0.0
    %2158 = vmatpush1.msra.mxu0 0.0
    %2159 = vmatprep.subr.mxu0 0.0
    %2160 = vmatpush1.msra.mxu0 0.0
    %2161 = vmatprep.subr.mxu0 0.0
    %2162 = vmatpush1.msra.mxu0 0.0
    %2163 = vmatprep.subr.mxu0 0.0
    %2164 = vmatpush1.msra.mxu0 0.0
    %2165 = vmatprep.subr.mxu0 0.0
    %2166 = vmatpush1.msra.mxu0 0.0
    %2167 = vmatprep.subr.mxu0 0.0
    %2168 = vmatpush1.msra.mxu0 0.0
    %2169 = vmatprep.subr.mxu0 0.0
    %2170 = vmatpush1.msra.mxu0 0.0
    %2171 = vmatprep.subr.mxu0 0.0
    %2172 = vmatpush1.msra.mxu0 0.0
    %2173 = vmatprep.subr.mxu0 0.0
    %2174 = vmatpush1.msra.mxu0 0.0
    %2175 = vmatprep.subr.mxu0 0.0
    %2176 = vmatpush1.msra.mxu0 0.0
    %2177 = vmatprep.subr.mxu0 0.0
    %2178 = vmatpush1.msra.mxu0 0.0
    %2179 = vmatprep.subr.mxu0 0.0
    %2180 = vmatpush1.msra.mxu0 0.0
    %2181 = vmatprep.subr.mxu0 0.0
    %2182 = vmatpush1.msra.mxu0 0.0
    %2183 = vmatprep.subr.mxu0 0.0
    %2184 = vmatpush1.msra.mxu0 0.0
    %2185 = vmatprep.subr.mxu0 0.0
    %2186 = vmatpush1.msra.mxu0 0.0
    %2187 = vmatprep.subr.mxu0 0.0
    %2188 = vmatpush1.msra.mxu0 0.0
    %2189 = vmatprep.subr.mxu0 0.0
    %2190 = vmatpush1.msra.mxu0 0.0
    %2191 = vmatprep.mubr.f32.mxu0 0.0
    %2192 = vmatmul.mubr.f32.gmra.mrb[0].mxu0 %v263
    %v2193 = vpop.f32.mrb[0].mxu0
    %v2194 = vadd.f32 0.0, %v2193
    %v2195 = vpop.f32.mrb[0].mxu0
    %2196 = vdwg.mxu0
    %v2197 = vadd.f32 %v2109, %v2194
    %2198 = vmatprep.subr.mxu0 0.0
    %2199 = vmatpush1.msra.mxu0 %v2123
    %2200 = vmatprep.subr.mxu0 0.0
    %2201 = vmatpush1.msra.mxu0 %v2124
    %2202 = vmatprep.subr.mxu0 0.0
    %2203 = vmatpush1.msra.mxu0 %v2125
    %2204 = vmatprep.subr.mxu0 0.0
    %2205 = vmatpush1.msra.mxu0 %v2126
    %2206 = vmatprep.subr.mxu0 0.0
    %2207 = vmatpush1.msra.mxu0 0.0
    %2208 = vmatprep.subr.mxu0 0.0
    %2209 = vmatpush1.msra.mxu0 0.0
    %2210 = vmatprep.subr.mxu0 0.0
    %2211 = vmatpush1.msra.mxu0 0.0
    %2212 = vmatprep.subr.mxu0 0.0
    %2213 = vmatpush1.msra.mxu0 0.0
    %2214 = vmatprep.subr.mxu0 0.0
    %2215 = vmatpush1.msra.mxu0 0.0
    %2216 = vmatprep.subr.mxu0 0.0
    %2217 = vmatpush1.msra.mxu0 0.0
    %2218 = vmatprep.subr.mxu0 0.0
    %2219 = vmatpush1.msra.mxu0 0.0
    %2220 = vmatprep.subr.mxu0 0.0
    %2221 = vmatpush1.msra.mxu0 0.0
    %2222 = vmatprep.subr.mxu0 0.0
    %2223 = vmatpush1.msra.mxu0 0.0
    %2224 = vmatprep.subr.mxu0 0.0
    %2225 = vmatpush1.msra.mxu0 0.0
    %2226 = vmatprep.subr.mxu0 0.0
    %2227 = vmatpush1.msra.mxu0 0.0
    %2228 = vmatprep.subr.mxu0 0.0
    %2229 = vmatpush1.msra.mxu0 0.0
    %2230 = vmatprep.subr.mxu0 0.0
    %2231 = vmatpush1.msra.mxu0 0.0
    %2232 = vmatprep.subr.mxu0 0.0
    %2233 = vmatpush1.msra.mxu0 0.0
    %2234 = vmatprep.subr.mxu0 0.0
    %2235 = vmatpush1.msra.mxu0 0.0
    %2236 = vmatprep.subr.mxu0 0.0
    %2237 = vmatpush1.msra.mxu0 0.0
    %2238 = vmatprep.subr.mxu0 0.0
    %2239 = vmatpush1.msra.mxu0 0.0
    %2240 = vmatprep.subr.mxu0 0.0
    %2241 = vmatpush1.msra.mxu0 0.0
    %2242 = vmatprep.subr.mxu0 0.0
    %2243 = vmatpush1.msra.mxu0 0.0
    %2244 = vmatprep.subr.mxu0 0.0
    %2245 = vmatpush1.msra.mxu0 0.0
    %2246 = vmatprep.subr.mxu0 0.0
    %2247 = vmatpush1.msra.mxu0 0.0
    %2248 = vmatprep.subr.mxu0 0.0
    %2249 = vmatpush1.msra.mxu0 0.0
    %2250 = vmatprep.subr.mxu0 0.0
    %2251 = vmatpush1.msra.mxu0 0.0
    %2252 = vmatprep.subr.mxu0 0.0
    %2253 = vmatpush1.msra.mxu0 0.0
    %2254 = vmatprep.subr.mxu0 0.0
    %2255 = vmatpush1.msra.mxu0 0.0
    %2256 = vmatprep.subr.mxu0 0.0
    %2257 = vmatpush1.msra.mxu0 0.0
    %2258 = vmatprep.subr.mxu0 0.0
    %2259 = vmatpush1.msra.mxu0 0.0
    %2260 = vmatprep.subr.mxu0 0.0
    %2261 = vmatpush1.msra.mxu0 0.0
    %2262 = vmatprep.mubr.f32.mxu0 0.0
    %2263 = vmatmul.mubr.f32.gmra.mrb[0].mxu0 %v263
    %v2264 = vpop.f32.mrb[0].mxu0
    %v2265 = vadd.f32 0.0, %v2264
    %v2266 = vpop.f32.mrb[0].mxu0
    %2267 = vdwg.mxu0
    %v2269 = vrot.slane %v2265, 2
    %v2271 = vadd.f32 %v2117, %v2269
    %v2272 = vxor.u32 %v2197, 2147483648
    %v2273 = vmul.f32 %v2272, 1.442695
    %v2274 = vpow.pop %v2273
    %v2275 = vadd.f32 %v2274, 1.0
    %v2276 = vrcp.pop %v2275
    %v2277 = vmul.f32 1.0, %v2276
    %v2278 = vtanh.pop %v2197
    %v2279 = vmul.f32 %v2277, 0.0
    %2281 = vrot.lane.b32.xlu0 %v2278, 64
    %v2282 = vpop.permute.xlu0 %2281
    %v2284 = vmul.f32 %v2277, %v2282
    %2286 = vrot.lane.b32.xlu0 %v2284, 32
    %v2287 = vpop.permute.xlu0 %2286
    %v2289 = vadd.f32 %v2279, %v2287
    %v2290 = vtanh.pop %v2289
    %2292 = vrot.lane.b32.xlu0 %v2290, 64
    %v2293 = vpop.permute.xlu0 %2292
    %v2295 = vmul.f32 %v2277, %v2293
    %v2296 = vxor.u32 %v2271, 2147483648
    %v2297 = vmul.f32 %v2296, 1.442695
    %v2298 = vpow.pop %v2297
    %v2299 = vadd.f32 %v2298, 1.0
    %v2300 = vrcp.pop %v2299
    %v2301 = vmul.f32 1.0, %v2300
    %v2302 = vtanh.pop %v2271
    %v2303 = vmul.f32 %v2301, 0.0
    %2305 = vrot.lane.b32.xlu0 %v2302, 64
    %v2306 = vpop.permute.xlu0 %2305
    %v2308 = vmul.f32 %v2301, %v2306
    %2310 = vrot.lane.b32.xlu0 %v2308, 32
    %v2311 = vpop.permute.xlu0 %2310
    %v2313 = vadd.f32 %v2303, %v2311
    %v2314 = vtanh.pop %v2313
    %2316 = vrot.lane.b32.xlu0 %v2314, 64
    %v2317 = vpop.permute.xlu0 %2316
    %v2319 = vmul.f32 %v2301, %v2317
    %2321 = vrot.lane.b32.xlu0 %v2295, 32
    %v2322 = vpop.permute.xlu0 %2321
    %v2323 = vsel %vm170, %v2322, 0
    %2325 = vmatprep.subr.mxu0 0.0
    %2326 = vmatpush1.msra.mxu0 %v2119
    %2327 = vmatprep.subr.mxu0 0.0
    %2328 = vmatpush1.msra.mxu0 %v2120
    %2329 = vmatprep.subr.mxu0 0.0
    %2330 = vmatpush1.msra.mxu0 %v2121
    %2331 = vmatprep.subr.mxu0 0.0
    %2332 = vmatpush1.msra.mxu0 %v2122
    %2333 = vmatprep.subr.mxu0 0.0
    %2334 = vmatpush1.msra.mxu0 0.0
    %2335 = vmatprep.subr.mxu0 0.0
    %2336 = vmatpush1.msra.mxu0 0.0
    %2337 = vmatprep.subr.mxu0 0.0
    %2338 = vmatpush1.msra.mxu0 0.0
    %2339 = vmatprep.subr.mxu0 0.0
    %2340 = vmatpush1.msra.mxu0 0.0
    %2341 = vmatprep.subr.mxu0 0.0
    %2342 = vmatpush1.msra.mxu0 0.0
    %2343 = vmatprep.subr.mxu0 0.0
    %2344 = vmatpush1.msra.mxu0 0.0
    %2345 = vmatprep.subr.mxu0 0.0
    %2346 = vmatpush1.msra.mxu0 0.0
    %2347 = vmatprep.subr.mxu0 0.0
    %2348 = vmatpush1.msra.mxu0 0.0
    %2349 = vmatprep.subr.mxu0 0.0
    %2350 = vmatpush1.msra.mxu0 0.0
    %2351 = vmatprep.subr.mxu0 0.0
    %2352 = vmatpush1.msra.mxu0 0.0
    %2353 = vmatprep.subr.mxu0 0.0
    %2354 = vmatpush1.msra.mxu0 0.0
    %2355 = vmatprep.subr.mxu0 0.0
    %2356 = vmatpush1.msra.mxu0 0.0
    %2357 = vmatprep.subr.mxu0 0.0
    %2358 = vmatpush1.msra.mxu0 0.0
    %2359 = vmatprep.subr.mxu0 0.0
    %2360 = vmatpush1.msra.mxu0 0.0
    %2361 = vmatprep.subr.mxu0 0.0
    %2362 = vmatpush1.msra.mxu0 0.0
    %2363 = vmatprep.subr.mxu0 0.0
    %2364 = vmatpush1.msra.mxu0 0.0
    %2365 = vmatprep.subr.mxu0 0.0
    %2366 = vmatpush1.msra.mxu0 0.0
    %2367 = vmatprep.subr.mxu0 0.0
    %2368 = vmatpush1.msra.mxu0 0.0
    %2369 = vmatprep.subr.mxu0 0.0
    %2370 = vmatpush1.msra.mxu0 0.0
    %2371 = vmatprep.subr.mxu0 0.0
    %2372 = vmatpush1.msra.mxu0 0.0
    %2373 = vmatprep.subr.mxu0 0.0
    %2374 = vmatpush1.msra.mxu0 0.0
    %2375 = vmatprep.subr.mxu0 0.0
    %2376 = vmatpush1.msra.mxu0 0.0
    %2377 = vmatprep.subr.mxu0 0.0
    %2378 = vmatpush1.msra.mxu0 0.0
    %2379 = vmatprep.subr.mxu0 0.0
    %2380 = vmatpush1.msra.mxu0 0.0
    %2381 = vmatprep.subr.mxu0 0.0
    %2382 = vmatpush1.msra.mxu0 0.0
    %2383 = vmatprep.subr.mxu0 0.0
    %2384 = vmatpush1.msra.mxu0 0.0
    %2385 = vmatprep.subr.mxu0 0.0
    %2386 = vmatpush1.msra.mxu0 0.0
    %2387 = vmatprep.subr.mxu0 0.0
    %2388 = vmatpush1.msra.mxu0 0.0
    %2389 = vmatprep.mubr.f32.mxu0 0.0
    %2390 = vmatmul.mubr.f32.gmra.mrb[0].mxu0 %v2323
    %v2391 = vpop.f32.mrb[0].mxu0
    %v2392 = vadd.f32 0.0, %v2391
    %v2393 = vpop.f32.mrb[0].mxu0
    %2394 = vdwg.mxu0
    %v2396 = vrot.slane %v2392, 6
    %v2398 = vadd.f32 %v2109, %v2396
    %v2400 = vrot.slane %v2319, 6
    %2401 = vrot.lane.b32.xlu0 %v2400, 32
    %v2402 = vpop.permute.xlu0 %2401
    %v2403 = vsel %vm170, %v2402, 0
    %2405 = vmatprep.subr.mxu0 0.0
    %2406 = vmatpush1.msra.mxu0 %v2123
    %2407 = vmatprep.subr.mxu0 0.0
    %2408 = vmatpush1.msra.mxu0 %v2124
    %2409 = vmatprep.subr.mxu0 0.0
    %2410 = vmatpush1.msra.mxu0 %v2125
    %2411 = vmatprep.subr.mxu0 0.0
    %2412 = vmatpush1.msra.mxu0 %v2126
    %2413 = vmatprep.subr.mxu0 0.0
    %2414 = vmatpush1.msra.mxu0 0.0
    %2415 = vmatprep.subr.mxu0 0.0
    %2416 = vmatpush1.msra.mxu0 0.0
    %2417 = vmatprep.subr.mxu0 0.0
    %2418 = vmatpush1.msra.mxu0 0.0
    %2419 = vmatprep.subr.mxu0 0.0
    %2420 = vmatpush1.msra.mxu0 0.0
    %2421 = vmatprep.subr.mxu0 0.0
    %2422 = vmatpush1.msra.mxu0 0.0
    %2423 = vmatprep.subr.mxu0 0.0
    %2424 = vmatpush1.msra.mxu0 0.0
    %2425 = vmatprep.subr.mxu0 0.0
    %2426 = vmatpush1.msra.mxu0 0.0
    %2427 = vmatprep.subr.mxu0 0.0
    %2428 = vmatpush1.msra.mxu0 0.0
    %2429 = vmatprep.subr.mxu0 0.0
    %2430 = vmatpush1.msra.mxu0 0.0
    %2431 = vmatprep.subr.mxu0 0.0
    %2432 = vmatpush1.msra.mxu0 0.0
    %2433 = vmatprep.subr.mxu0 0.0
    %2434 = vmatpush1.msra.mxu0 0.0
    %2435 = vmatprep.subr.mxu0 0.0
    %2436 = vmatpush1.msra.mxu0 0.0
    %2437 = vmatprep.subr.mxu0 0.0
    %2438 = vmatpush1.msra.mxu0 0.0
    %2439 = vmatprep.subr.mxu0 0.0
    %2440 = vmatpush1.msra.mxu0 0.0
    %2441 = vmatprep.subr.mxu0 0.0
    %2442 = vmatpush1.msra.mxu0 0.0
    %2443 = vmatprep.subr.mxu0 0.0
    %2444 = vmatpush1.msra.mxu0 0.0
    %2445 = vmatprep.subr.mxu0 0.0
    %2446 = vmatpush1.msra.mxu0 0.0
    %2447 = vmatprep.subr.mxu0 0.0
    %2448 = vmatpush1.msra.mxu0 0.0
    %2449 = vmatprep.subr.mxu0 0.0
    %2450 = vmatpush1.msra.mxu0 0.0
    %2451 = vmatprep.subr.mxu0 0.0
    %2452 = vmatpush1.msra.mxu0 0.0
    %2453 = vmatprep.subr.mxu0 0.0
    %2454 = vmatpush1.msra.mxu0 0.0
    %2455 = vmatprep.subr.mxu0 0.0
    %2456 = vmatpush1.msra.mxu0 0.0
    %2457 = vmatprep.subr.mxu0 0.0
    %2458 = vmatpush1.msra.mxu0 0.0
    %2459 = vmatprep.subr.mxu0 0.0
    %2460 = vmatpush1.msra.mxu0 0.0
    %2461 = vmatprep.subr.mxu0 0.0
    %2462 = vmatpush1.msra.mxu0 0.0
    %2463 = vmatprep.subr.mxu0 0.0
    %2464 = vmatpush1.msra.mxu0 0.0
    %2465 = vmatprep.subr.mxu0 0.0
    %2466 = vmatpush1.msra.mxu0 0.0
    %2467 = vmatprep.subr.mxu0 0.0
    %2468 = vmatpush1.msra.mxu0 0.0
    %2469 = vmatprep.mubr.f32.mxu0 0.0
    %2470 = vmatmul.mubr.f32.gmra.mrb[0].mxu0 %v2403
    %v2471 = vpop.f32.mrb[0].mxu0
    %v2472 = vadd.f32 0.0, %v2471
    %v2473 = vpop.f32.mrb[0].mxu0
    %2474 = vdwg.mxu0
    %v2476 = vrot.slane %v2472, 4
    %v2478 = vadd.f32 %v2117, %v2476
    %v2479 = vxor.u32 %v2398, 2147483648
    %v2480 = vmul.f32 %v2479, 1.442695
    %v2481 = vpow.pop %v2480
    %v2482 = vadd.f32 %v2481, 1.0
    %v2483 = vrcp.pop %v2482
    %v2484 = vmul.f32 1.0, %v2483
    %v2485 = vtanh.pop %v2398
    %v2487 = vrot.slane %v2289, 6
    %v2489 = vmul.f32 %v2484, %v2487
    %2491 = vrot.lane.b32.xlu0 %v2485, 64
    %v2492 = vpop.permute.xlu0 %2491
    %v2494 = vmul.f32 %v2484, %v2492
    %2496 = vrot.lane.b32.xlu0 %v2494, 32
    %v2497 = vpop.permute.xlu0 %2496
    %v2499 = vadd.f32 %v2489, %v2497
    %v2500 = vtanh.pop %v2499
    %2502 = vrot.lane.b32.xlu0 %v2500, 64
    %v2503 = vpop.permute.xlu0 %2502
    %v2505 = vmul.f32 %v2484, %v2503
    %v2506 = vxor.u32 %v2478, 2147483648
    %v2507 = vmul.f32 %v2506, 1.442695
    %v2508 = vpow.pop %v2507
    %v2509 = vadd.f32 %v2508, 1.0
    %v2510 = vrcp.pop %v2509
    %v2511 = vmul.f32 1.0, %v2510
    %v2512 = vtanh.pop %v2478
    %v2514 = vrot.slane %v2313, 2
    %v2516 = vmul.f32 %v2511, %v2514
    %2518 = vrot.lane.b32.xlu0 %v2512, 64
    %v2519 = vpop.permute.xlu0 %2518
    %v2521 = vmul.f32 %v2511, %v2519
    %2523 = vrot.lane.b32.xlu0 %v2521, 32
    %v2524 = vpop.permute.xlu0 %2523
    %v2526 = vadd.f32 %v2516, %v2524
    %v2527 = vtanh.pop %v2526
    %2529 = vrot.lane.b32.xlu0 %v2527, 64
    %v2530 = vpop.permute.xlu0 %2529
    %v2532 = vmul.f32 %v2511, %v2530
    %v2534 = vrot.slane %v2505, 2
    %2535 = vrot.lane.b32.xlu0 %v2534, 32
    %v2536 = vpop.permute.xlu0 %2535
    %v2537 = vsel %vm170, %v2536, 0
    %2539 = vmatprep.subr.mxu0 0.0
    %2540 = vmatpush1.msra.mxu0 %v2119
    %2541 = vmatprep.subr.mxu0 0.0
    %2542 = vmatpush1.msra.mxu0 %v2120
    %2543 = vmatprep.subr.mxu0 0.0
    %2544 = vmatpush1.msra.mxu0 %v2121
    %2545 = vmatprep.subr.mxu0 0.0
    %2546 = vmatpush1.msra.mxu0 %v2122
    %2547 = vmatprep.subr.mxu0 0.0
    %2548 = vmatpush1.msra.mxu0 0.0
    %2549 = vmatprep.subr.mxu0 0.0
    %2550 = vmatpush1.msra.mxu0 0.0
    %2551 = vmatprep.subr.mxu0 0.0
    %2552 = vmatpush1.msra.mxu0 0.0
    %2553 = vmatprep.subr.mxu0 0.0
    %2554 = vmatpush1.msra.mxu0 0.0
    %2555 = vmatprep.subr.mxu0 0.0
    %2556 = vmatpush1.msra.mxu0 0.0
    %2557 = vmatprep.subr.mxu0 0.0
    %2558 = vmatpush1.msra.mxu0 0.0
    %2559 = vmatprep.subr.mxu0 0.0
    %2560 = vmatpush1.msra.mxu0 0.0
    %2561 = vmatprep.subr.mxu0 0.0
    %2562 = vmatpush1.msra.mxu0 0.0
    %2563 = vmatprep.subr.mxu0 0.0
    %2564 = vmatpush1.msra.mxu0 0.0
    %2565 = vmatprep.subr.mxu0 0.0
    %2566 = vmatpush1.msra.mxu0 0.0
    %2567 = vmatprep.subr.mxu0 0.0
    %2568 = vmatpush1.msra.mxu0 0.0
    %2569 = vmatprep.subr.mxu0 0.0
    %2570 = vmatpush1.msra.mxu0 0.0
    %2571 = vmatprep.subr.mxu0 0.0
    %2572 = vmatpush1.msra.mxu0 0.0
    %2573 = vmatprep.subr.mxu0 0.0
    %2574 = vmatpush1.msra.mxu0 0.0
    %2575 = vmatprep.subr.mxu0 0.0
    %2576 = vmatpush1.msra.mxu0 0.0
    %2577 = vmatprep.subr.mxu0 0.0
    %2578 = vmatpush1.msra.mxu0 0.0
    %2579 = vmatprep.subr.mxu0 0.0
    %2580 = vmatpush1.msra.mxu0 0.0
    %2581 = vmatprep.subr.mxu0 0.0
    %2582 = vmatpush1.msra.mxu0 0.0
    %2583 = vmatprep.subr.mxu0 0.0
    %2584 = vmatpush1.msra.mxu0 0.0
    %2585 = vmatprep.subr.mxu0 0.0
    %2586 = vmatpush1.msra.mxu0 0.0
    %2587 = vmatprep.subr.mxu0 0.0
    %2588 = vmatpush1.msra.mxu0 0.0
    %2589 = vmatprep.subr.mxu0 0.0
    %2590 = vmatpush1.msra.mxu0 0.0
    %2591 = vmatprep.subr.mxu0 0.0
    %2592 = vmatpush1.msra.mxu0 0.0
    %2593 = vmatprep.subr.mxu0 0.0
    %2594 = vmatpush1.msra.mxu0 0.0
    %2595 = vmatprep.subr.mxu0 0.0
    %2596 = vmatpush1.msra.mxu0 0.0
    %2597 = vmatprep.subr.mxu0 0.0
    %2598 = vmatpush1.msra.mxu0 0.0
    %2599 = vmatprep.subr.mxu0 0.0
    %2600 = vmatpush1.msra.mxu0 0.0
    %2601 = vmatprep.subr.mxu0 0.0
    %2602 = vmatpush1.msra.mxu0 0.0
    %2603 = vmatprep.mubr.f32.mxu0 0.0
    %2604 = vmatmul.mubr.f32.gmra.mrb[0].mxu0 %v2537
    %v2605 = vpop.f32.mrb[0].mxu0
    %v2606 = vadd.f32 0.0, %v2605
    %v2607 = vpop.f32.mrb[0].mxu0
    %2608 = vdwg.mxu0
    %v2610 = vrot.slane %v2606, 4
    %v2612 = vadd.f32 %v2109, %v2610
    %v2614 = vrot.slane %v2532, 4
    %2615 = vrot.lane.b32.xlu0 %v2614, 32
    %v2616 = vpop.permute.xlu0 %2615
    %v2617 = vsel %vm170, %v2616, 0
    %2619 = vmatprep.subr.mxu0 0.0
    %2620 = vmatpush1.msra.mxu0 %v2123
    %2621 = vmatprep.subr.mxu0 0.0
    %2622 = vmatpush1.msra.mxu0 %v2124
    %2623 = vmatprep.subr.mxu0 0.0
    %2624 = vmatpush1.msra.mxu0 %v2125
    %2625 = vmatprep.subr.mxu0 0.0
    %2626 = vmatpush1.msra.mxu0 %v2126
    %2627 = vmatprep.subr.mxu0 0.0
    %2628 = vmatpush1.msra.mxu0 0.0
    %2629 = vmatprep.subr.mxu0 0.0
    %2630 = vmatpush1.msra.mxu0 0.0
    %2631 = vmatprep.subr.mxu0 0.0
    %2632 = vmatpush1.msra.mxu0 0.0
    %2633 = vmatprep.subr.mxu0 0.0
    %2634 = vmatpush1.msra.mxu0 0.0
    %2635 = vmatprep.subr.mxu0 0.0
    %2636 = vmatpush1.msra.mxu0 0.0
    %2637 = vmatprep.subr.mxu0 0.0
    %2638 = vmatpush1.msra.mxu0 0.0
    %2639 = vmatprep.subr.mxu0 0.0
    %2640 = vmatpush1.msra.mxu0 0.0
    %2641 = vmatprep.subr.mxu0 0.0
    %2642 = vmatpush1.msra.mxu0 0.0
    %2643 = vmatprep.subr.mxu0 0.0
    %2644 = vmatpush1.msra.mxu0 0.0
    %2645 = vmatprep.subr.mxu0 0.0
    %2646 = vmatpush1.msra.mxu0 0.0
    %2647 = vmatprep.subr.mxu0 0.0
    %2648 = vmatpush1.msra.mxu0 0.0
    %2649 = vmatprep.subr.mxu0 0.0
    %2650 = vmatpush1.msra.mxu0 0.0
    %2651 = vmatprep.subr.mxu0 0.0
    %2652 = vmatpush1.msra.mxu0 0.0
    %2653 = vmatprep.subr.mxu0 0.0
    %2654 = vmatpush1.msra.mxu0 0.0
    %2655 = vmatprep.subr.mxu0 0.0
    %2656 = vmatpush1.msra.mxu0 0.0
    %2657 = vmatprep.subr.mxu0 0.0
    %2658 = vmatpush1.msra.mxu0 0.0
    %2659 = vmatprep.subr.mxu0 0.0
    %2660 = vmatpush1.msra.mxu0 0.0
    %2661 = vmatprep.subr.mxu0 0.0
    %2662 = vmatpush1.msra.mxu0 0.0
    %2663 = vmatprep.subr.mxu0 0.0
    %2664 = vmatpush1.msra.mxu0 0.0
    %2665 = vmatprep.subr.mxu0 0.0
    %2666 = vmatpush1.msra.mxu0 0.0
    %2667 = vmatprep.subr.mxu0 0.0
    %2668 = vmatpush1.msra.mxu0 0.0
    %2669 = vmatprep.subr.mxu0 0.0
    %2670 = vmatpush1.msra.mxu0 0.0
    %2671 = vmatprep.subr.mxu0 0.0
    %2672 = vmatpush1.msra.mxu0 0.0
    %2673 = vmatprep.subr.mxu0 0.0
    %2674 = vmatpush1.msra.mxu0 0.0
    %2675 = vmatprep.subr.mxu0 0.0
    %2676 = vmatpush1.msra.mxu0 0.0
    %2677 = vmatprep.subr.mxu0 0.0
    %2678 = vmatpush1.msra.mxu0 0.0
    %2679 = vmatprep.subr.mxu0 0.0
    %2680 = vmatpush1.msra.mxu0 0.0
    %2681 = vmatprep.subr.mxu0 0.0
    %2682 = vmatpush1.msra.mxu0 0.0
    %2683 = vmatprep.mubr.f32.mxu0 0.0
    %2684 = vmatmul.mubr.f32.gmra.mrb[0].mxu0 %v2617
    %v2685 = vpop.f32.mrb[0].mxu0
    %v2686 = vadd.f32 0.0, %v2685
    %v2687 = vpop.f32.mrb[0].mxu0
    %2688 = vdwg.mxu0
    %v2690 = vrot.slane %v2686, 6
    %v2692 = vadd.f32 %v2117, %v2690
    %v2693 = vxor.u32 %v2612, 2147483648
    %v2694 = vmul.f32 %v2693, 1.442695
    %v2695 = vpow.pop %v2694
    %v2696 = vadd.f32 %v2695, 1.0
    %v2697 = vrcp.pop %v2696
    %v2698 = vmul.f32 1.0, %v2697
    %v2699 = vtanh.pop %v2612
    %v2701 = vrot.slane %v2499, 6
    %v2703 = vmul.f32 %v2698, %v2701
    %2705 = vrot.lane.b32.xlu0 %v2699, 64
    %v2706 = vpop.permute.xlu0 %2705
    %v2708 = vmul.f32 %v2698, %v2706
    %2710 = vrot.lane.b32.xlu0 %v2708, 32
    %v2711 = vpop.permute.xlu0 %2710
    %v2713 = vadd.f32 %v2703, %v2711
    %v2714 = vtanh.pop %v2713
    %2716 = vrot.lane.b32.xlu0 %v2714, 64
    %v2717 = vpop.permute.xlu0 %2716
    %v2719 = vmul.f32 %v2698, %v2717
    %v2720 = vxor.u32 %v2692, 2147483648
    %v2721 = vmul.f32 %v2720, 1.442695
    %v2722 = vpow.pop %v2721
    %v2723 = vadd.f32 %v2722, 1.0
    %v2724 = vrcp.pop %v2723
    %v2725 = vmul.f32 1.0, %v2724
    %v2726 = vtanh.pop %v2692
    %v2728 = vrot.slane %v2526, 2
    %v2730 = vmul.f32 %v2725, %v2728
    %2732 = vrot.lane.b32.xlu0 %v2726, 64
    %v2733 = vpop.permute.xlu0 %2732
    %v2735 = vmul.f32 %v2725, %v2733
    %2737 = vrot.lane.b32.xlu0 %v2735, 32
    %v2738 = vpop.permute.xlu0 %2737
    %v2740 = vadd.f32 %v2730, %v2738
    %v2741 = vtanh.pop %v2740
    %2743 = vrot.lane.b32.xlu0 %v2741, 64
    %v2744 = vpop.permute.xlu0 %2743
    %v2746 = vmul.f32 %v2725, %v2744
    %v2748 = vrot.slane %v2719, 4
    %2749 = vrot.lane.b32.xlu0 %v2748, 32
    %v2750 = vpop.permute.xlu0 %2749
    %v2751 = vsel %vm170, %v2750, 0
    %2753 = vmatprep.subr.mxu0 0.0
    %2754 = vmatpush1.msra.mxu0 %v2119
    %2755 = vmatprep.subr.mxu0 0.0
    %2756 = vmatpush1.msra.mxu0 %v2120
    %2757 = vmatprep.subr.mxu0 0.0
    %2758 = vmatpush1.msra.mxu0 %v2121
    %2759 = vmatprep.subr.mxu0 0.0
    %2760 = vmatpush1.msra.mxu0 %v2122
    %2761 = vmatprep.subr.mxu0 0.0
    %2762 = vmatpush1.msra.mxu0 0.0
    %2763 = vmatprep.subr.mxu0 0.0
    %2764 = vmatpush1.msra.mxu0 0.0
    %2765 = vmatprep.subr.mxu0 0.0
    %2766 = vmatpush1.msra.mxu0 0.0
    %2767 = vmatprep.subr.mxu0 0.0
    %2768 = vmatpush1.msra.mxu0 0.0
    %2769 = vmatprep.subr.mxu0 0.0
    %2770 = vmatpush1.msra.mxu0 0.0
    %2771 = vmatprep.subr.mxu0 0.0
    %2772 = vmatpush1.msra.mxu0 0.0
    %2773 = vmatprep.subr.mxu0 0.0
    %2774 = vmatpush1.msra.mxu0 0.0
    %2775 = vmatprep.subr.mxu0 0.0
    %2776 = vmatpush1.msra.mxu0 0.0
    %2777 = vmatprep.subr.mxu0 0.0
    %2778 = vmatpush1.msra.mxu0 0.0
    %2779 = vmatprep.subr.mxu0 0.0
    %2780 = vmatpush1.msra.mxu0 0.0
    %2781 = vmatprep.subr.mxu0 0.0
    %2782 = vmatpush1.msra.mxu0 0.0
    %2783 = vmatprep.subr.mxu0 0.0
    %2784 = vmatpush1.msra.mxu0 0.0
    %2785 = vmatprep.subr.mxu0 0.0
    %2786 = vmatpush1.msra.mxu0 0.0
    %2787 = vmatprep.subr.mxu0 0.0
    %2788 = vmatpush1.msra.mxu0 0.0
    %2789 = vmatprep.subr.mxu0 0.0
    %2790 = vmatpush1.msra.mxu0 0.0
    %2791 = vmatprep.subr.mxu0 0.0
    %2792 = vmatpush1.msra.mxu0 0.0
    %2793 = vmatprep.subr.mxu0 0.0
    %2794 = vmatpush1.msra.mxu0 0.0
    %2795 = vmatprep.subr.mxu0 0.0
    %2796 = vmatpush1.msra.mxu0 0.0
    %2797 = vmatprep.subr.mxu0 0.0
    %2798 = vmatpush1.msra.mxu0 0.0
    %2799 = vmatprep.subr.mxu0 0.0
    %2800 = vmatpush1.msra.mxu0 0.0
    %2801 = vmatprep.subr.mxu0 0.0
    %2802 = vmatpush1.msra.mxu0 0.0
    %2803 = vmatprep.subr.mxu0 0.0
    %2804 = vmatpush1.msra.mxu0 0.0
    %2805 = vmatprep.subr.mxu0 0.0
    %2806 = vmatpush1.msra.mxu0 0.0
    %2807 = vmatprep.subr.mxu0 0.0
    %2808 = vmatpush1.msra.mxu0 0.0
    %2809 = vmatprep.subr.mxu0 0.0
    %2810 = vmatpush1.msra.mxu0 0.0
    %2811 = vmatprep.subr.mxu0 0.0
    %2812 = vmatpush1.msra.mxu0 0.0
    %2813 = vmatprep.subr.mxu0 0.0
    %2814 = vmatpush1.msra.mxu0 0.0
    %2815 = vmatprep.subr.mxu0 0.0
    %2816 = vmatpush1.msra.mxu0 0.0
    %2817 = vmatprep.mubr.f32.mxu0 0.0
    %2818 = vmatmul.mubr.f32.gmra.mrb[0].mxu0 %v2751
    %v2819 = vpop.f32.mrb[0].mxu0
    %v2820 = vadd.f32 0.0, %v2819
    %v2821 = vpop.f32.mrb[0].mxu0
    %2822 = vdwg.mxu0
    %v2824 = vrot.slane %v2820, 2
    %v2826 = vadd.f32 %v2109, %v2824
    %v2828 = vrot.slane %v2746, 2
    %2829 = vrot.lane.b32.xlu0 %v2828, 32
    %v2830 = vpop.permute.xlu0 %2829
    %v2831 = vsel %vm170, %v2830, 0
    %2833 = vmatprep.subr.mxu0 0.0
    %2834 = vmatpush1.msra.mxu0 %v2123
    %2835 = vmatprep.subr.mxu0 0.0
    %2836 = vmatpush1.msra.mxu0 %v2124
    %2837 = vmatprep.subr.mxu0 0.0
    %2838 = vmatpush1.msra.mxu0 %v2125
    %2839 = vmatprep.subr.mxu0 0.0
    %2840 = vmatpush1.msra.mxu0 %v2126
    %2841 = vmatprep.subr.mxu0 0.0
    %2842 = vmatpush1.msra.mxu0 0.0
    %2843 = vmatprep.subr.mxu0 0.0
    %2844 = vmatpush1.msra.mxu0 0.0
    %2845 = vmatprep.subr.mxu0 0.0
    %2846 = vmatpush1.msra.mxu0 0.0
    %2847 = vmatprep.subr.mxu0 0.0
    %2848 = vmatpush1.msra.mxu0 0.0
    %2849 = vmatprep.subr.mxu0 0.0
    %2850 = vmatpush1.msra.mxu0 0.0
    %2851 = vmatprep.subr.mxu0 0.0
    %2852 = vmatpush1.msra.mxu0 0.0
    %2853 = vmatprep.subr.mxu0 0.0
    %2854 = vmatpush1.msra.mxu0 0.0
    %2855 = vmatprep.subr.mxu0 0.0
    %2856 = vmatpush1.msra.mxu0 0.0
    %2857 = vmatprep.subr.mxu0 0.0
    %2858 = vmatpush1.msra.mxu0 0.0
    %2859 = vmatprep.subr.mxu0 0.0
    %2860 = vmatpush1.msra.mxu0 0.0
    %2861 = vmatprep.subr.mxu0 0.0
    %2862 = vmatpush1.msra.mxu0 0.0
    %2863 = vmatprep.subr.mxu0 0.0
    %2864 = vmatpush1.msra.mxu0 0.0
    %2865 = vmatprep.subr.mxu0 0.0
    %2866 = vmatpush1.msra.mxu0 0.0
    %2867 = vmatprep.subr.mxu0 0.0
    %2868 = vmatpush1.msra.mxu0 0.0
    %2869 = vmatprep.subr.mxu0 0.0
    %2870 = vmatpush1.msra.mxu0 0.0
    %2871 = vmatprep.subr.mxu0 0.0
    %2872 = vmatpush1.msra.mxu0 0.0
    %2873 = vmatprep.subr.mxu0 0.0
    %2874 = vmatpush1.msra.mxu0 0.0
    %2875 = vmatprep.subr.mxu0 0.0
    %2876 = vmatpush1.msra.mxu0 0.0
    %2877 = vmatprep.subr.mxu0 0.0
    %2878 = vmatpush1.msra.mxu0 0.0
    %2879 = vmatprep.subr.mxu0 0.0
    %2880 = vmatpush1.msra.mxu0 0.0
    %2881 = vmatprep.subr.mxu0 0.0
    %2882 = vmatpush1.msra.mxu0 0.0
    %2883 = vmatprep.subr.mxu0 0.0
    %2884 = vmatpush1.msra.mxu0 0.0
    %2885 = vmatprep.subr.mxu0 0.0
    %2886 = vmatpush1.msra.mxu0 0.0
    %2887 = vmatprep.subr.mxu0 0.0
    %2888 = vmatpush1.msra.mxu0 0.0
    %2889 = vmatprep.subr.mxu0 0.0
    %2890 = vmatpush1.msra.mxu0 0.0
    %2891 = vmatprep.subr.mxu0 0.0
    %2892 = vmatpush1.msra.mxu0 0.0
    %2893 = vmatprep.subr.mxu0 0.0
    %2894 = vmatpush1.msra.mxu0 0.0
    %2895 = vmatprep.subr.mxu0 0.0
    %2896 = vmatpush1.msra.mxu0 0.0
    %2897 = vmatprep.mubr.f32.mxu0 0.0
    %2898 = vmatmul.mubr.f32.gmra.mrb[0].mxu0 %v2831
    %v2899 = vpop.f32.mrb[0].mxu0
    %v2900 = vadd.f32 0.0, %v2899
    %v2901 = vpop.f32.mrb[0].mxu0
    %2902 = vdwg.mxu0
    %v2903 = vadd.f32 %v2117, %v2900
    %v2904 = vxor.u32 %v2826, 2147483648
    %v2905 = vmul.f32 %v2904, 1.442695
    %v2906 = vpow.pop %v2905
    %v2907 = vadd.f32 %v2906, 1.0
    %v2908 = vrcp.pop %v2907
    %v2909 = vmul.f32 1.0, %v2908
    %v2910 = vtanh.pop %v2826
    %v2912 = vrot.slane %v2713, 6
    %v2914 = vmul.f32 %v2909, %v2912
    %2916 = vrot.lane.b32.xlu0 %v2910, 64
    %v2917 = vpop.permute.xlu0 %2916
    %v2919 = vmul.f32 %v2909, %v2917
    %2921 = vrot.lane.b32.xlu0 %v2919, 32
    %v2922 = vpop.permute.xlu0 %2921
    %v2924 = vadd.f32 %v2914, %v2922
    %v2925 = vtanh.pop %v2924
    %2927 = vrot.lane.b32.xlu0 %v2925, 64
    %v2928 = vpop.permute.xlu0 %2927
    %v2930 = vmul.f32 %v2909, %v2928
    %v2931 = vxor.u32 %v2903, 2147483648
    %v2932 = vmul.f32 %v2931, 1.442695
    %v2933 = vpow.pop %v2932
    %v2934 = vadd.f32 %v2933, 1.0
    %v2935 = vrcp.pop %v2934
    %v2936 = vmul.f32 1.0, %v2935
    %v2937 = vtanh.pop %v2903
    %v2939 = vrot.slane %v2740, 2
    %v2941 = vmul.f32 %v2936, %v2939
    %2943 = vrot.lane.b32.xlu0 %v2937, 64
    %v2944 = vpop.permute.xlu0 %2943
    %v2946 = vmul.f32 %v2936, %v2944
    %2948 = vrot.lane.b32.xlu0 %v2946, 32
    %v2949 = vpop.permute.xlu0 %2948
    %v2951 = vadd.f32 %v2941, %v2949
    %v2952 = vtanh.pop %v2951
    %2954 = vrot.lane.b32.xlu0 %v2952, 64
    %v2955 = vpop.permute.xlu0 %2954
    %v2957 = vmul.f32 %v2936, %v2955
    %v2959 = vrot.slane %v2930, 6
    %2960 = vrot.lane.b32.xlu0 %v2959, 32
    %v2961 = vpop.permute.xlu0 %2960
    %v2962 = vsel %vm170, %v2961, 0
    %2964 = vmatprep.subr.mxu0 0.0
    %2965 = vmatpush1.msra.mxu0 %v2119
    %2966 = vmatprep.subr.mxu0 0.0
    %2967 = vmatpush1.msra.mxu0 %v2120
    %2968 = vmatprep.subr.mxu0 0.0
    %2969 = vmatpush1.msra.mxu0 %v2121
    %2970 = vmatprep.subr.mxu0 0.0
    %2971 = vmatpush1.msra.mxu0 %v2122
    %2972 = vmatprep.subr.mxu0 0.0
    %2973 = vmatpush1.msra.mxu0 0.0
    %2974 = vmatprep.subr.mxu0 0.0
    %2975 = vmatpush1.msra.mxu0 0.0
    %2976 = vmatprep.subr.mxu0 0.0
    %2977 = vmatpush1.msra.mxu0 0.0
    %2978 = vmatprep.subr.mxu0 0.0
    %2979 = vmatpush1.msra.mxu0 0.0
    %2980 = vmatprep.subr.mxu0 0.0
    %2981 = vmatpush1.msra.mxu0 0.0
    %2982 = vmatprep.subr.mxu0 0.0
    %2983 = vmatpush1.msra.mxu0 0.0
    %2984 = vmatprep.subr.mxu0 0.0
    %2985 = vmatpush1.msra.mxu0 0.0
    %2986 = vmatprep.subr.mxu0 0.0
    %2987 = vmatpush1.msra.mxu0 0.0
    %2988 = vmatprep.subr.mxu0 0.0
    %2989 = vmatpush1.msra.mxu0 0.0
    %2990 = vmatprep.subr.mxu0 0.0
    %2991 = vmatpush1.msra.mxu0 0.0
    %2992 = vmatprep.subr.mxu0 0.0
    %2993 = vmatpush1.msra.mxu0 0.0
    %2994 = vmatprep.subr.mxu0 0.0
    %2995 = vmatpush1.msra.mxu0 0.0
    %2996 = vmatprep.subr.mxu0 0.0
    %2997 = vmatpush1.msra.mxu0 0.0
    %2998 = vmatprep.subr.mxu0 0.0
    %2999 = vmatpush1.msra.mxu0 0.0
    %3000 = vmatprep.subr.mxu0 0.0
    %3001 = vmatpush1.msra.mxu0 0.0
    %3002 = vmatprep.subr.mxu0 0.0
    %3003 = vmatpush1.msra.mxu0 0.0
    %3004 = vmatprep.subr.mxu0 0.0
    %3005 = vmatpush1.msra.mxu0 0.0
    %3006 = vmatprep.subr.mxu0 0.0
    %3007 = vmatpush1.msra.mxu0 0.0
    %3008 = vmatprep.subr.mxu0 0.0
    %3009 = vmatpush1.msra.mxu0 0.0
    %3010 = vmatprep.subr.mxu0 0.0
    %3011 = vmatpush1.msra.mxu0 0.0
    %3012 = vmatprep.subr.mxu0 0.0
    %3013 = vmatpush1.msra.mxu0 0.0
    %3014 = vmatprep.subr.mxu0 0.0
    %3015 = vmatpush1.msra.mxu0 0.0
    %3016 = vmatprep.subr.mxu0 0.0
    %3017 = vmatpush1.msra.mxu0 0.0
    %3018 = vmatprep.subr.mxu0 0.0
    %3019 = vmatpush1.msra.mxu0 0.0
    %3020 = vmatprep.subr.mxu0 0.0
    %3021 = vmatpush1.msra.mxu0 0.0
    %3022 = vmatprep.subr.mxu0 0.0
    %3023 = vmatpush1.msra.mxu0 0.0
    %3024 = vmatprep.subr.mxu0 0.0
    %3025 = vmatpush1.msra.mxu0 0.0
    %3026 = vmatprep.subr.mxu0 0.0
    %3027 = vmatpush1.msra.mxu0 0.0
    %3028 = vmatprep.mubr.f32.mxu0 0.0
    %3029 = vmatmul.mubr.f32.gmra.mrb[0].mxu0 %v2962
    %v3030 = vpop.f32.mrb[0].mxu0
    %v3031 = vadd.f32 0.0, %v3030
    %v3032 = vpop.f32.mrb[0].mxu0
    %3033 = vdwg.mxu0
    %v3034 = vadd.f32 %v2115, %v3031
    %3036 = vrot.lane.b32.xlu0 %v2957, 32
    %v3037 = vpop.permute.xlu0 %3036
    %v3038 = vsel %vm170, %v3037, 0
    %3040 = vmatprep.subr.mxu0 0.0
    %3041 = vmatpush1.msra.mxu0 %v2123
    %3042 = vmatprep.subr.mxu0 0.0
    %3043 = vmatpush1.msra.mxu0 %v2124
    %3044 = vmatprep.subr.mxu0 0.0
    %3045 = vmatpush1.msra.mxu0 %v2125
    %3046 = vmatprep.subr.mxu0 0.0
    %3047 = vmatpush1.msra.mxu0 %v2126
    %3048 = vmatprep.subr.mxu0 0.0
    %3049 = vmatpush1.msra.mxu0 0.0
    %3050 = vmatprep.subr.mxu0 0.0
    %3051 = vmatpush1.msra.mxu0 0.0
    %3052 = vmatprep.subr.mxu0 0.0
    %3053 = vmatpush1.msra.mxu0 0.0
    %3054 = vmatprep.subr.mxu0 0.0
    %3055 = vmatpush1.msra.mxu0 0.0
    %3056 = vmatprep.subr.mxu0 0.0
    %3057 = vmatpush1.msra.mxu0 0.0
    %3058 = vmatprep.subr.mxu0 0.0
    %3059 = vmatpush1.msra.mxu0 0.0
    %3060 = vmatprep.subr.mxu0 0.0
    %3061 = vmatpush1.msra.mxu0 0.0
    %3062 = vmatprep.subr.mxu0 0.0
    %3063 = vmatpush1.msra.mxu0 0.0
    %3064 = vmatprep.subr.mxu0 0.0
    %3065 = vmatpush1.msra.mxu0 0.0
    %3066 = vmatprep.subr.mxu0 0.0
    %3067 = vmatpush1.msra.mxu0 0.0
    %3068 = vmatprep.subr.mxu0 0.0
    %3069 = vmatpush1.msra.mxu0 0.0
    %3070 = vmatprep.subr.mxu0 0.0
    %3071 = vmatpush1.msra.mxu0 0.0
    %3072 = vmatprep.subr.mxu0 0.0
    %3073 = vmatpush1.msra.mxu0 0.0
    %3074 = vmatprep.subr.mxu0 0.0
    %3075 = vmatpush1.msra.mxu0 0.0
    %3076 = vmatprep.subr.mxu0 0.0
    %3077 = vmatpush1.msra.mxu0 0.0
    %3078 = vmatprep.subr.mxu0 0.0
    %3079 = vmatpush1.msra.mxu0 0.0
    %3080 = vmatprep.subr.mxu0 0.0
    %3081 = vmatpush1.msra.mxu0 0.0
    %3082 = vmatprep.subr.mxu0 0.0
    %3083 = vmatpush1.msra.mxu0 0.0
    %3084 = vmatprep.subr.mxu0 0.0
    %3085 = vmatpush1.msra.mxu0 0.0
    %3086 = vmatprep.subr.mxu0 0.0
    %3087 = vmatpush1.msra.mxu0 0.0
    %3088 = vmatprep.subr.mxu0 0.0
    %3089 = vmatpush1.msra.mxu0 0.0
    %3090 = vmatprep.subr.mxu0 0.0
    %3091 = vmatpush1.msra.mxu0 0.0
    %3092 = vmatprep.subr.mxu0 0.0
    %3093 = vmatpush1.msra.mxu0 0.0
    %3094 = vmatprep.subr.mxu0 0.0
    %3095 = vmatpush1.msra.mxu0 0.0
    %3096 = vmatprep.subr.mxu0 0.0
    %3097 = vmatpush1.msra.mxu0 0.0
    %3098 = vmatprep.subr.mxu0 0.0
    %3099 = vmatpush1.msra.mxu0 0.0
    %3100 = vmatprep.subr.mxu0 0.0
    %3101 = vmatpush1.msra.mxu0 0.0
    %3102 = vmatprep.subr.mxu0 0.0
    %3103 = vmatpush1.msra.mxu0 0.0
    %3104 = vmatprep.mubr.f32.mxu0 0.0
    %3105 = vmatmul.mubr.f32.gmra.mrb[0].mxu0 %v3038
    %v3106 = vpop.f32.mrb[0].mxu0
    %v3107 = vadd.f32 0.0, %v3106
    %v3108 = vpop.f32.mrb[0].mxu0
    %3109 = vdwg.mxu0
    %v3111 = vrot.slane %v3107, 2
    %v3113 = vadd.f32 %v2111, %v3111
    %v3114 = vxor.u32 %v3034, 2147483648
    %v3115 = vmul.f32 %v3114, 1.442695
    %v3116 = vpow.pop %v3115
    %v3117 = vadd.f32 %v3116, 1.0
    %v3118 = vrcp.pop %v3117
    %v3119 = vmul.f32 1.0, %v3118
    %v3120 = vtanh.pop %v3034
    %v3122 = vrot.slane %v2924, 6
    %v3124 = vmul.f32 %v3119, %v3122
    %3126 = vrot.lane.b32.xlu0 %v3120, 64
    %v3127 = vpop.permute.xlu0 %3126
    %v3129 = vmul.f32 %v3119, %v3127
    %3131 = vrot.lane.b32.xlu0 %v3129, 32
    %v3132 = vpop.permute.xlu0 %3131
    %v3134 = vadd.f32 %v3124, %v3132
    %v3135 = vtanh.pop %v3134
    %3137 = vrot.lane.b32.xlu0 %v3135, 64
    %v3138 = vpop.permute.xlu0 %3137
    %v3140 = vmul.f32 %v3119, %v3138
    %v3141 = vxor.u32 %v3113, 2147483648
    %v3142 = vmul.f32 %v3141, 1.442695
    %v3143 = vpow.pop %v3142
    %v3144 = vadd.f32 %v3143, 1.0
    %v3145 = vrcp.pop %v3144
    %v3146 = vmul.f32 1.0, %v3145
    %v3147 = vtanh.pop %v3113
    %v3149 = vrot.slane %v2951, 2
    %v3151 = vmul.f32 %v3146, %v3149
    %3153 = vrot.lane.b32.xlu0 %v3147, 64
    %v3154 = vpop.permute.xlu0 %3153
    %v3156 = vmul.f32 %v3146, %v3154
    %3158 = vrot.lane.b32.xlu0 %v3156, 32
    %v3159 = vpop.permute.xlu0 %3158
    %v3161 = vadd.f32 %v3151, %v3159
    %v3162 = vtanh.pop %v3161
    %3164 = vrot.lane.b32.xlu0 %v3162, 64
    %v3165 = vpop.permute.xlu0 %3164
    %v3167 = vmul.f32 %v3146, %v3165
    %3169 = vrot.lane.b32.xlu0 %v3140, 32
    %v3170 = vpop.permute.xlu0 %3169
    %v3171 = vsel %vm170, %v3170, 0
    %3173 = vmatprep.subr.mxu0 0.0
    %3174 = vmatpush1.msra.mxu0 %v2119
    %3175 = vmatprep.subr.mxu0 0.0
    %3176 = vmatpush1.msra.mxu0 %v2120
    %3177 = vmatprep.subr.mxu0 0.0
    %3178 = vmatpush1.msra.mxu0 %v2121
    %3179 = vmatprep.subr.mxu0 0.0
    %3180 = vmatpush1.msra.mxu0 %v2122
    %3181 = vmatprep.subr.mxu0 0.0
    %3182 = vmatpush1.msra.mxu0 0.0
    %3183 = vmatprep.subr.mxu0 0.0
    %3184 = vmatpush1.msra.mxu0 0.0
    %3185 = vmatprep.subr.mxu0 0.0
    %3186 = vmatpush1.msra.mxu0 0.0
    %3187 = vmatprep.subr.mxu0 0.0
    %3188 = vmatpush1.msra.mxu0 0.0
    %3189 = vmatprep.subr.mxu0 0.0
    %3190 = vmatpush1.msra.mxu0 0.0
    %3191 = vmatprep.subr.mxu0 0.0
    %3192 = vmatpush1.msra.mxu0 0.0
    %3193 = vmatprep.subr.mxu0 0.0
    %3194 = vmatpush1.msra.mxu0 0.0
    %3195 = vmatprep.subr.mxu0 0.0
    %3196 = vmatpush1.msra.mxu0 0.0
    %3197 = vmatprep.subr.mxu0 0.0
    %3198 = vmatpush1.msra.mxu0 0.0
    %3199 = vmatprep.subr.mxu0 0.0
    %3200 = vmatpush1.msra.mxu0 0.0
    %3201 = vmatprep.subr.mxu0 0.0
    %3202 = vmatpush1.msra.mxu0 0.0
    %3203 = vmatprep.subr.mxu0 0.0
    %3204 = vmatpush1.msra.mxu0 0.0
    %3205 = vmatprep.subr.mxu0 0.0
    %3206 = vmatpush1.msra.mxu0 0.0
    %3207 = vmatprep.subr.mxu0 0.0
    %3208 = vmatpush1.msra.mxu0 0.0
    %3209 = vmatprep.subr.mxu0 0.0
    %3210 = vmatpush1.msra.mxu0 0.0
    %3211 = vmatprep.subr.mxu0 0.0
    %3212 = vmatpush1.msra.mxu0 0.0
    %3213 = vmatprep.subr.mxu0 0.0
    %3214 = vmatpush1.msra.mxu0 0.0
    %3215 = vmatprep.subr.mxu0 0.0
    %3216 = vmatpush1.msra.mxu0 0.0
    %3217 = vmatprep.subr.mxu0 0.0
    %3218 = vmatpush1.msra.mxu0 0.0
    %3219 = vmatprep.subr.mxu0 0.0
    %3220 = vmatpush1.msra.mxu0 0.0
    %3221 = vmatprep.subr.mxu0 0.0
    %3222 = vmatpush1.msra.mxu0 0.0
    %3223 = vmatprep.subr.mxu0 0.0
    %3224 = vmatpush1.msra.mxu0 0.0
    %3225 = vmatprep.subr.mxu0 0.0
    %3226 = vmatpush1.msra.mxu0 0.0
    %3227 = vmatprep.subr.mxu0 0.0
    %3228 = vmatpush1.msra.mxu0 0.0
    %3229 = vmatprep.subr.mxu0 0.0
    %3230 = vmatpush1.msra.mxu0 0.0
    %3231 = vmatprep.subr.mxu0 0.0
    %3232 = vmatpush1.msra.mxu0 0.0
    %3233 = vmatprep.subr.mxu0 0.0
    %3234 = vmatpush1.msra.mxu0 0.0
    %3235 = vmatprep.subr.mxu0 0.0
    %3236 = vmatpush1.msra.mxu0 0.0
    %3237 = vmatprep.mubr.f32.mxu0 0.0
    %3238 = vmatmul.mubr.f32.gmra.mrb[0].mxu0 %v3171
    %v3239 = vpop.f32.mrb[0].mxu0
    %v3240 = vadd.f32 0.0, %v3239
    %v3241 = vpop.f32.mrb[0].mxu0
    %3242 = vdwg.mxu0
    %v3244 = vrot.slane %v3240, 6
    %v3246 = vadd.f32 %v2115, %v3244
    %v3248 = vrot.slane %v3167, 6
    %3249 = vrot.lane.b32.xlu0 %v3248, 32
    %v3250 = vpop.permute.xlu0 %3249
    %v3251 = vsel %vm170, %v3250, 0
    %3253 = vmatprep.subr.mxu0 0.0
    %3254 = vmatpush1.msra.mxu0 %v2123
    %3255 = vmatprep.subr.mxu0 0.0
    %3256 = vmatpush1.msra.mxu0 %v2124
    %3257 = vmatprep.subr.mxu0 0.0
    %3258 = vmatpush1.msra.mxu0 %v2125
    %3259 = vmatprep.subr.mxu0 0.0
    %3260 = vmatpush1.msra.mxu0 %v2126
    %3261 = vmatprep.subr.mxu0 0.0
    %3262 = vmatpush1.msra.mxu0 0.0
    %3263 = vmatprep.subr.mxu0 0.0
    %3264 = vmatpush1.msra.mxu0 0.0
    %3265 = vmatprep.subr.mxu0 0.0
    %3266 = vmatpush1.msra.mxu0 0.0
    %3267 = vmatprep.subr.mxu0 0.0
    %3268 = vmatpush1.msra.mxu0 0.0
    %3269 = vmatprep.subr.mxu0 0.0
    %3270 = vmatpush1.msra.mxu0 0.0
    %3271 = vmatprep.subr.mxu0 0.0
    %3272 = vmatpush1.msra.mxu0 0.0
    %3273 = vmatprep.subr.mxu0 0.0
    %3274 = vmatpush1.msra.mxu0 0.0
    %3275 = vmatprep.subr.mxu0 0.0
    %3276 = vmatpush1.msra.mxu0 0.0
    %3277 = vmatprep.subr.mxu0 0.0
    %3278 = vmatpush1.msra.mxu0 0.0
    %3279 = vmatprep.subr.mxu0 0.0
    %3280 = vmatpush1.msra.mxu0 0.0
    %3281 = vmatprep.subr.mxu0 0.0
    %3282 = vmatpush1.msra.mxu0 0.0
    %3283 = vmatprep.subr.mxu0 0.0
    %3284 = vmatpush1.msra.mxu0 0.0
    %3285 = vmatprep.subr.mxu0 0.0
    %3286 = vmatpush1.msra.mxu0 0.0
    %3287 = vmatprep.subr.mxu0 0.0
    %3288 = vmatpush1.msra.mxu0 0.0
    %3289 = vmatprep.subr.mxu0 0.0
    %3290 = vmatpush1.msra.mxu0 0.0
    %3291 = vmatprep.subr.mxu0 0.0
    %3292 = vmatpush1.msra.mxu0 0.0
    %3293 = vmatprep.subr.mxu0 0.0
    %3294 = vmatpush1.msra.mxu0 0.0
    %3295 = vmatprep.subr.mxu0 0.0
    %3296 = vmatpush1.msra.mxu0 0.0
    %3297 = vmatprep.subr.mxu0 0.0
    %3298 = vmatpush1.msra.mxu0 0.0
    %3299 = vmatprep.subr.mxu0 0.0
    %3300 = vmatpush1.msra.mxu0 0.0
    %3301 = vmatprep.subr.mxu0 0.0
    %3302 = vmatpush1.msra.mxu0 0.0
    %3303 = vmatprep.subr.mxu0 0.0
    %3304 = vmatpush1.msra.mxu0 0.0
    %3305 = vmatprep.subr.mxu0 0.0
    %3306 = vmatpush1.msra.mxu0 0.0
    %3307 = vmatprep.subr.mxu0 0.0
    %3308 = vmatpush1.msra.mxu0 0.0
    %3309 = vmatprep.subr.mxu0 0.0
    %3310 = vmatpush1.msra.mxu0 0.0
    %3311 = vmatprep.subr.mxu0 0.0
    %3312 = vmatpush1.msra.mxu0 0.0
    %3313 = vmatprep.subr.mxu0 0.0
    %3314 = vmatpush1.msra.mxu0 0.0
    %3315 = vmatprep.subr.mxu0 0.0
    %3316 = vmatpush1.msra.mxu0 0.0
    %3317 = vmatprep.mubr.f32.mxu0 0.0
    %3318 = vmatmul.mubr.f32.gmra.mrb[0].mxu0 %v3251
    %v3319 = vpop.f32.mrb[0].mxu0
    %v3320 = vadd.f32 0.0, %v3319
    %v3321 = vpop.f32.mrb[0].mxu0
    %3322 = vdwg.mxu0
    %v3324 = vrot.slane %v3320, 4
    %v3326 = vadd.f32 %v2111, %v3324
    %v3327 = vxor.u32 %v3246, 2147483648
    %v3328 = vmul.f32 %v3327, 1.442695
    %v3329 = vpow.pop %v3328
    %v3330 = vadd.f32 %v3329, 1.0
    %v3331 = vrcp.pop %v3330
    %v3332 = vmul.f32 1.0, %v3331
    %v3333 = vtanh.pop %v3246
    %v3335 = vrot.slane %v3134, 6
    %v3337 = vmul.f32 %v3332, %v3335
    %3339 = vrot.lane.b32.xlu0 %v3333, 64
    %v3340 = vpop.permute.xlu0 %3339
    %v3342 = vmul.f32 %v3332, %v3340
    %3344 = vrot.lane.b32.xlu0 %v3342, 32
    %v3345 = vpop.permute.xlu0 %3344
    %v3347 = vadd.f32 %v3337, %v3345
    %v3348 = vtanh.pop %v3347
    %3350 = vrot.lane.b32.xlu0 %v3348, 64
    %v3351 = vpop.permute.xlu0 %3350
    %v3353 = vmul.f32 %v3332, %v3351
    %v3354 = vxor.u32 %v3326, 2147483648
    %v3355 = vmul.f32 %v3354, 1.442695
    %v3356 = vpow.pop %v3355
    %v3357 = vadd.f32 %v3356, 1.0
    %v3358 = vrcp.pop %v3357
    %v3359 = vmul.f32 1.0, %v3358
    %v3360 = vtanh.pop %v3326
    %v3362 = vrot.slane %v3161, 2
    %v3364 = vmul.f32 %v3359, %v3362
    %3366 = vrot.lane.b32.xlu0 %v3360, 64
    %v3367 = vpop.permute.xlu0 %3366
    %v3369 = vmul.f32 %v3359, %v3367
    %3371 = vrot.lane.b32.xlu0 %v3369, 32
    %v3372 = vpop.permute.xlu0 %3371
    %v3374 = vadd.f32 %v3364, %v3372
    %v3375 = vtanh.pop %v3374
    %3377 = vrot.lane.b32.xlu0 %v3375, 64
    %v3378 = vpop.permute.xlu0 %3377
    %v3380 = vmul.f32 %v3359, %v3378
    %v3382 = vrot.slane %v3353, 2
    %3383 = vrot.lane.b32.xlu0 %v3382, 32
    %v3384 = vpop.permute.xlu0 %3383
    %v3385 = vsel %vm170, %v3384, 0
    %3387 = vmatprep.subr.mxu0 0.0
    %3388 = vmatpush1.msra.mxu0 %v2119
    %3389 = vmatprep.subr.mxu0 0.0
    %3390 = vmatpush1.msra.mxu0 %v2120
    %3391 = vmatprep.subr.mxu0 0.0
    %3392 = vmatpush1.msra.mxu0 %v2121
    %3393 = vmatprep.subr.mxu0 0.0
    %3394 = vmatpush1.msra.mxu0 %v2122
    %3395 = vmatprep.subr.mxu0 0.0
    %3396 = vmatpush1.msra.mxu0 0.0
    %3397 = vmatprep.subr.mxu0 0.0
    %3398 = vmatpush1.msra.mxu0 0.0
    %3399 = vmatprep.subr.mxu0 0.0
    %3400 = vmatpush1.msra.mxu0 0.0
    %3401 = vmatprep.subr.mxu0 0.0
    %3402 = vmatpush1.msra.mxu0 0.0
    %3403 = vmatprep.subr.mxu0 0.0
    %3404 = vmatpush1.msra.mxu0 0.0
    %3405 = vmatprep.subr.mxu0 0.0
    %3406 = vmatpush1.msra.mxu0 0.0
    %3407 = vmatprep.subr.mxu0 0.0
    %3408 = vmatpush1.msra.mxu0 0.0
    %3409 = vmatprep.subr.mxu0 0.0
    %3410 = vmatpush1.msra.mxu0 0.0
    %3411 = vmatprep.subr.mxu0 0.0
    %3412 = vmatpush1.msra.mxu0 0.0
    %3413 = vmatprep.subr.mxu0 0.0
    %3414 = vmatpush1.msra.mxu0 0.0
    %3415 = vmatprep.subr.mxu0 0.0
    %3416 = vmatpush1.msra.mxu0 0.0
    %3417 = vmatprep.subr.mxu0 0.0
    %3418 = vmatpush1.msra.mxu0 0.0
    %3419 = vmatprep.subr.mxu0 0.0
    %3420 = vmatpush1.msra.mxu0 0.0
    %3421 = vmatprep.subr.mxu0 0.0
    %3422 = vmatpush1.msra.mxu0 0.0
    %3423 = vmatprep.subr.mxu0 0.0
    %3424 = vmatpush1.msra.mxu0 0.0
    %3425 = vmatprep.subr.mxu0 0.0
    %3426 = vmatpush1.msra.mxu0 0.0
    %3427 = vmatprep.subr.mxu0 0.0
    %3428 = vmatpush1.msra.mxu0 0.0
    %3429 = vmatprep.subr.mxu0 0.0
    %3430 = vmatpush1.msra.mxu0 0.0
    %3431 = vmatprep.subr.mxu0 0.0
    %3432 = vmatpush1.msra.mxu0 0.0
    %3433 = vmatprep.subr.mxu0 0.0
    %3434 = vmatpush1.msra.mxu0 0.0
    %3435 = vmatprep.subr.mxu0 0.0
    %3436 = vmatpush1.msra.mxu0 0.0
    %3437 = vmatprep.subr.mxu0 0.0
    %3438 = vmatpush1.msra.mxu0 0.0
    %3439 = vmatprep.subr.mxu0 0.0
    %3440 = vmatpush1.msra.mxu0 0.0
    %3441 = vmatprep.subr.mxu0 0.0
    %3442 = vmatpush1.msra.mxu0 0.0
    %3443 = vmatprep.subr.mxu0 0.0
    %3444 = vmatpush1.msra.mxu0 0.0
    %3445 = vmatprep.subr.mxu0 0.0
    %3446 = vmatpush1.msra.mxu0 0.0
    %3447 = vmatprep.subr.mxu0 0.0
    %3448 = vmatpush1.msra.mxu0 0.0
    %3449 = vmatprep.subr.mxu0 0.0
    %3450 = vmatpush1.msra.mxu0 0.0
    %3451 = vmatprep.mubr.f32.mxu0 0.0
    %3452 = vmatmul.mubr.f32.gmra.mrb[0].mxu0 %v3385
    %v3453 = vpop.f32.mrb[0].mxu0
    %v3454 = vadd.f32 0.0, %v3453
    %v3455 = vpop.f32.mrb[0].mxu0
    %3456 = vdwg.mxu0
    %v3458 = vrot.slane %v3454, 4
    %v3460 = vadd.f32 %v2115, %v3458
    %v3462 = vrot.slane %v3380, 4
    %3463 = vrot.lane.b32.xlu0 %v3462, 32
    %v3464 = vpop.permute.xlu0 %3463
    %v3465 = vsel %vm170, %v3464, 0
    %3467 = vmatprep.subr.mxu0 0.0
    %3468 = vmatpush1.msra.mxu0 %v2123
    %3469 = vmatprep.subr.mxu0 0.0
    %3470 = vmatpush1.msra.mxu0 %v2124
    %3471 = vmatprep.subr.mxu0 0.0
    %3472 = vmatpush1.msra.mxu0 %v2125
    %3473 = vmatprep.subr.mxu0 0.0
    %3474 = vmatpush1.msra.mxu0 %v2126
    %3475 = vmatprep.subr.mxu0 0.0
    %3476 = vmatpush1.msra.mxu0 0.0
    %3477 = vmatprep.subr.mxu0 0.0
    %3478 = vmatpush1.msra.mxu0 0.0
    %3479 = vmatprep.subr.mxu0 0.0
    %3480 = vmatpush1.msra.mxu0 0.0
    %3481 = vmatprep.subr.mxu0 0.0
    %3482 = vmatpush1.msra.mxu0 0.0
    %3483 = vmatprep.subr.mxu0 0.0
    %3484 = vmatpush1.msra.mxu0 0.0
    %3485 = vmatprep.subr.mxu0 0.0
    %3486 = vmatpush1.msra.mxu0 0.0
    %3487 = vmatprep.subr.mxu0 0.0
    %3488 = vmatpush1.msra.mxu0 0.0
    %3489 = vmatprep.subr.mxu0 0.0
    %3490 = vmatpush1.msra.mxu0 0.0
    %3491 = vmatprep.subr.mxu0 0.0
    %3492 = vmatpush1.msra.mxu0 0.0
    %3493 = vmatprep.subr.mxu0 0.0
    %3494 = vmatpush1.msra.mxu0 0.0
    %3495 = vmatprep.subr.mxu0 0.0
    %3496 = vmatpush1.msra.mxu0 0.0
    %3497 = vmatprep.subr.mxu0 0.0
    %3498 = vmatpush1.msra.mxu0 0.0
    %3499 = vmatprep.subr.mxu0 0.0
    %3500 = vmatpush1.msra.mxu0 0.0
    %3501 = vmatprep.subr.mxu0 0.0
    %3502 = vmatpush1.msra.mxu0 0.0
    %3503 = vmatprep.subr.mxu0 0.0
    %3504 = vmatpush1.msra.mxu0 0.0
    %3505 = vmatprep.subr.mxu0 0.0
    %3506 = vmatpush1.msra.mxu0 0.0
    %3507 = vmatprep.subr.mxu0 0.0
    %3508 = vmatpush1.msra.mxu0 0.0
    %3509 = vmatprep.subr.mxu0 0.0
    %3510 = vmatpush1.msra.mxu0 0.0
    %3511 = vmatprep.subr.mxu0 0.0
    %3512 = vmatpush1.msra.mxu0 0.0
    %3513 = vmatprep.subr.mxu0 0.0
    %3514 = vmatpush1.msra.mxu0 0.0
    %3515 = vmatprep.subr.mxu0 0.0
    %3516 = vmatpush1.msra.mxu0 0.0
    %3517 = vmatprep.subr.mxu0 0.0
    %3518 = vmatpush1.msra.mxu0 0.0
    %3519 = vmatprep.subr.mxu0 0.0
    %3520 = vmatpush1.msra.mxu0 0.0
    %3521 = vmatprep.subr.mxu0 0.0
    %3522 = vmatpush1.msra.mxu0 0.0
    %3523 = vmatprep.subr.mxu0 0.0
    %3524 = vmatpush1.msra.mxu0 0.0
    %3525 = vmatprep.subr.mxu0 0.0
    %3526 = vmatpush1.msra.mxu0 0.0
    %3527 = vmatprep.subr.mxu0 0.0
    %3528 = vmatpush1.msra.mxu0 0.0
    %3529 = vmatprep.subr.mxu0 0.0
    %3530 = vmatpush1.msra.mxu0 0.0
    %3531 = vmatprep.mubr.f32.mxu0 0.0
    %3532 = vmatmul.mubr.f32.gmra.mrb[0].mxu0 %v3465
    %v3533 = vpop.f32.mrb[0].mxu0
    %v3534 = vadd.f32 0.0, %v3533
    %v3535 = vpop.f32.mrb[0].mxu0
    %3536 = vdwg.mxu0
    %v3538 = vrot.slane %v3534, 6
    %v3540 = vadd.f32 %v2111, %v3538
    %v3541 = vxor.u32 %v3460, 2147483648
    %v3542 = vmul.f32 %v3541, 1.442695
    %v3543 = vpow.pop %v3542
    %v3544 = vadd.f32 %v3543, 1.0
    %v3545 = vrcp.pop %v3544
    %v3546 = vmul.f32 1.0, %v3545
    %v3547 = vtanh.pop %v3460
    %v3549 = vrot.slane %v3347, 6
    %v3551 = vmul.f32 %v3546, %v3549
    %3553 = vrot.lane.b32.xlu0 %v3547, 64
    %v3554 = vpop.permute.xlu0 %3553
    %v3556 = vmul.f32 %v3546, %v3554
    %3558 = vrot.lane.b32.xlu0 %v3556, 32
    %v3559 = vpop.permute.xlu0 %3558
    %v3561 = vadd.f32 %v3551, %v3559
    %v3562 = vtanh.pop %v3561
    %3564 = vrot.lane.b32.xlu0 %v3562, 64
    %v3565 = vpop.permute.xlu0 %3564
    %v3567 = vmul.f32 %v3546, %v3565
    %v3568 = vxor.u32 %v3540, 2147483648
    %v3569 = vmul.f32 %v3568, 1.442695
    %v3570 = vpow.pop %v3569
    %v3571 = vadd.f32 %v3570, 1.0
    %v3572 = vrcp.pop %v3571
    %v3573 = vmul.f32 1.0, %v3572
    %v3574 = vtanh.pop %v3540
    %v3576 = vrot.slane %v3374, 2
    %v3578 = vmul.f32 %v3573, %v3576
    %3580 = vrot.lane.b32.xlu0 %v3574, 64
    %v3581 = vpop.permute.xlu0 %3580
    %v3583 = vmul.f32 %v3573, %v3581
    %3585 = vrot.lane.b32.xlu0 %v3583, 32
    %v3586 = vpop.permute.xlu0 %3585
    %v3588 = vadd.f32 %v3578, %v3586
    %v3589 = vtanh.pop %v3588
    %3591 = vrot.lane.b32.xlu0 %v3589, 64
    %v3592 = vpop.permute.xlu0 %3591
    %v3594 = vmul.f32 %v3573, %v3592
    %v3596 = vrot.slane %v3567, 4
    %3597 = vrot.lane.b32.xlu0 %v3596, 32
    %v3598 = vpop.permute.xlu0 %3597
    %v3599 = vsel %vm170, %v3598, 0
    %3601 = vmatprep.subr.mxu0 0.0
    %3602 = vmatpush1.msra.mxu0 %v2119
    %3603 = vmatprep.subr.mxu0 0.0
    %3604 = vmatpush1.msra.mxu0 %v2120
    %3605 = vmatprep.subr.mxu0 0.0
    %3606 = vmatpush1.msra.mxu0 %v2121
    %3607 = vmatprep.subr.mxu0 0.0
    %3608 = vmatpush1.msra.mxu0 %v2122
    %3609 = vmatprep.subr.mxu0 0.0
    %3610 = vmatpush1.msra.mxu0 0.0
    %3611 = vmatprep.subr.mxu0 0.0
    %3612 = vmatpush1.msra.mxu0 0.0
    %3613 = vmatprep.subr.mxu0 0.0
    %3614 = vmatpush1.msra.mxu0 0.0
    %3615 = vmatprep.subr.mxu0 0.0
    %3616 = vmatpush1.msra.mxu0 0.0
    %3617 = vmatprep.subr.mxu0 0.0
    %3618 = vmatpush1.msra.mxu0 0.0
    %3619 = vmatprep.subr.mxu0 0.0
    %3620 = vmatpush1.msra.mxu0 0.0
    %3621 = vmatprep.subr.mxu0 0.0
    %3622 = vmatpush1.msra.mxu0 0.0
    %3623 = vmatprep.subr.mxu0 0.0
    %3624 = vmatpush1.msra.mxu0 0.0
    %3625 = vmatprep.subr.mxu0 0.0
    %3626 = vmatpush1.msra.mxu0 0.0
    %3627 = vmatprep.subr.mxu0 0.0
    %3628 = vmatpush1.msra.mxu0 0.0
    %3629 = vmatprep.subr.mxu0 0.0
    %3630 = vmatpush1.msra.mxu0 0.0
    %3631 = vmatprep.subr.mxu0 0.0
    %3632 = vmatpush1.msra.mxu0 0.0
    %3633 = vmatprep.subr.mxu0 0.0
    %3634 = vmatpush1.msra.mxu0 0.0
    %3635 = vmatprep.subr.mxu0 0.0
    %3636 = vmatpush1.msra.mxu0 0.0
    %3637 = vmatprep.subr.mxu0 0.0
    %3638 = vmatpush1.msra.mxu0 0.0
    %3639 = vmatprep.subr.mxu0 0.0
    %3640 = vmatpush1.msra.mxu0 0.0
    %3641 = vmatprep.subr.mxu0 0.0
    %3642 = vmatpush1.msra.mxu0 0.0
    %3643 = vmatprep.subr.mxu0 0.0
    %3644 = vmatpush1.msra.mxu0 0.0
    %3645 = vmatprep.subr.mxu0 0.0
    %3646 = vmatpush1.msra.mxu0 0.0
    %3647 = vmatprep.subr.mxu0 0.0
    %3648 = vmatpush1.msra.mxu0 0.0
    %3649 = vmatprep.subr.mxu0 0.0
    %3650 = vmatpush1.msra.mxu0 0.0
    %3651 = vmatprep.subr.mxu0 0.0
    %3652 = vmatpush1.msra.mxu0 0.0
    %3653 = vmatprep.subr.mxu0 0.0
    %3654 = vmatpush1.msra.mxu0 0.0
    %3655 = vmatprep.subr.mxu0 0.0
    %3656 = vmatpush1.msra.mxu0 0.0
    %3657 = vmatprep.subr.mxu0 0.0
    %3658 = vmatpush1.msra.mxu0 0.0
    %3659 = vmatprep.subr.mxu0 0.0
    %3660 = vmatpush1.msra.mxu0 0.0
    %3661 = vmatprep.subr.mxu0 0.0
    %3662 = vmatpush1.msra.mxu0 0.0
    %3663 = vmatprep.subr.mxu0 0.0
    %3664 = vmatpush1.msra.mxu0 0.0
    %3665 = vmatprep.mubr.f32.mxu0 0.0
    %3666 = vmatmul.mubr.f32.gmra.mrb[0].mxu0 %v3599
    %v3667 = vpop.f32.mrb[0].mxu0
    %v3668 = vadd.f32 0.0, %v3667
    %v3669 = vpop.f32.mrb[0].mxu0
    %3670 = vdwg.mxu0
    %v3672 = vrot.slane %v3668, 2
    %v3674 = vadd.f32 %v2115, %v3672
    %v3676 = vrot.slane %v3594, 2
    %3677 = vrot.lane.b32.xlu0 %v3676, 32
    %v3678 = vpop.permute.xlu0 %3677
    %v3679 = vsel %vm170, %v3678, 0
    %3681 = vmatprep.subr.mxu0 0.0
    %3682 = vmatpush1.msra.mxu0 %v2123
    %3683 = vmatprep.subr.mxu0 0.0
    %3684 = vmatpush1.msra.mxu0 %v2124
    %3685 = vmatprep.subr.mxu0 0.0
    %3686 = vmatpush1.msra.mxu0 %v2125
    %3687 = vmatprep.subr.mxu0 0.0
    %3688 = vmatpush1.msra.mxu0 %v2126
    %3689 = vmatprep.subr.mxu0 0.0
    %3690 = vmatpush1.msra.mxu0 0.0
    %3691 = vmatprep.subr.mxu0 0.0
    %3692 = vmatpush1.msra.mxu0 0.0
    %3693 = vmatprep.subr.mxu0 0.0
    %3694 = vmatpush1.msra.mxu0 0.0
    %3695 = vmatprep.subr.mxu0 0.0
    %3696 = vmatpush1.msra.mxu0 0.0
    %3697 = vmatprep.subr.mxu0 0.0
    %3698 = vmatpush1.msra.mxu0 0.0
    %3699 = vmatprep.subr.mxu0 0.0
    %3700 = vmatpush1.msra.mxu0 0.0
    %3701 = vmatprep.subr.mxu0 0.0
    %3702 = vmatpush1.msra.mxu0 0.0
    %3703 = vmatprep.subr.mxu0 0.0
    %3704 = vmatpush1.msra.mxu0 0.0
    %3705 = vmatprep.subr.mxu0 0.0
    %3706 = vmatpush1.msra.mxu0 0.0
    %3707 = vmatprep.subr.mxu0 0.0
    %3708 = vmatpush1.msra.mxu0 0.0
    %3709 = vmatprep.subr.mxu0 0.0
    %3710 = vmatpush1.msra.mxu0 0.0
    %3711 = vmatprep.subr.mxu0 0.0
    %3712 = vmatpush1.msra.mxu0 0.0
    %3713 = vmatprep.subr.mxu0 0.0
    %3714 = vmatpush1.msra.mxu0 0.0
    %3715 = vmatprep.subr.mxu0 0.0
    %3716 = vmatpush1.msra.mxu0 0.0
    %3717 = vmatprep.subr.mxu0 0.0
    %3718 = vmatpush1.msra.mxu0 0.0
    %3719 = vmatprep.subr.mxu0 0.0
    %3720 = vmatpush1.msra.mxu0 0.0
    %3721 = vmatprep.subr.mxu0 0.0
    %3722 = vmatpush1.msra.mxu0 0.0
    %3723 = vmatprep.subr.mxu0 0.0
    %3724 = vmatpush1.msra.mxu0 0.0
    %3725 = vmatprep.subr.mxu0 0.0
    %3726 = vmatpush1.msra.mxu0 0.0
    %3727 = vmatprep.subr.mxu0 0.0
    %3728 = vmatpush1.msra.mxu0 0.0
    %3729 = vmatprep.subr.mxu0 0.0
    %3730 = vmatpush1.msra.mxu0 0.0
    %3731 = vmatprep.subr.mxu0 0.0
    %3732 = vmatpush1.msra.mxu0 0.0
    %3733 = vmatprep.subr.mxu0 0.0
    %3734 = vmatpush1.msra.mxu0 0.0
    %3735 = vmatprep.subr.mxu0 0.0
    %3736 = vmatpush1.msra.mxu0 0.0
    %3737 = vmatprep.subr.mxu0 0.0
    %3738 = vmatpush1.msra.mxu0 0.0
    %3739 = vmatprep.subr.mxu0 0.0
    %3740 = vmatpush1.msra.mxu0 0.0
    %3741 = vmatprep.subr.mxu0 0.0
    %3742 = vmatpush1.msra.mxu0 0.0
    %3743 = vmatprep.subr.mxu0 0.0
    %3744 = vmatpush1.msra.mxu0 0.0
    %3745 = vmatprep.mubr.f32.mxu0 0.0
    %3746 = vmatmul.mubr.f32.gmra.mrb[0].mxu0 %v3679
    %v3747 = vpop.f32.mrb[0].mxu0
    %v3748 = vadd.f32 0.0, %v3747
    %v3749 = vpop.f32.mrb[0].mxu0
    %3750 = vdwg.mxu0
    %v3751 = vadd.f32 %v2111, %v3748
    %v3752 = vxor.u32 %v3674, 2147483648
    %v3753 = vmul.f32 %v3752, 1.442695
    %v3754 = vpow.pop %v3753
    %v3755 = vadd.f32 %v3754, 1.0
    %v3756 = vrcp.pop %v3755
    %v3757 = vmul.f32 1.0, %v3756
    %v3758 = vtanh.pop %v3674
    %v3760 = vrot.slane %v3561, 6
    %v3762 = vmul.f32 %v3757, %v3760
    %3764 = vrot.lane.b32.xlu0 %v3758, 64
    %v3765 = vpop.permute.xlu0 %3764
    %v3767 = vmul.f32 %v3757, %v3765
    %3769 = vrot.lane.b32.xlu0 %v3767, 32
    %v3770 = vpop.permute.xlu0 %3769
    %v3772 = vadd.f32 %v3762, %v3770
    %v3773 = vtanh.pop %v3772
    %3775 = vrot.lane.b32.xlu0 %v3773, 64
    %v3776 = vpop.permute.xlu0 %3775
    %v3778 = vmul.f32 %v3757, %v3776
    %v3779 = vxor.u32 %v3751, 2147483648
    %v3780 = vmul.f32 %v3779, 1.442695
    %v3781 = vpow.pop %v3780
    %v3782 = vadd.f32 %v3781, 1.0
    %v3783 = vrcp.pop %v3782
    %v3784 = vmul.f32 1.0, %v3783
    %v3785 = vtanh.pop %v3751
    %v3787 = vrot.slane %v3588, 2
    %v3789 = vmul.f32 %v3784, %v3787
    %3791 = vrot.lane.b32.xlu0 %v3785, 64
    %v3792 = vpop.permute.xlu0 %3791
    %v3794 = vmul.f32 %v3784, %v3792
    %3796 = vrot.lane.b32.xlu0 %v3794, 32
    %v3797 = vpop.permute.xlu0 %3796
    %v3799 = vadd.f32 %v3789, %v3797
    %v3800 = vtanh.pop %v3799
    %3802 = vrot.lane.b32.xlu0 %v3800, 64
    %v3803 = vpop.permute.xlu0 %3802
    %v3805 = vmul.f32 %v3784, %v3803
    %3808 = vrot.lane.b32.xlu0 %v3805, 64
    %v3809 = vpop.permute.xlu0 %3808
    %v3811 = vsel %vm170, %v2322, %v3809
    %3812 = vrot.lane.b32.xlu0 %v2505, 32
    %v3813 = vpop.permute.xlu0 %3812
    %3815 = vrot.lane.b32.xlu0 %v3594, 64
    %v3816 = vpop.permute.xlu0 %3815
    %v3818 = vsel %vm170, %v3813, %v3816
    %3819 = vrot.lane.b32.xlu0 %v2719, 32
    %v3820 = vpop.permute.xlu0 %3819
    %3822 = vrot.lane.b32.xlu0 %v3380, 64
    %v3823 = vpop.permute.xlu0 %3822
    %v3825 = vsel %vm170, %v3820, %v3823
    %3826 = vrot.lane.b32.xlu0 %v2930, 32
    %v3827 = vpop.permute.xlu0 %3826
    %3829 = vrot.lane.b32.xlu0 %v3167, 64
    %v3830 = vpop.permute.xlu0 %3829
    %v3832 = vsel %vm170, %v3827, %v3830
    %3834 = vrot.lane.b32.xlu0 %v2957, 64
    %v3835 = vpop.permute.xlu0 %3834
    %v3837 = vsel %vm170, %v3170, %v3835
    %3838 = vrot.lane.b32.xlu0 %v3353, 32
    %v3839 = vpop.permute.xlu0 %3838
    %3841 = vrot.lane.b32.xlu0 %v2746, 64
    %v3842 = vpop.permute.xlu0 %3841
    %v3844 = vsel %vm170, %v3839, %v3842
    %3845 = vrot.lane.b32.xlu0 %v3567, 32
    %v3846 = vpop.permute.xlu0 %3845
    %3848 = vrot.lane.b32.xlu0 %v2532, 64
    %v3849 = vpop.permute.xlu0 %3848
    %v3851 = vsel %vm170, %v3846, %v3849
    %3853 = vrot.lane.b32.xlu0 %v3778, 32
    %v3854 = vpop.permute.xlu0 %3853
    %3856 = vrot.lane.b32.xlu0 %v2319, 64
    %v3857 = vpop.permute.xlu0 %3856
    %v3859 = vsel %vm170, %v3854, %v3857
    %v3860 = vsel %vm1998, %v3811, %v3818
    %v3861 = vsel %vm2000, %v3860, %v3825
    %v3862 = vsel %vm2002, %v3861, %v3832
    %v3863 = vsel %vm1998, %v3837, %v3844
    %v3864 = vsel %vm2000, %v3863, %v3851
    %v3865 = vsel %vm2002, %v3864, %v3859
    %v3866 = vld [vmem:[#allocation14] sm:$0xff]
    %v3867 = vld [vmem:[#allocation14 + $0x8] sm:$0xff]
    %v3868 = vld [vmem:[#allocation14 + $0x10] sm:$0xff]
    %v3869 = vld [vmem:[#allocation14 + $0x18] sm:$0xff]
    %v3870 = vld [vmem:[#allocation14 + $0x20] sm:$0xff]
    %v3871 = vld [vmem:[#allocation14 + $0x28] sm:$0xff]
    %v3872 = vld [vmem:[#allocation14 + $0x30] sm:$0xff]
    %v3873 = vld [vmem:[#allocation14 + $0x38] sm:$0xff]
    %v3874 = vld [vmem:[%s10] sm:$0x1]
    %v3876 = vlaneseq
    %v3877 = vshrl.u32 %v3876, 7
    %v3878 = vsub.s32 0, %v3877
    %v3879 = vrot.slane %v3874, %v3878
    %v3882 = vsel %vm2035, %v3862, 0
    %v3885 = vsel %vm2035, %v3865, 0
    %3887 = vmatprep.subr.mxu0 0.0
    %3888 = vmatpush1.msra.mxu0 %v3866
    %3889 = vmatprep.subr.mxu0 0.0
    %3890 = vmatpush1.msra.mxu0 %v3867
    %3891 = vmatprep.subr.mxu0 0.0
    %3892 = vmatpush1.msra.mxu0 %v3868
    %3893 = vmatprep.subr.mxu0 0.0
    %3894 = vmatpush1.msra.mxu0 %v3869
    %3895 = vmatprep.subr.mxu0 0.0
    %3896 = vmatpush1.msra.mxu0 %v3870
    %3897 = vmatprep.subr.mxu0 0.0
    %3898 = vmatpush1.msra.mxu0 %v3871
    %3899 = vmatprep.subr.mxu0 0.0
    %3900 = vmatpush1.msra.mxu0 %v3872
    %3901 = vmatprep.subr.mxu0 0.0
    %3902 = vmatpush1.msra.mxu0 %v3873
    %3903 = vmatprep.subr.mxu0 0.0
    %3904 = vmatpush1.msra.mxu0 0.0
    %3905 = vmatprep.subr.mxu0 0.0
    %3906 = vmatpush1.msra.mxu0 0.0
    %3907 = vmatprep.subr.mxu0 0.0
    %3908 = vmatpush1.msra.mxu0 0.0
    %3909 = vmatprep.subr.mxu0 0.0
    %3910 = vmatpush1.msra.mxu0 0.0
    %3911 = vmatprep.subr.mxu0 0.0
    %3912 = vmatpush1.msra.mxu0 0.0
    %3913 = vmatprep.subr.mxu0 0.0
    %3914 = vmatpush1.msra.mxu0 0.0
    %3915 = vmatprep.subr.mxu0 0.0
    %3916 = vmatpush1.msra.mxu0 0.0
    %3917 = vmatprep.subr.mxu0 0.0
    %3918 = vmatpush1.msra.mxu0 0.0
    %3919 = vmatprep.subr.mxu0 0.0
    %3920 = vmatpush1.msra.mxu0 0.0
    %3921 = vmatprep.subr.mxu0 0.0
    %3922 = vmatpush1.msra.mxu0 0.0
    %3923 = vmatprep.subr.mxu0 0.0
    %3924 = vmatpush1.msra.mxu0 0.0
    %3925 = vmatprep.subr.mxu0 0.0
    %3926 = vmatpush1.msra.mxu0 0.0
    %3927 = vmatprep.subr.mxu0 0.0
    %3928 = vmatpush1.msra.mxu0 0.0
    %3929 = vmatprep.subr.mxu0 0.0
    %3930 = vmatpush1.msra.mxu0 0.0
    %3931 = vmatprep.subr.mxu0 0.0
    %3932 = vmatpush1.msra.mxu0 0.0
    %3933 = vmatprep.subr.mxu0 0.0
    %3934 = vmatpush1.msra.mxu0 0.0
    %3935 = vmatprep.subr.mxu0 0.0
    %3936 = vmatpush1.msra.mxu0 0.0
    %3937 = vmatprep.subr.mxu0 0.0
    %3938 = vmatpush1.msra.mxu0 0.0
    %3939 = vmatprep.subr.mxu0 0.0
    %3940 = vmatpush1.msra.mxu0 0.0
    %3941 = vmatprep.subr.mxu0 0.0
    %3942 = vmatpush1.msra.mxu0 0.0
    %3943 = vmatprep.subr.mxu0 0.0
    %3944 = vmatpush1.msra.mxu0 0.0
    %3945 = vmatprep.subr.mxu0 0.0
    %3946 = vmatpush1.msra.mxu0 0.0
    %3947 = vmatprep.subr.mxu0 0.0
    %3948 = vmatpush1.msra.mxu0 0.0
    %3949 = vmatprep.subr.mxu0 0.0
    %3950 = vmatpush1.msra.mxu0 0.0
    %3951 = vmatprep.mubr.f32.mxu0 0.0
    %3952 = vmatmul.mubr.f32.gmra.mrb[0].mxu0 %v3882
    %v3953 = vpop.f32.mrb[0].mxu0
    %v3954 = vadd.f32 %v3879, %v3953
    %v3955 = vpop.f32.mrb[0].mxu0
    %3956 = vmatprep.mubr.f32.mxu0 0.0
    %3957 = vmatmul.mubr.f32.gmra.mrb[0].mxu0 %v3885
    %v3958 = vpop.f32.mrb[0].mxu0
    %v3959 = vadd.f32 %v3879, %v3958
    %v3960 = vpop.f32.mrb[0].mxu0
    %3961 = vdwg.mxu0
    %3962 = vst [vmem:[#allocation16] sm:$0xff] %v3954
    %3963 = vst [vmem:[#allocation16 + $0x8] sm:$0xff] %v3959
    // Predicated region
    $region78: #{tpu_custom_call.1} parent=1 // pred_check
      _
    $region79: #{tpu_custom_call.1} parent=1 // pred_check_branch
      %3965 = sbr.rel (0) target = $region81
    $region80: #{tpu_custom_call.1} parent=1 // pred_region
      %s3967 = ssub.s32 256, 256
      %3968 = vsyncadd [#allocation4], %s3967
      %s3969 = sshll.u32 [#allocation16], 4
      %s3970 = int_to_ptr.vmem [resolvable:$true] %s3969
      %3975 = dma.vmem_to_hbm [thread:$0]  %s3970, 256, %s11, [#allocation4], 128, 128, 8
    $region81: #{tpu_custom_call.1} parent=1 // pred_fallthru
      _
    // Predicated region
    $region82: #{tpu_custom_call.1} parent=1 // pred_check
      _
    $region83: #{tpu_custom_call.1} parent=1 // pred_check_branch
      %3977 = sbr.rel (0) target = $region85
    $region84: #{tpu_custom_call.1} parent=1 // pred_region
      %3978 = dma.done [#allocation4], 256
    $region85: #{tpu_custom_call.1} parent=1 // pred_fallthru
      _
    %3979 = vsyncpa [#allocation3], 1
    %3980 = vsyncpa [#allocation6], 1
    %3981 = vsyncpa [#allocation9], 1
    %3982 = vsyncpa [#allocation12], 1
    %3983 = vsyncpa [#allocation15], 1
    %3984 = vsyncpa [#allocation4], 1

</llo_original>
